<compile_context>
chip_gen: v7x
topology: tpu7x:2x2x1
jax: 0.10.0
libtpu: 0.0.40
codegen_flags: <defaults>
</compile_context>

<pallas_src>
import jax
import jax.numpy as jnp
from jax import lax
from jax.experimental import pallas as pl
from jax.experimental.pallas import tpu as pltpu


def _resblock_kernel(x_top_ref, x_body_ref, x_bot_ref, w1_ref, w2_ref,
                     o_ref, xext_ref, text_ref):
    # x_top_ref : (1, 2, W, C)      image rows [r0-2, r0)        (garbage at band 0)
    # x_body_ref: (1, BAND, W, C)   image rows [r0, r0+BAND)
    # x_bot_ref : (1, 2, W, C)      image rows [r0+BAND, r0+BAND+2) (garbage at last band)
    # w1_ref    : (9, C, C)         conv1 weight, tap-major (HW, I, O), bf16
    # w2_ref    : (9, C, C)         conv2 weight, tap-major, bf16
    # o_ref     : (1, BAND, W, C)
    # xext_ref  : (BAND+4, W+2, C)  column-padded conv1 input window   (VMEM, f32)
    # text_ref  : (BAND+2, W+2, C)  column-padded relu(conv1) window   (VMEM, f32)
    hi = pl.program_id(1)
    n_bands = pl.num_programs(1)
    band = x_body_ref.shape[1]
    W = x_body_ref.shape[2]
    C = x_body_ref.shape[3]
    mdt = w1_ref.dtype            # bf16: matmul-operand dtype
    sdt = xext_ref.dtype          # f32 : scratch / elementwise dtype

    # ---- refresh only the zero-padding columns (cols 0 and W+1) ----------------
    # Tiny per-step cost; done every step (not once) so each TensorCore's private
    # scratch is correct under megacore grid sharding.
    xext_ref[:, 0:1, :] = jnp.zeros((band + 4, 1, C), sdt)
    xext_ref[:, W + 1:, :] = jnp.zeros((band + 4, 1, C), sdt)
    text_ref[:, 0:1, :] = jnp.zeros((band + 2, 1, C), sdt)
    text_ref[:, W + 1:, :] = jnp.zeros((band + 2, 1, C), sdt)

    # ---- assemble the padded conv1 input window (body + 2-row halos) ------------
    xext_ref[2:2 + band, 1:W + 1, :] = x_body_ref[0]

    @pl.when(hi > 0)                                  # interior band: real halo rows
    def _():
        xext_ref[0:2, 1:W + 1, :] = x_top_ref[0]

    @pl.when(hi == 0)                                 # true image top border: zeros
    def _():
        xext_ref[0:2, 1:W + 1, :] = jnp.zeros((2, W, C), sdt)

    @pl.when(hi < n_bands - 1)
    def _():
        xext_ref[2 + band:, 1:W + 1, :] = x_bot_ref[0]

    @pl.when(hi == n_bands - 1)                       # true image bottom border
    def _():
        xext_ref[2 + band:, 1:W + 1, :] = jnp.zeros((2, W, C), sdt)

    # ---- conv1 + ReLU: 9 accumulated shifted-view matmuls (no im2col) -----------
    # dh shift = row offset into the scratch window; dw shift = column slice of
    # the (W+2)-padded window.  bf16 operands, f32 accumulation.
    xe = xext_ref[...]                                # (band+4, W+2, C) f32
    acc1 = jnp.zeros(((band + 2) * W, C), jnp.float32)
    for dh in range(3):
        for dw in range(3):
            lhs = xe[dh:dh + band + 2, dw:dw + W, :].reshape((band + 2) * W, C)
            acc1 = acc1 + jnp.dot(lhs.astype(mdt), w1_ref[dh * 3 + dw],
                                  preferred_element_type=jnp.float32)
    t = jnp.maximum(acc1, 0.0).reshape(band + 2, W, C)

    # ---- stage relu(conv1) in the column-padded scratch for conv2 ---------------
    # TODO(synk): this write/read round trip could be removed with pltpu.roll +
    # edge masks on the dw shifts; kept for simplicity (single extra pass).
    text_ref[:, 1:W + 1, :] = t

    @pl.when(hi == 0)                  # rows outside the real image are zero pad
    def _():
        text_ref[0:1, 1:W + 1, :] = jnp.zeros((1, W, C), sdt)

    @pl.when(hi == n_bands - 1)
    def _():
        text_ref[band + 1:, 1:W + 1, :] = jnp.zeros((1, W, C), sdt)

    # ---- conv2 + residual add ----------------------------------------------------
    te = text_ref[...]                                # (band+2, W+2, C) f32
    acc2 = jnp.zeros((band * W, C), jnp.float32)
    for dh in range(3):
        for dw in range(3):
            lhs = te[dh:dh + band, dw:dw + W, :].reshape(band * W, C)
            acc2 = acc2 + jnp.dot(lhs.astype(mdt), w2_ref[dh * 3 + dw],
                                  preferred_element_type=jnp.float32)
    o_ref[0] = (x_body_ref[0] + acc2.reshape(band, W, C)).astype(o_ref.dtype)


def _vmem_estimate(band, W, C):
    """Rough per-step VMEM working set (bytes) for a given band size."""
    f32, bf16 = 4, 2
    vm = 0
    vm += 2 * band * W * C * f32                 # body input block, double-buffered
    vm += 2 * band * W * C * f32                 # output block, double-buffered
    vm += 2 * 2 * (2 * W * C) * f32              # two 2-row halo blocks, double-buffered
    vm += 2 * 2 * (9 * C * C) * bf16             # both weights (resident)
    vm += (band + 4) * (W + 2) * C * f32         # padded input window scratch
    vm += (band + 2) * (W + 2) * C * f32         # padded relu(conv1) scratch
    vm += (band + 2) * W * C * (f32 + f32)       # conv1 f32 accumulator + slice temp
    vm += band * W * C * (f32 + f32)             # conv2 f32 accumulator + slice temp
    return vm


def _pick_band(H, W, C, budget_bytes=24 * 1024 * 1024):
    """Largest even band dividing H whose working set fits the VMEM budget."""
    evens = [b for b in range(2, H + 1, 2) if H % b == 0]
    if not evens:
        # TODO(synk): odd H would need 1-row halo blocks; not needed for this test.
        raise NotImplementedError("ResBlock Pallas kernel requires even H")
    fits = [b for b in evens if _vmem_estimate(b, W, C) <= budget_bytes]
    if not fits:
        return min(evens)                  # smallest band; may spill but compiles
    multi = [b for b in fits if H // b >= 2]   # keep >= 2 bands so the band axis
    return max(multi) if multi else max(fits)  # can feed both v7x TensorCores


@jax.jit
def resblock_pallas(x_nchw, w1_oihw, w2_oihw):
    """EDSR ResBlock forward. x_nchw: (B, C, H, W) f32; weights: (C, C, 3, 3) f32."""
    B, C, H, W = x_nchw.shape
    band = _pick_band(H, W, C)
    n_bands = H // band
    hb = band // 2                  # halo blocks are 2 rows -> block units of 2
    n_halo_blocks = H // 2          # number of 2-row blocks along H (for the clamp)

    # NCHW -> NHWC (C on lanes, W on sublanes).  No spatial padding here.
    x = jnp.transpose(x_nchw, (0, 2, 3, 1)).astype(jnp.float32)

    # OIHW -> HWIO -> tap-major (9, C_in, C_out), cast to bf16 matmul operands.
    w1 = jnp.transpose(w1_oihw, (2, 3, 1, 0)).reshape(9, C, C).astype(jnp.bfloat16)
    w2 = jnp.transpose(w2_oihw, (2, 3, 1, 0)).reshape(9, C, C).astype(jnp.bfloat16)

    est = _vmem_estimate(band, W, C)
    vmem_limit = min(100 * 1024 * 1024, max(32 * 1024 * 1024, int(est * 3 // 2)))

    out_nhwc = pl.pallas_call(
        _resblock_kernel,
        out_shape=jax.ShapeDtypeStruct((B, H, W, C), jnp.float32),
        grid_spec=pltpu.PrefetchScalarGridSpec(
            num_scalar_prefetch=0,
            grid=(B, n_bands),
            in_specs=[
                # 2-row top halo (image rows r0-2 .. r0-1), clamped at the image top.
                pl.BlockSpec((1, 2, W, C),
                             lambda b, h: (b, jnp.maximum(h * hb - 1, 0), 0, 0)),
                # Body band (image rows r0 .. r0+band-1).
                pl.BlockSpec((1, band, W, C), lambda b, h: (b, h, 0, 0)),
                # 2-row bottom halo (rows r0+band .. r0+band+1), clamped at bottom.
                pl.BlockSpec((1, 2, W, C),
                             lambda b, h: (b, jnp.minimum((h + 1) * hb,
                                                          n_halo_blocks - 1), 0, 0)),
                # Weights stay resident across the whole grid.
                pl.BlockSpec((9, C, C), lambda b, h: (0, 0, 0)),
                pl.BlockSpec((9, C, C), lambda b, h: (0, 0, 0)),
            ],
            out_specs=pl.BlockSpec((1, band, W, C), lambda b, h: (b, h, 0, 0)),
            scratch_shapes=[
                pltpu.VMEM((band + 4, W + 2, C), jnp.float32),  # padded input window
                pltpu.VMEM((band + 2, W + 2, C), jnp.float32),  # padded relu(conv1)
            ],
        ),
        compiler_params=pltpu.CompilerParams(
            dimension_semantics=("parallel", "parallel"),
            vmem_limit_bytes=vmem_limit,
        ),
    )(x, x, x, w1, w2)

    # NHWC -> NCHW to match the PyTorch output convention.
    return jnp.transpose(out_nhwc, (0, 3, 1, 2))


def _reference(x_nchw, w1_oihw, w2_oihw):
    """Pure-JAX f32 reference matching PyTorch ResBlock.forward semantics."""
    dn = lax.conv_dimension_numbers(x_nchw.shape, w1_oihw.shape,
                                    ("NCHW", "OIHW", "NCHW"))
    r = lax.conv_general_dilated(x_nchw, w1_oihw, (1, 1), ((1, 1), (1, 1)),
                                 dimension_numbers=dn)
    r = jnp.maximum(r, 0.0)
    r = lax.conv_general_dilated(r, w2_oihw, (1, 1), ((1, 1), (1, 1)),
                                 dimension_numbers=dn)
    return x_nchw + r


if __name__ == "__main__":
    key = jax.random.PRNGKey(0)
    B, C, H, W = 2, 4, 16, 16

    kx, k1, k2 = jax.random.split(key, 3)
    x = jax.random.normal(kx, (B, C, H, W), dtype=jnp.float32)
    # Deterministic kaiming-like init for the two 3x3 conv weights (OIHW, no bias).
    fan_in = C * 3 * 3
    scale = (2.0 / fan_in) ** 0.5
    w1 = scale * jax.random.normal(k1, (C, C, 3, 3), dtype=jnp.float32)
    w2 = scale * jax.random.normal(k2, (C, C, 3, 3), dtype=jnp.float32)

    out = resblock_pallas(x, w1, w2)
    out = jax.block_until_ready(out)

    ref = _reference(x, w1, w2)
    assert out.shape == (B, C, H, W)
    # bf16 matmul operands (f32 accumulation) vs. the f32 reference: loosened
    # tolerance.  Real structural bugs (border/halo errors) produce O(1) errors,
    # far above this threshold.
    assert jnp.allclose(out, ref, atol=5e-2, rtol=5e-2), "mismatch vs reference"

    print("KERNEL_OK")
</pallas_src>

<mosaic_0001>
module attributes {stable_mosaic.version = 11 : i64} {
  func.func @_resblock_kernel(%arg0: i32, %arg1: i32, %arg2: memref<1x2x16x4xf32, #tpu.memory_space<vmem>>, %arg3: memref<1x8x16x4xf32, #tpu.memory_space<vmem>>, %arg4: memref<1x2x16x4xf32, #tpu.memory_space<vmem>>, %arg5: memref<9x4x4xbf16, #tpu.memory_space<vmem>>, %arg6: memref<9x4x4xbf16, #tpu.memory_space<vmem>>, %arg7: memref<1x8x16x4xf32, #tpu.memory_space<vmem>>, %arg8: memref<12x18x4xf32, #tpu.memory_space<vmem>>, %arg9: memref<10x18x4xf32, #tpu.memory_space<vmem>>) attributes {dimension_semantics = [#tpu.dimension_semantics<parallel>, #tpu.dimension_semantics<parallel>], iteration_bounds = array<i64: 2, 2>, scalar_prefetch = 0 : i64, scratch_operands = 2 : i64, tpu.core_type = #tpu.core_type<tc>, window_params = [{transform_indices = @transform_0, window_bounds = array<i64: 1, 2, 16, 4>}, {transform_indices = @transform_1, window_bounds = array<i64: 1, 8, 16, 4>}, {transform_indices = @transform_2, window_bounds = array<i64: 1, 2, 16, 4>}, {pipeline_mode = #tpu.pipeline_mode<synchronous>, transform_indices = @transform_3, window_bounds = array<i64: 9, 4, 4>}, {pipeline_mode = #tpu.pipeline_mode<synchronous>, transform_indices = @transform_4, window_bounds = array<i64: 9, 4, 4>}, {transform_indices = @transform_5, window_bounds = array<i64: 1, 8, 16, 4>}]} {
    %cst = arith.constant 0.000000e+00 : f32
    %0 = vector.broadcast %cst : f32 to vector<12x1x4xf32>
    %c0 = arith.constant 0 : index
    %c0_0 = arith.constant 0 : index
    %c0_1 = arith.constant 0 : index
    %1 = vector.load %arg8[%c0, %c0_0, %c0_1] : memref<12x18x4xf32, #tpu.memory_space<vmem>>, vector<12x1x4xf32>
    tpu.vector_store %arg8[%c0, %c0_0, %c0_1], %0 {strides = array<i32>} : memref<12x18x4xf32, #tpu.memory_space<vmem>>, vector<12x1x4xf32>,
    %cst_2 = arith.constant 0.000000e+00 : f32
    %2 = vector.broadcast %cst_2 : f32 to vector<12x1x4xf32>
    %c0_3 = arith.constant 0 : index
    %c17 = arith.constant 17 : index
    %c0_4 = arith.constant 0 : index
    %3 = vector.load %arg8[%c0_3, %c17, %c0_4] : memref<12x18x4xf32, #tpu.memory_space<vmem>>, vector<12x1x4xf32>
    tpu.vector_store %arg8[%c0_3, %c17, %c0_4], %2 {strides = array<i32>} : memref<12x18x4xf32, #tpu.memory_space<vmem>>, vector<12x1x4xf32>,
    %cst_5 = arith.constant 0.000000e+00 : f32
    %4 = vector.broadcast %cst_5 : f32 to vector<10x1x4xf32>
    %c0_6 = arith.constant 0 : index
    %c0_7 = arith.constant 0 : index
    %c0_8 = arith.constant 0 : index
    %5 = vector.load %arg9[%c0_6, %c0_7, %c0_8] : memref<10x18x4xf32, #tpu.memory_space<vmem>>, vector<10x1x4xf32>
    tpu.vector_store %arg9[%c0_6, %c0_7, %c0_8], %4 {strides = array<i32>} : memref<10x18x4xf32, #tpu.memory_space<vmem>>, vector<10x1x4xf32>,
    %cst_9 = arith.constant 0.000000e+00 : f32
    %6 = vector.broadcast %cst_9 : f32 to vector<10x1x4xf32>
    %c0_10 = arith.constant 0 : index
    %c17_11 = arith.constant 17 : index
    %c0_12 = arith.constant 0 : index
    %7 = vector.load %arg9[%c0_10, %c17_11, %c0_12] : memref<10x18x4xf32, #tpu.memory_space<vmem>>, vector<10x1x4xf32>
    tpu.vector_store %arg9[%c0_10, %c17_11, %c0_12], %6 {strides = array<i32>} : memref<10x18x4xf32, #tpu.memory_space<vmem>>, vector<10x1x4xf32>,
    %c0_13 = arith.constant 0 : index
    %c0_14 = arith.constant 0 : index
    %c0_15 = arith.constant 0 : index
    %c0_16 = arith.constant 0 : index
    %8 = vector.load %arg3[%c0_13, %c0_14, %c0_15, %c0_16] : memref<1x8x16x4xf32, #tpu.memory_space<vmem>>, vector<1x8x16x4xf32>
    %9 = vector.shape_cast %8 : vector<1x8x16x4xf32> to vector<8x16x4xf32>
    %c2 = arith.constant 2 : index
    %c1 = arith.constant 1 : index
    %c0_17 = arith.constant 0 : index
    %10 = vector.load %arg8[%c2, %c1, %c0_17] : memref<12x18x4xf32, #tpu.memory_space<vmem>>, vector<8x16x4xf32>
    tpu.vector_store %arg8[%c2, %c1, %c0_17], %9 {strides = array<i32>} : memref<12x18x4xf32, #tpu.memory_space<vmem>>, vector<8x16x4xf32>,
    %c0_i32 = arith.constant 0 : i32
    %11 = arith.cmpi sgt, %arg1, %c0_i32 : i32
    %12 = arith.extui %11 : i1 to i32
    %c0_i32_18 = arith.constant 0 : i32
    %13 = arith.cmpi ne, %12, %c0_i32_18 : i32
    scf.if %13 {
      %c0_114 = arith.constant 0 : index
      %c0_115 = arith.constant 0 : index
      %c0_116 = arith.constant 0 : index
      %c0_117 = arith.constant 0 : index
      %170 = vector.load %arg2[%c0_114, %c0_115, %c0_116, %c0_117] : memref<1x2x16x4xf32, #tpu.memory_space<vmem>>, vector<1x2x16x4xf32>
      %171 = vector.shape_cast %170 : vector<1x2x16x4xf32> to vector<2x16x4xf32>
      %c0_118 = arith.constant 0 : index
      %c1_119 = arith.constant 1 : index
      %c0_120 = arith.constant 0 : index
      %172 = vector.load %arg8[%c0_118, %c1_119, %c0_120] : memref<12x18x4xf32, #tpu.memory_space<vmem>>, vector<2x16x4xf32>
      tpu.vector_store %arg8[%c0_118, %c1_119, %c0_120], %171 {strides = array<i32>} : memref<12x18x4xf32, #tpu.memory_space<vmem>>, vector<2x16x4xf32>,
    } else {
    }
    %c0_i32_19 = arith.constant 0 : i32
    %14 = arith.cmpi eq, %arg1, %c0_i32_19 : i32
    %15 = arith.extui %14 : i1 to i32
    %c0_i32_20 = arith.constant 0 : i32
    %16 = arith.cmpi ne, %15, %c0_i32_20 : i32
    scf.if %16 {
      %cst_114 = arith.constant 0.000000e+00 : f32
      %170 = vector.broadcast %cst_114 : f32 to vector<2x16x4xf32>
      %c0_115 = arith.constant 0 : index
      %c1_116 = arith.constant 1 : index
      %c0_117 = arith.constant 0 : index
      %171 = vector.load %arg8[%c0_115, %c1_116, %c0_117] : memref<12x18x4xf32, #tpu.memory_space<vmem>>, vector<2x16x4xf32>
      tpu.vector_store %arg8[%c0_115, %c1_116, %c0_117], %170 {strides = array<i32>} : memref<12x18x4xf32, #tpu.memory_space<vmem>>, vector<2x16x4xf32>,
    } else {
    }
    %c1_i32 = arith.constant 1 : i32
    %17 = arith.cmpi slt, %arg1, %c1_i32 : i32
    %18 = arith.extui %17 : i1 to i32
    %c0_i32_21 = arith.constant 0 : i32
    %19 = arith.cmpi ne, %18, %c0_i32_21 : i32
    scf.if %19 {
      %c0_114 = arith.constant 0 : index
      %c0_115 = arith.constant 0 : index
      %c0_116 = arith.constant 0 : index
      %c0_117 = arith.constant 0 : index
      %170 = vector.load %arg4[%c0_114, %c0_115, %c0_116, %c0_117] : memref<1x2x16x4xf32, #tpu.memory_space<vmem>>, vector<1x2x16x4xf32>
      %171 = vector.shape_cast %170 : vector<1x2x16x4xf32> to vector<2x16x4xf32>
      %c10 = arith.constant 10 : index
      %c1_118 = arith.constant 1 : index
      %c0_119 = arith.constant 0 : index
      %172 = vector.load %arg8[%c10, %c1_118, %c0_119] : memref<12x18x4xf32, #tpu.memory_space<vmem>>, vector<2x16x4xf32>
      tpu.vector_store %arg8[%c10, %c1_118, %c0_119], %171 {strides = array<i32>} : memref<12x18x4xf32, #tpu.memory_space<vmem>>, vector<2x16x4xf32>,
    } else {
    }
    %c1_i32_22 = arith.constant 1 : i32
    %20 = arith.cmpi eq, %arg1, %c1_i32_22 : i32
    %21 = arith.extui %20 : i1 to i32
    %c0_i32_23 = arith.constant 0 : i32
    %22 = arith.cmpi ne, %21, %c0_i32_23 : i32
    scf.if %22 {
      %cst_114 = arith.constant 0.000000e+00 : f32
      %170 = vector.broadcast %cst_114 : f32 to vector<2x16x4xf32>
      %c10 = arith.constant 10 : index
      %c1_115 = arith.constant 1 : index
      %c0_116 = arith.constant 0 : index
      %171 = vector.load %arg8[%c10, %c1_115, %c0_116] : memref<12x18x4xf32, #tpu.memory_space<vmem>>, vector<2x16x4xf32>
      tpu.vector_store %arg8[%c10, %c1_115, %c0_116], %170 {strides = array<i32>} : memref<12x18x4xf32, #tpu.memory_space<vmem>>, vector<2x16x4xf32>,
    } else {
    }
    %c0_24 = arith.constant 0 : index
    %c0_25 = arith.constant 0 : index
    %c0_26 = arith.constant 0 : index
    %23 = vector.load %arg8[%c0_24, %c0_25, %c0_26] : memref<12x18x4xf32, #tpu.memory_space<vmem>>, vector<12x18x4xf32>
    %cst_27 = arith.constant 0.000000e+00 : f32
    %24 = vector.broadcast %cst_27 : f32 to vector<160x4xf32>
    %25 = vector.extract_strided_slice %23 {offsets = [0, 0, 0], sizes = [10, 16, 4], strides = [1, 1, 1]} : vector<12x18x4xf32> to vector<10x16x4xf32>
    %26 = vector.shape_cast %25 : vector<10x16x4xf32> to vector<160x4xf32>
    %27 = arith.truncf %26 : vector<160x4xf32> to vector<160x4xbf16>
    %c0_28 = arith.constant 0 : index
    %c0_29 = arith.constant 0 : index
    %c0_30 = arith.constant 0 : index
    %28 = vector.load %arg5[%c0_28, %c0_29, %c0_30] : memref<9x4x4xbf16, #tpu.memory_space<vmem>>, vector<1x4x4xbf16>
    %29 = vector.shape_cast %28 : vector<1x4x4xbf16> to vector<4x4xbf16>
    %cst_31 = arith.constant dense<0.000000e+00> : vector<160x4xf32>
    %30 = tpu.matmul %27, %29, %cst_31 {dimension_numbers = #tpu.dot_dimension_numbers<[1], [0], [0], [1], [0, 0, 1, 1], [], []>} : vector<160x4xbf16>, vector<4x4xbf16>, vector<160x4xf32> -> vector<160x4xf32>
    %31 = arith.addf %24, %30 : vector<160x4xf32>
    %32 = vector.extract_strided_slice %23 {offsets = [0, 1, 0], sizes = [10, 16, 4], strides = [1, 1, 1]} : vector<12x18x4xf32> to vector<10x16x4xf32>
    %33 = vector.shape_cast %32 : vector<10x16x4xf32> to vector<160x4xf32>
    %34 = arith.truncf %33 : vector<160x4xf32> to vector<160x4xbf16>
    %c1_32 = arith.constant 1 : index
    %c0_33 = arith.constant 0 : index
    %c0_34 = arith.constant 0 : index
    %35 = vector.load %arg5[%c1_32, %c0_33, %c0_34] : memref<9x4x4xbf16, #tpu.memory_space<vmem>>, vector<1x4x4xbf16>
    %36 = vector.shape_cast %35 : vector<1x4x4xbf16> to vector<4x4xbf16>
    %cst_35 = arith.constant dense<0.000000e+00> : vector<160x4xf32>
    %37 = tpu.matmul %34, %36, %cst_35 {dimension_numbers = #tpu.dot_dimension_numbers<[1], [0], [0], [1], [0, 0, 1, 1], [], []>} : vector<160x4xbf16>, vector<4x4xbf16>, vector<160x4xf32> -> vector<160x4xf32>
    %38 = arith.addf %31, %37 : vector<160x4xf32>
    %39 = vector.extract_strided_slice %23 {offsets = [0, 2, 0], sizes = [10, 16, 4], strides = [1, 1, 1]} : vector<12x18x4xf32> to vector<10x16x4xf32>
    %40 = vector.shape_cast %39 : vector<10x16x4xf32> to vector<160x4xf32>
    %41 = arith.truncf %40 : vector<160x4xf32> to vector<160x4xbf16>
    %c2_36 = arith.constant 2 : index
    %c0_37 = arith.constant 0 : index
    %c0_38 = arith.constant 0 : index
    %42 = vector.load %arg5[%c2_36, %c0_37, %c0_38] : memref<9x4x4xbf16, #tpu.memory_space<vmem>>, vector<1x4x4xbf16>
    %43 = vector.shape_cast %42 : vector<1x4x4xbf16> to vector<4x4xbf16>
    %cst_39 = arith.constant dense<0.000000e+00> : vector<160x4xf32>
    %44 = tpu.matmul %41, %43, %cst_39 {dimension_numbers = #tpu.dot_dimension_numbers<[1], [0], [0], [1], [0, 0, 1, 1], [], []>} : vector<160x4xbf16>, vector<4x4xbf16>, vector<160x4xf32> -> vector<160x4xf32>
    %45 = arith.addf %38, %44 : vector<160x4xf32>
    %46 = vector.extract_strided_slice %23 {offsets = [1, 0, 0], sizes = [10, 16, 4], strides = [1, 1, 1]} : vector<12x18x4xf32> to vector<10x16x4xf32>
    %47 = vector.shape_cast %46 : vector<10x16x4xf32> to vector<160x4xf32>
    %48 = arith.truncf %47 : vector<160x4xf32> to vector<160x4xbf16>
    %c3 = arith.constant 3 : index
    %c0_40 = arith.constant 0 : index
    %c0_41 = arith.constant 0 : index
    %49 = vector.load %arg5[%c3, %c0_40, %c0_41] : memref<9x4x4xbf16, #tpu.memory_space<vmem>>, vector<1x4x4xbf16>
    %50 = vector.shape_cast %49 : vector<1x4x4xbf16> to vector<4x4xbf16>
    %cst_42 = arith.constant dense<0.000000e+00> : vector<160x4xf32>
    %51 = tpu.matmul %48, %50, %cst_42 {dimension_numbers = #tpu.dot_dimension_numbers<[1], [0], [0], [1], [0, 0, 1, 1], [], []>} : vector<160x4xbf16>, vector<4x4xbf16>, vector<160x4xf32> -> vector<160x4xf32>
    %52 = arith.addf %45, %51 : vector<160x4xf32>
    %53 = vector.extract_strided_slice %23 {offsets = [1, 1, 0], sizes = [10, 16, 4], strides = [1, 1, 1]} : vector<12x18x4xf32> to vector<10x16x4xf32>
    %54 = vector.shape_cast %53 : vector<10x16x4xf32> to vector<160x4xf32>
    %55 = arith.truncf %54 : vector<160x4xf32> to vector<160x4xbf16>
    %c4 = arith.constant 4 : index
    %c0_43 = arith.constant 0 : index
    %c0_44 = arith.constant 0 : index
    %56 = vector.load %arg5[%c4, %c0_43, %c0_44] : memref<9x4x4xbf16, #tpu.memory_space<vmem>>, vector<1x4x4xbf16>
    %57 = vector.shape_cast %56 : vector<1x4x4xbf16> to vector<4x4xbf16>
    %cst_45 = arith.constant dense<0.000000e+00> : vector<160x4xf32>
    %58 = tpu.matmul %55, %57, %cst_45 {dimension_numbers = #tpu.dot_dimension_numbers<[1], [0], [0], [1], [0, 0, 1, 1], [], []>} : vector<160x4xbf16>, vector<4x4xbf16>, vector<160x4xf32> -> vector<160x4xf32>
    %59 = arith.addf %52, %58 : vector<160x4xf32>
    %60 = vector.extract_strided_slice %23 {offsets = [1, 2, 0], sizes = [10, 16, 4], strides = [1, 1, 1]} : vector<12x18x4xf32> to vector<10x16x4xf32>
    %61 = vector.shape_cast %60 : vector<10x16x4xf32> to vector<160x4xf32>
    %62 = arith.truncf %61 : vector<160x4xf32> to vector<160x4xbf16>
    %c5 = arith.constant 5 : index
    %c0_46 = arith.constant 0 : index
    %c0_47 = arith.constant 0 : index
    %63 = vector.load %arg5[%c5, %c0_46, %c0_47] : memref<9x4x4xbf16, #tpu.memory_space<vmem>>, vector<1x4x4xbf16>
    %64 = vector.shape_cast %63 : vector<1x4x4xbf16> to vector<4x4xbf16>
    %cst_48 = arith.constant dense<0.000000e+00> : vector<160x4xf32>
    %65 = tpu.matmul %62, %64, %cst_48 {dimension_numbers = #tpu.dot_dimension_numbers<[1], [0], [0], [1], [0, 0, 1, 1], [], []>} : vector<160x4xbf16>, vector<4x4xbf16>, vector<160x4xf32> -> vector<160x4xf32>
    %66 = arith.addf %59, %65 : vector<160x4xf32>
    %67 = vector.extract_strided_slice %23 {offsets = [2, 0, 0], sizes = [10, 16, 4], strides = [1, 1, 1]} : vector<12x18x4xf32> to vector<10x16x4xf32>
    %68 = vector.shape_cast %67 : vector<10x16x4xf32> to vector<160x4xf32>
    %69 = arith.truncf %68 : vector<160x4xf32> to vector<160x4xbf16>
    %c6 = arith.constant 6 : index
    %c0_49 = arith.constant 0 : index
    %c0_50 = arith.constant 0 : index
    %70 = vector.load %arg5[%c6, %c0_49, %c0_50] : memref<9x4x4xbf16, #tpu.memory_space<vmem>>, vector<1x4x4xbf16>
    %71 = vector.shape_cast %70 : vector<1x4x4xbf16> to vector<4x4xbf16>
    %cst_51 = arith.constant dense<0.000000e+00> : vector<160x4xf32>
    %72 = tpu.matmul %69, %71, %cst_51 {dimension_numbers = #tpu.dot_dimension_numbers<[1], [0], [0], [1], [0, 0, 1, 1], [], []>} : vector<160x4xbf16>, vector<4x4xbf16>, vector<160x4xf32> -> vector<160x4xf32>
    %73 = arith.addf %66, %72 : vector<160x4xf32>
    %74 = vector.extract_strided_slice %23 {offsets = [2, 1, 0], sizes = [10, 16, 4], strides = [1, 1, 1]} : vector<12x18x4xf32> to vector<10x16x4xf32>
    %75 = vector.shape_cast %74 : vector<10x16x4xf32> to vector<160x4xf32>
    %76 = arith.truncf %75 : vector<160x4xf32> to vector<160x4xbf16>
    %c7 = arith.constant 7 : index
    %c0_52 = arith.constant 0 : index
    %c0_53 = arith.constant 0 : index
    %77 = vector.load %arg5[%c7, %c0_52, %c0_53] : memref<9x4x4xbf16, #tpu.memory_space<vmem>>, vector<1x4x4xbf16>
    %78 = vector.shape_cast %77 : vector<1x4x4xbf16> to vector<4x4xbf16>
    %cst_54 = arith.constant dense<0.000000e+00> : vector<160x4xf32>
    %79 = tpu.matmul %76, %78, %cst_54 {dimension_numbers = #tpu.dot_dimension_numbers<[1], [0], [0], [1], [0, 0, 1, 1], [], []>} : vector<160x4xbf16>, vector<4x4xbf16>, vector<160x4xf32> -> vector<160x4xf32>
    %80 = arith.addf %73, %79 : vector<160x4xf32>
    %81 = vector.extract_strided_slice %23 {offsets = [2, 2, 0], sizes = [10, 16, 4], strides = [1, 1, 1]} : vector<12x18x4xf32> to vector<10x16x4xf32>
    %82 = vector.shape_cast %81 : vector<10x16x4xf32> to vector<160x4xf32>
    %83 = arith.truncf %82 : vector<160x4xf32> to vector<160x4xbf16>
    %c8 = arith.constant 8 : index
    %c0_55 = arith.constant 0 : index
    %c0_56 = arith.constant 0 : index
    %84 = vector.load %arg5[%c8, %c0_55, %c0_56] : memref<9x4x4xbf16, #tpu.memory_space<vmem>>, vector<1x4x4xbf16>
    %85 = vector.shape_cast %84 : vector<1x4x4xbf16> to vector<4x4xbf16>
    %cst_57 = arith.constant dense<0.000000e+00> : vector<160x4xf32>
    %86 = tpu.matmul %83, %85, %cst_57 {dimension_numbers = #tpu.dot_dimension_numbers<[1], [0], [0], [1], [0, 0, 1, 1], [], []>} : vector<160x4xbf16>, vector<4x4xbf16>, vector<160x4xf32> -> vector<160x4xf32>
    %87 = arith.addf %80, %86 : vector<160x4xf32>
    %cst_58 = arith.constant 0.000000e+00 : f32
    %88 = vector.broadcast %cst_58 : f32 to vector<160x4xf32>
    %89 = arith.maximumf %87, %88 : vector<160x4xf32>
    %90 = vector.shape_cast %89 : vector<160x4xf32> to vector<10x16x4xf32>
    %c0_59 = arith.constant 0 : index
    %c1_60 = arith.constant 1 : index
    %c0_61 = arith.constant 0 : index
    %91 = vector.load %arg9[%c0_59, %c1_60, %c0_61] : memref<10x18x4xf32, #tpu.memory_space<vmem>>, vector<10x16x4xf32>
    tpu.vector_store %arg9[%c0_59, %c1_60, %c0_61], %90 {strides = array<i32>} : memref<10x18x4xf32, #tpu.memory_space<vmem>>, vector<10x16x4xf32>,
    %c0_i32_62 = arith.constant 0 : i32
    %92 = arith.cmpi eq, %arg1, %c0_i32_62 : i32
    %93 = arith.extui %92 : i1 to i32
    %c0_i32_63 = arith.constant 0 : i32
    %94 = arith.cmpi ne, %93, %c0_i32_63 : i32
    scf.if %94 {
      %cst_114 = arith.constant 0.000000e+00 : f32
      %170 = vector.broadcast %cst_114 : f32 to vector<1x16x4xf32>
      %c0_115 = arith.constant 0 : index
      %c1_116 = arith.constant 1 : index
      %c0_117 = arith.constant 0 : index
      %171 = vector.load %arg9[%c0_115, %c1_116, %c0_117] : memref<10x18x4xf32, #tpu.memory_space<vmem>>, vector<1x16x4xf32>
      tpu.vector_store %arg9[%c0_115, %c1_116, %c0_117], %170 {strides = array<i32>} : memref<10x18x4xf32, #tpu.memory_space<vmem>>, vector<1x16x4xf32>,
    } else {
    }
    %c1_i32_64 = arith.constant 1 : i32
    %95 = arith.cmpi eq, %arg1, %c1_i32_64 : i32
    %96 = arith.extui %95 : i1 to i32
    %c0_i32_65 = arith.constant 0 : i32
    %97 = arith.cmpi ne, %96, %c0_i32_65 : i32
    scf.if %97 {
      %cst_114 = arith.constant 0.000000e+00 : f32
      %170 = vector.broadcast %cst_114 : f32 to vector<1x16x4xf32>
      %c9 = arith.constant 9 : index
      %c1_115 = arith.constant 1 : index
      %c0_116 = arith.constant 0 : index
      %171 = vector.load %arg9[%c9, %c1_115, %c0_116] : memref<10x18x4xf32, #tpu.memory_space<vmem>>, vector<1x16x4xf32>
      tpu.vector_store %arg9[%c9, %c1_115, %c0_116], %170 {strides = array<i32>} : memref<10x18x4xf32, #tpu.memory_space<vmem>>, vector<1x16x4xf32>,
    } else {
    }
    %c0_66 = arith.constant 0 : index
    %c0_67 = arith.constant 0 : index
    %c0_68 = arith.constant 0 : index
    %98 = vector.load %arg9[%c0_66, %c0_67, %c0_68] : memref<10x18x4xf32, #tpu.memory_space<vmem>>, vector<10x18x4xf32>
    %cst_69 = arith.constant 0.000000e+00 : f32
    %99 = vector.broadcast %cst_69 : f32 to vector<128x4xf32>
    %100 = vector.extract_strided_slice %98 {offsets = [0, 0, 0], sizes = [8, 16, 4], strides = [1, 1, 1]} : vector<10x18x4xf32> to vector<8x16x4xf32>
    %101 = vector.shape_cast %100 : vector<8x16x4xf32> to vector<128x4xf32>
    %102 = arith.truncf %101 : vector<128x4xf32> to vector<128x4xbf16>
    %c0_70 = arith.constant 0 : index
    %c0_71 = arith.constant 0 : index
    %c0_72 = arith.constant 0 : index
    %103 = vector.load %arg6[%c0_70, %c0_71, %c0_72] : memref<9x4x4xbf16, #tpu.memory_space<vmem>>, vector<1x4x4xbf16>
    %104 = vector.shape_cast %103 : vector<1x4x4xbf16> to vector<4x4xbf16>
    %cst_73 = arith.constant dense<0.000000e+00> : vector<128x4xf32>
    %105 = tpu.matmul %102, %104, %cst_73 {dimension_numbers = #tpu.dot_dimension_numbers<[1], [0], [0], [1], [0, 0, 1, 1], [], []>} : vector<128x4xbf16>, vector<4x4xbf16>, vector<128x4xf32> -> vector<128x4xf32>
    %106 = arith.addf %99, %105 : vector<128x4xf32>
    %107 = vector.extract_strided_slice %98 {offsets = [0, 1, 0], sizes = [8, 16, 4], strides = [1, 1, 1]} : vector<10x18x4xf32> to vector<8x16x4xf32>
    %108 = vector.shape_cast %107 : vector<8x16x4xf32> to vector<128x4xf32>
    %109 = arith.truncf %108 : vector<128x4xf32> to vector<128x4xbf16>
    %c1_74 = arith.constant 1 : index
    %c0_75 = arith.constant 0 : index
    %c0_76 = arith.constant 0 : index
    %110 = vector.load %arg6[%c1_74, %c0_75, %c0_76] : memref<9x4x4xbf16, #tpu.memory_space<vmem>>, vector<1x4x4xbf16>
    %111 = vector.shape_cast %110 : vector<1x4x4xbf16> to vector<4x4xbf16>
    %cst_77 = arith.constant dense<0.000000e+00> : vector<128x4xf32>
    %112 = tpu.matmul %109, %111, %cst_77 {dimension_numbers = #tpu.dot_dimension_numbers<[1], [0], [0], [1], [0, 0, 1, 1], [], []>} : vector<128x4xbf16>, vector<4x4xbf16>, vector<128x4xf32> -> vector<128x4xf32>
    %113 = arith.addf %106, %112 : vector<128x4xf32>
    %114 = vector.extract_strided_slice %98 {offsets = [0, 2, 0], sizes = [8, 16, 4], strides = [1, 1, 1]} : vector<10x18x4xf32> to vector<8x16x4xf32>
    %115 = vector.shape_cast %114 : vector<8x16x4xf32> to vector<128x4xf32>
    %116 = arith.truncf %115 : vector<128x4xf32> to vector<128x4xbf16>
    %c2_78 = arith.constant 2 : index
    %c0_79 = arith.constant 0 : index
    %c0_80 = arith.constant 0 : index
    %117 = vector.load %arg6[%c2_78, %c0_79, %c0_80] : memref<9x4x4xbf16, #tpu.memory_space<vmem>>, vector<1x4x4xbf16>
    %118 = vector.shape_cast %117 : vector<1x4x4xbf16> to vector<4x4xbf16>
    %cst_81 = arith.constant dense<0.000000e+00> : vector<128x4xf32>
    %119 = tpu.matmul %116, %118, %cst_81 {dimension_numbers = #tpu.dot_dimension_numbers<[1], [0], [0], [1], [0, 0, 1, 1], [], []>} : vector<128x4xbf16>, vector<4x4xbf16>, vector<128x4xf32> -> vector<128x4xf32>
    %120 = arith.addf %113, %119 : vector<128x4xf32>
    %121 = vector.extract_strided_slice %98 {offsets = [1, 0, 0], sizes = [8, 16, 4], strides = [1, 1, 1]} : vector<10x18x4xf32> to vector<8x16x4xf32>
    %122 = vector.shape_cast %121 : vector<8x16x4xf32> to vector<128x4xf32>
    %123 = arith.truncf %122 : vector<128x4xf32> to vector<128x4xbf16>
    %c3_82 = arith.constant 3 : index
    %c0_83 = arith.constant 0 : index
    %c0_84 = arith.constant 0 : index
    %124 = vector.load %arg6[%c3_82, %c0_83, %c0_84] : memref<9x4x4xbf16, #tpu.memory_space<vmem>>, vector<1x4x4xbf16>
    %125 = vector.shape_cast %124 : vector<1x4x4xbf16> to vector<4x4xbf16>
    %cst_85 = arith.constant dense<0.000000e+00> : vector<128x4xf32>
    %126 = tpu.matmul %123, %125, %cst_85 {dimension_numbers = #tpu.dot_dimension_numbers<[1], [0], [0], [1], [0, 0, 1, 1], [], []>} : vector<128x4xbf16>, vector<4x4xbf16>, vector<128x4xf32> -> vector<128x4xf32>
    %127 = arith.addf %120, %126 : vector<128x4xf32>
    %128 = vector.extract_strided_slice %98 {offsets = [1, 1, 0], sizes = [8, 16, 4], strides = [1, 1, 1]} : vector<10x18x4xf32> to vector<8x16x4xf32>
    %129 = vector.shape_cast %128 : vector<8x16x4xf32> to vector<128x4xf32>
    %130 = arith.truncf %129 : vector<128x4xf32> to vector<128x4xbf16>
    %c4_86 = arith.constant 4 : index
    %c0_87 = arith.constant 0 : index
    %c0_88 = arith.constant 0 : index
    %131 = vector.load %arg6[%c4_86, %c0_87, %c0_88] : memref<9x4x4xbf16, #tpu.memory_space<vmem>>, vector<1x4x4xbf16>
    %132 = vector.shape_cast %131 : vector<1x4x4xbf16> to vector<4x4xbf16>
    %cst_89 = arith.constant dense<0.000000e+00> : vector<128x4xf32>
    %133 = tpu.matmul %130, %132, %cst_89 {dimension_numbers = #tpu.dot_dimension_numbers<[1], [0], [0], [1], [0, 0, 1, 1], [], []>} : vector<128x4xbf16>, vector<4x4xbf16>, vector<128x4xf32> -> vector<128x4xf32>
    %134 = arith.addf %127, %133 : vector<128x4xf32>
    %135 = vector.extract_strided_slice %98 {offsets = [1, 2, 0], sizes = [8, 16, 4], strides = [1, 1, 1]} : vector<10x18x4xf32> to vector<8x16x4xf32>
    %136 = vector.shape_cast %135 : vector<8x16x4xf32> to vector<128x4xf32>
    %137 = arith.truncf %136 : vector<128x4xf32> to vector<128x4xbf16>
    %c5_90 = arith.constant 5 : index
    %c0_91 = arith.constant 0 : index
    %c0_92 = arith.constant 0 : index
    %138 = vector.load %arg6[%c5_90, %c0_91, %c0_92] : memref<9x4x4xbf16, #tpu.memory_space<vmem>>, vector<1x4x4xbf16>
    %139 = vector.shape_cast %138 : vector<1x4x4xbf16> to vector<4x4xbf16>
    %cst_93 = arith.constant dense<0.000000e+00> : vector<128x4xf32>
    %140 = tpu.matmul %137, %139, %cst_93 {dimension_numbers = #tpu.dot_dimension_numbers<[1], [0], [0], [1], [0, 0, 1, 1], [], []>} : vector<128x4xbf16>, vector<4x4xbf16>, vector<128x4xf32> -> vector<128x4xf32>
    %141 = arith.addf %134, %140 : vector<128x4xf32>
    %142 = vector.extract_strided_slice %98 {offsets = [2, 0, 0], sizes = [8, 16, 4], strides = [1, 1, 1]} : vector<10x18x4xf32> to vector<8x16x4xf32>
    %143 = vector.shape_cast %142 : vector<8x16x4xf32> to vector<128x4xf32>
    %144 = arith.truncf %143 : vector<128x4xf32> to vector<128x4xbf16>
    %c6_94 = arith.constant 6 : index
    %c0_95 = arith.constant 0 : index
    %c0_96 = arith.constant 0 : index
    %145 = vector.load %arg6[%c6_94, %c0_95, %c0_96] : memref<9x4x4xbf16, #tpu.memory_space<vmem>>, vector<1x4x4xbf16>
    %146 = vector.shape_cast %145 : vector<1x4x4xbf16> to vector<4x4xbf16>
    %cst_97 = arith.constant dense<0.000000e+00> : vector<128x4xf32>
    %147 = tpu.matmul %144, %146, %cst_97 {dimension_numbers = #tpu.dot_dimension_numbers<[1], [0], [0], [1], [0, 0, 1, 1], [], []>} : vector<128x4xbf16>, vector<4x4xbf16>, vector<128x4xf32> -> vector<128x4xf32>
    %148 = arith.addf %141, %147 : vector<128x4xf32>
    %149 = vector.extract_strided_slice %98 {offsets = [2, 1, 0], sizes = [8, 16, 4], strides = [1, 1, 1]} : vector<10x18x4xf32> to vector<8x16x4xf32>
    %150 = vector.shape_cast %149 : vector<8x16x4xf32> to vector<128x4xf32>
    %151 = arith.truncf %150 : vector<128x4xf32> to vector<128x4xbf16>
    %c7_98 = arith.constant 7 : index
    %c0_99 = arith.constant 0 : index
    %c0_100 = arith.constant 0 : index
    %152 = vector.load %arg6[%c7_98, %c0_99, %c0_100] : memref<9x4x4xbf16, #tpu.memory_space<vmem>>, vector<1x4x4xbf16>
    %153 = vector.shape_cast %152 : vector<1x4x4xbf16> to vector<4x4xbf16>
    %cst_101 = arith.constant dense<0.000000e+00> : vector<128x4xf32>
    %154 = tpu.matmul %151, %153, %cst_101 {dimension_numbers = #tpu.dot_dimension_numbers<[1], [0], [0], [1], [0, 0, 1, 1], [], []>} : vector<128x4xbf16>, vector<4x4xbf16>, vector<128x4xf32> -> vector<128x4xf32>
    %155 = arith.addf %148, %154 : vector<128x4xf32>
    %156 = vector.extract_strided_slice %98 {offsets = [2, 2, 0], sizes = [8, 16, 4], strides = [1, 1, 1]} : vector<10x18x4xf32> to vector<8x16x4xf32>
    %157 = vector.shape_cast %156 : vector<8x16x4xf32> to vector<128x4xf32>
    %158 = arith.truncf %157 : vector<128x4xf32> to vector<128x4xbf16>
    %c8_102 = arith.constant 8 : index
    %c0_103 = arith.constant 0 : index
    %c0_104 = arith.constant 0 : index
    %159 = vector.load %arg6[%c8_102, %c0_103, %c0_104] : memref<9x4x4xbf16, #tpu.memory_space<vmem>>, vector<1x4x4xbf16>
    %160 = vector.shape_cast %159 : vector<1x4x4xbf16> to vector<4x4xbf16>
    %cst_105 = arith.constant dense<0.000000e+00> : vector<128x4xf32>
    %161 = tpu.matmul %158, %160, %cst_105 {dimension_numbers = #tpu.dot_dimension_numbers<[1], [0], [0], [1], [0, 0, 1, 1], [], []>} : vector<128x4xbf16>, vector<4x4xbf16>, vector<128x4xf32> -> vector<128x4xf32>
    %162 = arith.addf %155, %161 : vector<128x4xf32>
    %c0_106 = arith.constant 0 : index
    %c0_107 = arith.constant 0 : index
    %c0_108 = arith.constant 0 : index
    %c0_109 = arith.constant 0 : index
    %163 = vector.load %arg3[%c0_106, %c0_107, %c0_108, %c0_109] : memref<1x8x16x4xf32, #tpu.memory_space<vmem>>, vector<1x8x16x4xf32>
    %164 = vector.shape_cast %163 : vector<1x8x16x4xf32> to vector<8x16x4xf32>
    %165 = vector.shape_cast %162 : vector<128x4xf32> to vector<8x16x4xf32>
    %166 = arith.addf %164, %165 : vector<8x16x4xf32>
    %c0_110 = arith.constant 0 : index
    %c0_111 = arith.constant 0 : index
    %c0_112 = arith.constant 0 : index
    %c0_113 = arith.constant 0 : index
    %167 = vector.load %arg7[%c0_110, %c0_111, %c0_112, %c0_113] : memref<1x8x16x4xf32, #tpu.memory_space<vmem>>, vector<1x8x16x4xf32>
    %168 = vector.shape_cast %167 : vector<1x8x16x4xf32> to vector<8x16x4xf32>
    %169 = vector.shape_cast %166 : vector<8x16x4xf32> to vector<1x8x16x4xf32>
    tpu.vector_store %arg7[%c0_110, %c0_111, %c0_112, %c0_113], %169 {strides = array<i32>} : memref<1x8x16x4xf32, #tpu.memory_space<vmem>>, vector<1x8x16x4xf32>,
    return
  }
  func.func @transform_0(%arg0: i32, %arg1: i32) -> (i32, i32, i32, i32) {
    %c4_i32 = arith.constant 4 : i32
    %0 = arith.muli %arg1, %c4_i32 : i32
    %c1_i32 = arith.constant 1 : i32
    %1 = arith.subi %0, %c1_i32 : i32
    %c0_i32 = arith.constant 0 : i32
    %2 = arith.maxsi %1, %c0_i32 : i32
    %c0_i32_0 = arith.constant 0 : i32
    %c0_i32_1 = arith.constant 0 : i32
    %c0_i32_2 = arith.constant 0 : i32
    return %arg0, %2, %c0_i32_0, %c0_i32_1 : i32, i32, i32, i32
  }
  func.func @transform_1(%arg0: i32, %arg1: i32) -> (i32, i32, i32, i32) {
    %c0_i32 = arith.constant 0 : i32
    %c0_i32_0 = arith.constant 0 : i32
    %c0_i32_1 = arith.constant 0 : i32
    return %arg0, %arg1, %c0_i32, %c0_i32_0 : i32, i32, i32, i32
  }
  func.func @transform_2(%arg0: i32, %arg1: i32) -> (i32, i32, i32, i32) {
    %c1_i32 = arith.constant 1 : i32
    %0 = arith.addi %arg1, %c1_i32 : i32
    %c4_i32 = arith.constant 4 : i32
    %1 = arith.muli %0, %c4_i32 : i32
    %c7_i32 = arith.constant 7 : i32
    %2 = arith.minsi %1, %c7_i32 : i32
    %c0_i32 = arith.constant 0 : i32
    %c0_i32_0 = arith.constant 0 : i32
    %c0_i32_1 = arith.constant 0 : i32
    return %arg0, %2, %c0_i32, %c0_i32_0 : i32, i32, i32, i32
  }
  func.func @transform_3(%arg0: i32, %arg1: i32) -> (i32, i32, i32) {
    %c0_i32 = arith.constant 0 : i32
    %c0_i32_0 = arith.constant 0 : i32
    %c0_i32_1 = arith.constant 0 : i32
    %c0_i32_2 = arith.constant 0 : i32
    return %c0_i32, %c0_i32_0, %c0_i32_1 : i32, i32, i32
  }
  func.func @transform_4(%arg0: i32, %arg1: i32) -> (i32, i32, i32) {
    %c0_i32 = arith.constant 0 : i32
    %c0_i32_0 = arith.constant 0 : i32
    %c0_i32_1 = arith.constant 0 : i32
    %c0_i32_2 = arith.constant 0 : i32
    return %c0_i32, %c0_i32_0, %c0_i32_1 : i32, i32, i32
  }
  func.func @transform_5(%arg0: i32, %arg1: i32) -> (i32, i32, i32, i32) {
    %c0_i32 = arith.constant 0 : i32
    %c0_i32_0 = arith.constant 0 : i32
    %c0_i32_1 = arith.constant 0 : i32
    return %arg0, %arg1, %c0_i32, %c0_i32_0 : i32, i32, i32, i32
  }
}

</mosaic_0001>

<llo_original>
// kernel: resblock_pallas.1
$region0: #{resblock_pallas.1}
  #allocation0 [shape = 'u32[]', space=smem, size = 0x4, offset = 0x4, fixed_abs, tag = 'smem constant byte address 0x4 - core index']
  #allocation1 [shape = 'u32[144,128]{1,0:T(1,128)}', space=vmem, size = 0x12000, scoped, tag = 'internal scratch']
  #allocation2 [shape = 'f32[12,18,4]{2,1,0:T(8,128)}', space=vmem, size = 0x24000, scoped, tag = 'scratch operand']
  #allocation3 [shape = 'f32[10,18,4]{2,1,0:T(8,128)}', space=vmem, size = 0x1e000, scoped, tag = 'scratch operand']
  %s0 = inlined_call_operand.vmem [shape: f32[2,16,16,4], index: 0, kind: input, shape index: {}, may-alias: {0,1,2}]
  %s1 = inlined_call_operand.vmem [shape: f32[2,16,16,4], index: 1, kind: input, shape index: {}, may-alias: {0,1,2}]
  %s2 = inlined_call_operand.vmem [shape: f32[2,16,16,4], index: 2, kind: input, shape index: {}, may-alias: {0,1,2}]
  %s3 = inlined_call_operand.vmem [shape: bf16[9,4,4], index: 3, kind: input, shape index: {}]
  %s4 = inlined_call_operand.vmem [shape: bf16[9,4,4], index: 4, kind: input, shape index: {}]
  %s5 = inlined_call_operand.vmem [shape: f32[2,16,16,4], index: 5, kind: output, shape index: {}]
  %s6 = sld [smem:[#allocation0]]
  $region77: #{resblock_pallas.1} parent=0
    _
  %s8 = ssub.s32 1, %s6
  %s9 = scalar_select 0, %s8, %s6
  loop: start=0, step=1, limit=6
  $region2: #{resblock_pallas.1} parent=0 // loop_pre_header
    _
  $region3: #{resblock_pallas.1} parent=0 // loop_header
    %s11 = sphi 0, %s15
    %p12 = scmp.ge.s32.totalorder %s11, 6
    %s18 = sphi 0, %s30
    %s19 = sphi 0, %s26
    %s20 = sphi 0, %s18
    %s21 = sphi 0, %s19
    %s22 = sphi 0, %s20
    %s23 = sphi 0, %s21
    %s43 = sphi 0, %s45
    %s46 = sphi 0, %s43
    %s47 = sphi 0, %s46
    %s63 = sphi 0, %s47
    %s71 = sphi 0, %s73
    %s74 = sphi 0, %s71
    %s75 = sphi 0, %s74
    %s91 = sphi 0, %s75
    %s107 = sphi 0, %s109
    %s110 = sphi 0, %s107
    %s111 = sphi 0, %s110
    %s127 = sphi 0, %s111
    %s131 = sphi 0, %s131
    %s133 = sphi 0, %s131
    %s134 = sphi 0, %s133
    %s148 = sphi 0, %s134
    %s152 = sphi 0, %s152
    %s154 = sphi 0, %s152
    %s155 = sphi 0, %s154
    %s169 = sphi 0, %s155
    %s177 = sphi 0, %s179
    %s180 = sphi 0, %s177
    %s181 = sphi 0, %s180
    %s197 = sphi 0, %s181
  $region4: #{resblock_pallas.1} parent=0 // loop_header_branch
    %14 = sbr.rel (%p12) target = $region8
  $region5: #{resblock_pallas.1} parent=0 // loop_body
    %s16 = ssub.s32 %s11, 1
    %s17 = ssub.s32 %s11, 2
    %s24 = sadd.s32 1, %s19
    %p25 = scmp.ge.s32.totalorder %s24, 2
    %s26 = scalar_select %p25, 0, %s24
    %s27 = sadd.s32 1, %s18
    %s28 = scalar_select %p25, %s27, %s18
    %p29 = scmp.ge.s32.totalorder %s28, 2
    %s30 = scalar_select %p29, 0, %s28
    %s31 = smul.u32 %s19, 4
    %s32 = ssub.s32 %s31, 1
    %p33 = scmp.gt.s32.totalorder %s32, 0
    %s34 = scalar_select %p33, %s32, 0
    %s35 = smul.u32 %s26, 4
    %s36 = ssub.s32 %s35, 1
    %p37 = scmp.gt.s32.totalorder %s36, 0
    %s38 = scalar_select %p37, %s36, 0
    %s39 = ssub.s32 %s18, %s30
    %s40 = ssub.s32 %s34, %s38
    %s41 = sor.u32 %s39, %s40
    %p42 = scmp.eq.s32.totalorder %s41, 0
    %s44 = sadd.s32 %s43, 1
    %s45 = scalar_select %p42, %s43, %s44
    %p48 = pneg %p42
    %p49 = scmp.eq.s32.totalorder %s11, 3
    %p50 = por %p48, %p49
    %p51 = scmp.ne.s32.totalorder %s43, %s46
    %p52 = scmp.eq.s32.totalorder %s11, 0
    %p53 = por %p51, %p52
    %p54 = scmp.ne.s32.totalorder %s43, %s46
    %p55 = scmp.eq.s32.totalorder %s16, 3
    %p56 = por %p54, %p55
    %p57 = scmp.ne.s32.totalorder %s46, %s47
    %p58 = scmp.eq.s32.totalorder %s16, 0
    %p59 = por %p57, %p58
    %p60 = scmp.ne.s32.totalorder %s46, %s47
    %p61 = scmp.eq.s32.totalorder %s17, 3
    %p62 = por %p60, %p61
    %p64 = scmp.ne.s32.totalorder %s47, %s63
    %p65 = scmp.eq.s32.totalorder %s17, 0
    %p66 = por %p64, %p65
    %s67 = ssub.s32 %s18, %s30
    %s68 = ssub.s32 %s19, %s26
    %s69 = sor.u32 %s67, %s68
    %p70 = scmp.eq.s32.totalorder %s69, 0
    %s72 = sadd.s32 %s71, 1
    %s73 = scalar_select %p70, %s71, %s72
    %p76 = pneg %p70
    %p77 = scmp.eq.s32.totalorder %s11, 3
    %p78 = por %p76, %p77
    %p79 = scmp.ne.s32.totalorder %s71, %s74
    %p80 = scmp.eq.s32.totalorder %s11, 0
    %p81 = por %p79, %p80
    %p82 = scmp.ne.s32.totalorder %s71, %s74
    %p83 = scmp.eq.s32.totalorder %s16, 3
    %p84 = por %p82, %p83
    %p85 = scmp.ne.s32.totalorder %s74, %s75
    %p86 = scmp.eq.s32.totalorder %s16, 0
    %p87 = por %p85, %p86
    %p88 = scmp.ne.s32.totalorder %s74, %s75
    %p89 = scmp.eq.s32.totalorder %s17, 3
    %p90 = por %p88, %p89
    %p92 = scmp.ne.s32.totalorder %s75, %s91
    %p93 = scmp.eq.s32.totalorder %s17, 0
    %p94 = por %p92, %p93
    %s95 = sadd.s32 %s19, 1
    %s96 = smul.u32 %s95, 4
    %p97 = scmp.lt.s32.totalorder %s96, 7
    %s98 = scalar_select %p97, %s96, 7
    %s99 = sadd.s32 %s26, 1
    %s100 = smul.u32 %s99, 4
    %p101 = scmp.lt.s32.totalorder %s100, 7
    %s102 = scalar_select %p101, %s100, 7
    %s103 = ssub.s32 %s18, %s30
    %s104 = ssub.s32 %s98, %s102
    %s105 = sor.u32 %s103, %s104
    %p106 = scmp.eq.s32.totalorder %s105, 0
    %s108 = sadd.s32 %s107, 1
    %s109 = scalar_select %p106, %s107, %s108
    %p112 = pneg %p106
    %p113 = scmp.eq.s32.totalorder %s11, 3
    %p114 = por %p112, %p113
    %p115 = scmp.ne.s32.totalorder %s107, %s110
    %p116 = scmp.eq.s32.totalorder %s11, 0
    %p117 = por %p115, %p116
    %p118 = scmp.ne.s32.totalorder %s107, %s110
    %p119 = scmp.eq.s32.totalorder %s16, 3
    %p120 = por %p118, %p119
    %p121 = scmp.ne.s32.totalorder %s110, %s111
    %p122 = scmp.eq.s32.totalorder %s16, 0
    %p123 = por %p121, %p122
    %p124 = scmp.ne.s32.totalorder %s110, %s111
    %p125 = scmp.eq.s32.totalorder %s17, 3
    %p126 = por %p124, %p125
    %p128 = scmp.ne.s32.totalorder %s111, %s127
    %p129 = scmp.eq.s32.totalorder %s17, 0
    %p130 = por %p128, %p129
    %s132 = sadd.s32 %s131, 1
    %p135 = scmp.eq.s32.totalorder %s11, 3
    %p136 = scmp.ne.s32.totalorder %s131, %s133
    %p137 = scmp.eq.s32.totalorder %s11, 0
    %p138 = por %p136, %p137
    %p139 = scmp.ne.s32.totalorder %s131, %s133
    %p140 = scmp.eq.s32.totalorder %s16, 3
    %p141 = por %p139, %p140
    %p142 = scmp.ne.s32.totalorder %s133, %s134
    %p143 = scmp.eq.s32.totalorder %s16, 0
    %p144 = por %p142, %p143
    %p145 = scmp.ne.s32.totalorder %s133, %s134
    %p146 = scmp.eq.s32.totalorder %s17, 3
    %p147 = por %p145, %p146
    %p149 = scmp.ne.s32.totalorder %s134, %s148
    %p150 = scmp.eq.s32.totalorder %s17, 0
    %p151 = por %p149, %p150
    %s153 = sadd.s32 %s152, 1
    %p156 = scmp.eq.s32.totalorder %s11, 3
    %p157 = scmp.ne.s32.totalorder %s152, %s154
    %p158 = scmp.eq.s32.totalorder %s11, 0
    %p159 = por %p157, %p158
    %p160 = scmp.ne.s32.totalorder %s152, %s154
    %p161 = scmp.eq.s32.totalorder %s16, 3
    %p162 = por %p160, %p161
    %p163 = scmp.ne.s32.totalorder %s154, %s155
    %p164 = scmp.eq.s32.totalorder %s16, 0
    %p165 = por %p163, %p164
    %p166 = scmp.ne.s32.totalorder %s154, %s155
    %p167 = scmp.eq.s32.totalorder %s17, 3
    %p168 = por %p166, %p167
    %p170 = scmp.ne.s32.totalorder %s155, %s169
    %p171 = scmp.eq.s32.totalorder %s17, 0
    %p172 = por %p170, %p171
    %s173 = ssub.s32 %s18, %s30
    %s174 = ssub.s32 %s19, %s26
    %s175 = sor.u32 %s173, %s174
    %p176 = scmp.eq.s32.totalorder %s175, 0
    %s178 = sadd.s32 %s177, 1
    %s179 = scalar_select %p176, %s177, %s178
    %p182 = pneg %p176
    %p183 = scmp.eq.s32.totalorder %s11, 3
    %p184 = por %p182, %p183
    %p185 = scmp.ne.s32.totalorder %s177, %s180
    %p186 = scmp.eq.s32.totalorder %s11, 0
    %p187 = por %p185, %p186
    %p188 = scmp.ne.s32.totalorder %s177, %s180
    %p189 = scmp.eq.s32.totalorder %s16, 3
    %p190 = por %p188, %p189
    %p191 = scmp.ne.s32.totalorder %s180, %s181
    %p192 = scmp.eq.s32.totalorder %s16, 0
    %p193 = por %p191, %p192
    %p194 = scmp.ne.s32.totalorder %s180, %s181
    %p195 = scmp.eq.s32.totalorder %s17, 3
    %p196 = por %p194, %p195
    %p198 = scmp.ne.s32.totalorder %s181, %s197
    %p199 = scmp.eq.s32.totalorder %s17, 0
    %p200 = por %p198, %p199
    %p201 = scmp.le.s32.totalorder 1, %s11
    %p202 = scmp.lt.s32.totalorder %s11, 5
    %p203 = pnand %p201, %p202
    %p204 = pneg %p203
    // Predicated region
    $region9: #{resblock_pallas.1} parent=5 // pred_check
      _
    $region10: #{resblock_pallas.1} parent=5 // pred_check_branch
      %206 = sbr.rel (%p203) target = $region12
    $region11: #{resblock_pallas.1} parent=5 // pred_region
      %s207 = ssub.s32 %s11, 1
      // Predicated region
      $region13: #{resblock_pallas.1} parent=11 // pred_check
        %p208 = pneg %p144
      $region14: #{resblock_pallas.1} parent=11 // pred_check_branch
        %210 = sbr.rel (%p208) target = $region16
      $region15: #{resblock_pallas.1} parent=11 // pred_region
        _
      $region16: #{resblock_pallas.1} parent=11 // pred_fallthru
        _
      // Predicated region
      $region17: #{resblock_pallas.1} parent=11 // pred_check
        %p211 = pneg %p165
      $region18: #{resblock_pallas.1} parent=11 // pred_check_branch
        %213 = sbr.rel (%p211) target = $region20
      $region19: #{resblock_pallas.1} parent=11 // pred_region
        _
      $region20: #{resblock_pallas.1} parent=11 // pred_fallthru
        _
    $region12: #{resblock_pallas.1} parent=5 // pred_fallthru
      _
    %p214 = scmp.lt.s32.totalorder %s11, 4
    // Predicated region
    $region21: #{resblock_pallas.1} parent=5 // pred_check
      %p215 = pneg %p214
    $region22: #{resblock_pallas.1} parent=5 // pred_check_branch
      %217 = sbr.rel (%p215) target = $region24
    $region23: #{resblock_pallas.1} parent=5 // pred_region
      // Predicated region
      $region25: #{resblock_pallas.1} parent=23 // pred_check
        %p218 = pneg %p53
      $region26: #{resblock_pallas.1} parent=23 // pred_check_branch
        %220 = sbr.rel (%p218) target = $region28
      $region27: #{resblock_pallas.1} parent=23 // pred_region
        %s221 = smul.u32 %s19, 4
        %s222 = ssub.s32 %s221, 1
        %p223 = scmp.gt.s32.totalorder %s222, 0
        %s224 = scalar_select %p223, %s222, 0
        %s225 = smul.u32 2, %s224
        %p226 = scmp.lt.s32.totalorder %s18, 1
        %s227 = scalar_select %p226, %s18, 1
        %p228 = scmp.lt.s32.totalorder %s225, 15
        %s229 = scalar_select %p228, %s225, 15
        %s230 = smul.addr %s229, 2
        %s231 = smul.addr %s227, 32
        %s232 = sadd.s32 %s230, %s231
        %s233 = smul.addr %s232, 8
        %s234 = scalar_lea.vmem %s0, %s233
        %s235 = smul.u32 %s19, 4
        %s236 = ssub.s32 %s235, 1
        %p237 = scmp.gt.s32.totalorder %s236, 0
        %s238 = scalar_select %p237, %s236, 0
        %s239 = smul.u32 2, %s238
      $region28: #{resblock_pallas.1} parent=23 // pred_fallthru
        _
      // Predicated region
      $region29: #{resblock_pallas.1} parent=23 // pred_check
        %p240 = pneg %p81
      $region30: #{resblock_pallas.1} parent=23 // pred_check_branch
        %242 = sbr.rel (%p240) target = $region32
      $region31: #{resblock_pallas.1} parent=23 // pred_region
        %s243 = smul.u32 8, %s19
        %p244 = scmp.lt.s32.totalorder %s18, 1
        %s245 = scalar_select %p244, %s18, 1
        %p246 = scmp.lt.s32.totalorder %s243, 15
        %s247 = scalar_select %p246, %s243, 15
        %s248 = smul.addr %s247, 2
        %s249 = smul.addr %s245, 32
        %s250 = sadd.s32 %s248, %s249
        %s251 = smul.addr %s250, 8
        %s252 = scalar_lea.vmem %s1, %s251
        %s253 = smul.u32 8, %s19
      $region32: #{resblock_pallas.1} parent=23 // pred_fallthru
        _
      // Predicated region
      $region33: #{resblock_pallas.1} parent=23 // pred_check
        %p254 = pneg %p117
      $region34: #{resblock_pallas.1} parent=23 // pred_check_branch
        %256 = sbr.rel (%p254) target = $region36
      $region35: #{resblock_pallas.1} parent=23 // pred_region
        %s257 = sadd.s32 %s19, 1
        %s258 = smul.u32 %s257, 4
        %p259 = scmp.lt.s32.totalorder %s258, 7
        %s260 = scalar_select %p259, %s258, 7
        %s261 = smul.u32 2, %s260
        %p262 = scmp.lt.s32.totalorder %s18, 1
        %s263 = scalar_select %p262, %s18, 1
        %p264 = scmp.lt.s32.totalorder %s261, 15
        %s265 = scalar_select %p264, %s261, 15
        %s266 = smul.addr %s265, 2
        %s267 = smul.addr %s263, 32
        %s268 = sadd.s32 %s266, %s267
        %s269 = smul.addr %s268, 8
        %s270 = scalar_lea.vmem %s2, %s269
        %s271 = sadd.s32 %s19, 1
        %s272 = smul.u32 %s271, 4
        %p273 = scmp.lt.s32.totalorder %s272, 7
        %s274 = scalar_select %p273, %s272, 7
        %s275 = smul.u32 2, %s274
      $region36: #{resblock_pallas.1} parent=23 // pred_fallthru
        _
    $region24: #{resblock_pallas.1} parent=5 // pred_fallthru
      _
    %p276 = scmp.le.s32.totalorder 1, %s11
    %p277 = scmp.lt.s32.totalorder %s11, 5
    %p278 = pnand %p276, %p277
    %p279 = pneg %p278
    // Predicated region
    $region37: #{resblock_pallas.1} parent=5 // pred_check
      _
    $region38: #{resblock_pallas.1} parent=5 // pred_check_branch
      %281 = sbr.rel (%p278) target = $region40
    $region39: #{resblock_pallas.1} parent=5 // pred_region
      %s282 = ssub.s32 %s11, 1
      %s283 = smul.u32 %s21, 4
      %s284 = ssub.s32 %s283, 1
      %p285 = scmp.gt.s32.totalorder %s284, 0
      %s286 = scalar_select %p285, %s284, 0
      %s287 = smul.u32 2, %s286
      %p288 = scmp.lt.s32.totalorder %s20, 1
      %s289 = scalar_select %p288, %s20, 1
      %p290 = scmp.lt.s32.totalorder %s287, 15
      %s291 = scalar_select %p290, %s287, 15
      %s292 = smul.addr %s291, 2
      %s293 = smul.addr %s289, 32
      %s294 = sadd.s32 %s292, %s293
      %s295 = smul.addr %s294, 8
      %s296 = scalar_lea.vmem %s0, %s295
      %p297 = pneg %p59
      %p298 = pneg %p56
      %s299 = smul.u32 8, %s21
      %p300 = scmp.lt.s32.totalorder %s20, 1
      %s301 = scalar_select %p300, %s20, 1
      %p302 = scmp.lt.s32.totalorder %s299, 15
      %s303 = scalar_select %p302, %s299, 15
      %s304 = smul.addr %s303, 2
      %s305 = smul.addr %s301, 32
      %s306 = sadd.s32 %s304, %s305
      %s307 = smul.addr %s306, 8
      %s308 = scalar_lea.vmem %s1, %s307
      %p309 = pneg %p87
      %p310 = pneg %p84
      %s311 = sadd.s32 %s21, 1
      %s312 = smul.u32 %s311, 4
      %p313 = scmp.lt.s32.totalorder %s312, 7
      %s314 = scalar_select %p313, %s312, 7
      %s315 = smul.u32 2, %s314
      %p316 = scmp.lt.s32.totalorder %s20, 1
      %s317 = scalar_select %p316, %s20, 1
      %p318 = scmp.lt.s32.totalorder %s315, 15
      %s319 = scalar_select %p318, %s315, 15
      %s320 = smul.addr %s319, 2
      %s321 = smul.addr %s317, 32
      %s322 = sadd.s32 %s320, %s321
      %s323 = smul.addr %s322, 8
      %s324 = scalar_lea.vmem %s2, %s323
      %p325 = pneg %p123
      %p326 = pneg %p120
      %p327 = pneg %p144
      %p328 = pneg %p141
      %p329 = pneg %p165
      %p330 = pneg %p162
      %p331 = pneg %p193
      %p332 = pneg %p190
      %s333 = smul.u32 8, %s21
      %p334 = scmp.lt.s32.totalorder %s20, 1
      %s335 = scalar_select %p334, %s20, 1
      %p336 = scmp.lt.s32.totalorder %s333, 15
      %s337 = scalar_select %p336, %s333, 15
      %s338 = smul.addr %s337, 2
      %s339 = smul.addr %s335, 32
      %s340 = sadd.s32 %s338, %s339
      %s341 = smul.addr %s340, 8
      %s342 = scalar_lea.vmem %s5, %s341
      %s343 = smul.u32 %s21, 4
      %s344 = ssub.s32 %s343, 1
      %p345 = scmp.gt.s32.totalorder %s344, 0
      %s346 = scalar_select %p345, %s344, 0
      %s347 = smul.u32 2, %s346
      %p348 = scmp.lt.s32.totalorder %s20, 1
      %s349 = scalar_select %p348, %s20, 1
      %p350 = scmp.lt.s32.totalorder %s347, 15
      %s351 = scalar_select %p350, %s347, 15
      %s352 = smul.addr %s351, 2
      %s353 = smul.addr %s349, 32
      %s354 = sadd.s32 %s352, %s353
      %s355 = smul.addr %s354, 8
      %s356 = scalar_lea.vmem %s0, %s355
      %s357 = smul.u32 %s21, 4
      %s358 = ssub.s32 %s357, 1
      %p359 = scmp.gt.s32.totalorder %s358, 0
      %s360 = scalar_select %p359, %s358, 0
      %s361 = smul.u32 2, %s360
      %s362 = smul.u32 8, %s21
      %p363 = scmp.lt.s32.totalorder %s20, 1
      %s364 = scalar_select %p363, %s20, 1
      %p365 = scmp.lt.s32.totalorder %s362, 15
      %s366 = scalar_select %p365, %s362, 15
      %s367 = smul.addr %s366, 2
      %s368 = smul.addr %s364, 32
      %s369 = sadd.s32 %s367, %s368
      %s370 = smul.addr %s369, 8
      %s371 = scalar_lea.vmem %s1, %s370
      %s372 = smul.u32 8, %s21
      %s373 = sadd.s32 %s21, 1
      %s374 = smul.u32 %s373, 4
      %p375 = scmp.lt.s32.totalorder %s374, 7
      %s376 = scalar_select %p375, %s374, 7
      %s377 = smul.u32 2, %s376
      %p378 = scmp.lt.s32.totalorder %s20, 1
      %s379 = scalar_select %p378, %s20, 1
      %p380 = scmp.lt.s32.totalorder %s377, 15
      %s381 = scalar_select %p380, %s377, 15
      %s382 = smul.addr %s381, 2
      %s383 = smul.addr %s379, 32
      %s384 = sadd.s32 %s382, %s383
      %s385 = smul.addr %s384, 8
      %s386 = scalar_lea.vmem %s2, %s385
      %s387 = sadd.s32 %s21, 1
      %s388 = smul.u32 %s387, 4
      %p389 = scmp.lt.s32.totalorder %s388, 7
      %s390 = scalar_select %p389, %s388, 7
      %s391 = smul.u32 2, %s390
      %s392 = smul.u32 8, %s21
      %p393 = scmp.lt.s32.totalorder %s20, 1
      %s394 = scalar_select %p393, %s20, 1
      %p395 = scmp.lt.s32.totalorder %s392, 15
      %s396 = scalar_select %p395, %s392, 15
      %s397 = smul.addr %s396, 2
      %s398 = smul.addr %s394, 32
      %s399 = sadd.s32 %s397, %s398
      %s400 = smul.addr %s399, 8
      %s401 = scalar_lea.vmem %s5, %s400
      %s402 = smul.u32 8, %s21
      %vm404 = vcmask 24576
      %405 = vst.msk [vmem:[#allocation2] sm:$0x1] %vm404, 0.0
      %406 = vst.msk [vmem:[#allocation2 + $0x18] sm:$0x1] %vm404, 0.0
      %407 = vst.msk [vmem:[#allocation2 + $0x30] sm:$0x1] %vm404, 0.0
      %408 = vst.msk [vmem:[#allocation2 + $0x48] sm:$0x1] %vm404, 0.0
      %409 = vst.msk [vmem:[#allocation2 + $0x60] sm:$0x1] %vm404, 0.0
      %410 = vst.msk [vmem:[#allocation2 + $0x78] sm:$0x1] %vm404, 0.0
      %411 = vst.msk [vmem:[#allocation2 + $0x90] sm:$0x1] %vm404, 0.0
      %412 = vst.msk [vmem:[#allocation2 + $0xa8] sm:$0x1] %vm404, 0.0
      %413 = vst.msk [vmem:[#allocation2 + $0xc0] sm:$0x1] %vm404, 0.0
      %414 = vst.msk [vmem:[#allocation2 + $0xd8] sm:$0x1] %vm404, 0.0
      %415 = vst.msk [vmem:[#allocation2 + $0xf0] sm:$0x1] %vm404, 0.0
      %416 = vst.msk [vmem:[#allocation2 + $0x108] sm:$0x1] %vm404, 0.0
      %417 = vst.msk [vmem:[#allocation2 + $0x11] sm:$0x1] %vm404, 0.0
      %418 = vst.msk [vmem:[#allocation2 + $0x29] sm:$0x1] %vm404, 0.0
      %419 = vst.msk [vmem:[#allocation2 + $0x41] sm:$0x1] %vm404, 0.0
      %420 = vst.msk [vmem:[#allocation2 + $0x59] sm:$0x1] %vm404, 0.0
      %421 = vst.msk [vmem:[#allocation2 + $0x71] sm:$0x1] %vm404, 0.0
      %422 = vst.msk [vmem:[#allocation2 + $0x89] sm:$0x1] %vm404, 0.0
      %423 = vst.msk [vmem:[#allocation2 + $0xa1] sm:$0x1] %vm404, 0.0
      %424 = vst.msk [vmem:[#allocation2 + $0xb9] sm:$0x1] %vm404, 0.0
      %425 = vst.msk [vmem:[#allocation2 + $0xd1] sm:$0x1] %vm404, 0.0
      %426 = vst.msk [vmem:[#allocation2 + $0xe9] sm:$0x1] %vm404, 0.0
      %427 = vst.msk [vmem:[#allocation2 + $0x101] sm:$0x1] %vm404, 0.0
      %428 = vst.msk [vmem:[#allocation2 + $0x119] sm:$0x1] %vm404, 0.0
      %429 = vst.msk [vmem:[#allocation3] sm:$0x1] %vm404, 0.0
      %430 = vst.msk [vmem:[#allocation3 + $0x18] sm:$0x1] %vm404, 0.0
      %431 = vst.msk [vmem:[#allocation3 + $0x30] sm:$0x1] %vm404, 0.0
      %432 = vst.msk [vmem:[#allocation3 + $0x48] sm:$0x1] %vm404, 0.0
      %433 = vst.msk [vmem:[#allocation3 + $0x60] sm:$0x1] %vm404, 0.0
      %434 = vst.msk [vmem:[#allocation3 + $0x78] sm:$0x1] %vm404, 0.0
      %435 = vst.msk [vmem:[#allocation3 + $0x90] sm:$0x1] %vm404, 0.0
      %436 = vst.msk [vmem:[#allocation3 + $0xa8] sm:$0x1] %vm404, 0.0
      %437 = vst.msk [vmem:[#allocation3 + $0xc0] sm:$0x1] %vm404, 0.0
      %438 = vst.msk [vmem:[#allocation3 + $0xd8] sm:$0x1] %vm404, 0.0
      %439 = vst.msk [vmem:[#allocation3 + $0x11] sm:$0x1] %vm404, 0.0
      %440 = vst.msk [vmem:[#allocation3 + $0x29] sm:$0x1] %vm404, 0.0
      %441 = vst.msk [vmem:[#allocation3 + $0x41] sm:$0x1] %vm404, 0.0
      %442 = vst.msk [vmem:[#allocation3 + $0x59] sm:$0x1] %vm404, 0.0
      %443 = vst.msk [vmem:[#allocation3 + $0x71] sm:$0x1] %vm404, 0.0
      %444 = vst.msk [vmem:[#allocation3 + $0x89] sm:$0x1] %vm404, 0.0
      %445 = vst.msk [vmem:[#allocation3 + $0xa1] sm:$0x1] %vm404, 0.0
      %446 = vst.msk [vmem:[#allocation3 + $0xb9] sm:$0x1] %vm404, 0.0
      %447 = vst.msk [vmem:[#allocation3 + $0xd1] sm:$0x1] %vm404, 0.0
      %448 = vst.msk [vmem:[#allocation3 + $0xe9] sm:$0x1] %vm404, 0.0
      %v449 = vld [vmem:[%s371] sm:$0xff]
      %v450 = vld [vmem:[%s371 + $0x8] sm:$0xff]
      %v451 = vld [vmem:[%s371 + $0x10] sm:$0xff]
      %v452 = vld [vmem:[%s371 + $0x18] sm:$0xff]
      %v453 = vld [vmem:[%s371 + $0x20] sm:$0xff]
      %v454 = vld [vmem:[%s371 + $0x28] sm:$0xff]
      %v455 = vld [vmem:[%s371 + $0x30] sm:$0xff]
      %v456 = vld [vmem:[%s371 + $0x38] sm:$0xff]
      %v457 = vld [vmem:[%s371 + $0x40] sm:$0xff]
      %v458 = vld [vmem:[%s371 + $0x48] sm:$0xff]
      %v459 = vld [vmem:[%s371 + $0x50] sm:$0xff]
      %v460 = vld [vmem:[%s371 + $0x58] sm:$0xff]
      %v461 = vld [vmem:[%s371 + $0x60] sm:$0xff]
      %v462 = vld [vmem:[%s371 + $0x68] sm:$0xff]
      %v463 = vld [vmem:[%s371 + $0x70] sm:$0xff]
      %v464 = vld [vmem:[%s371 + $0x78] sm:$0xff]
      %s465 = scalar_lea.vmem [#allocation2], 48
      %vm466 = vcmask 31744
      %467 = vst.msk [vmem:[%s465 + $0x1] sm:$0xff] %vm466, %v449
      %468 = vst.msk [vmem:[%s465 + $0x9] sm:$0xff] %vm466, %v450
      %469 = vst.msk [vmem:[%s465 + $0x19] sm:$0xff] %vm466, %v451
      %470 = vst.msk [vmem:[%s465 + $0x21] sm:$0xff] %vm466, %v452
      %471 = vst.msk [vmem:[%s465 + $0x31] sm:$0xff] %vm466, %v453
      %472 = vst.msk [vmem:[%s465 + $0x39] sm:$0xff] %vm466, %v454
      %473 = vst.msk [vmem:[%s465 + $0x49] sm:$0xff] %vm466, %v455
      %474 = vst.msk [vmem:[%s465 + $0x51] sm:$0xff] %vm466, %v456
      %475 = vst.msk [vmem:[%s465 + $0x61] sm:$0xff] %vm466, %v457
      %476 = vst.msk [vmem:[%s465 + $0x69] sm:$0xff] %vm466, %v458
      %477 = vst.msk [vmem:[%s465 + $0x79] sm:$0xff] %vm466, %v459
      %478 = vst.msk [vmem:[%s465 + $0x81] sm:$0xff] %vm466, %v460
      %479 = vst.msk [vmem:[%s465 + $0x91] sm:$0xff] %vm466, %v461
      %480 = vst.msk [vmem:[%s465 + $0x99] sm:$0xff] %vm466, %v462
      %481 = vst.msk [vmem:[%s465 + $0xa9] sm:$0xff] %vm466, %v463
      %482 = vst.msk [vmem:[%s465 + $0xb1] sm:$0xff] %vm466, %v464
      %p483 = scmp.gt.s32.totalorder %s21, 0
      // Predicated region
      $region41: #{resblock_pallas.1} parent=39 // pred_check
        %p484 = pneg %p483
      $region42: #{resblock_pallas.1} parent=39 // pred_check_branch
        %486 = sbr.rel (%p484) target = $region44
      $region43: #{resblock_pallas.1} parent=39 // pred_region
        %v487 = vld [vmem:[%s356] sm:$0xff]
        %v488 = vld [vmem:[%s356 + $0x8] sm:$0xff]
        %v489 = vld [vmem:[%s356 + $0x10] sm:$0xff]
        %v490 = vld [vmem:[%s356 + $0x18] sm:$0xff]
        %491 = vst.msk [vmem:[#allocation2 + $0x1] sm:$0xff] %vm466, %v487
        %492 = vst.msk [vmem:[#allocation2 + $0x9] sm:$0xff] %vm466, %v488
        %493 = vst.msk [vmem:[#allocation2 + $0x19] sm:$0xff] %vm466, %v489
        %494 = vst.msk [vmem:[#allocation2 + $0x21] sm:$0xff] %vm466, %v490
      $region44: #{resblock_pallas.1} parent=39 // pred_fallthru
        _
      %p495 = scmp.eq.s32.totalorder %s21, 0
      // Predicated region
      $region45: #{resblock_pallas.1} parent=39 // pred_check
        %p496 = pneg %p495
      $region46: #{resblock_pallas.1} parent=39 // pred_check_branch
        %498 = sbr.rel (%p496) target = $region48
      $region47: #{resblock_pallas.1} parent=39 // pred_region
        %499 = vst.msk [vmem:[#allocation2 + $0x1] sm:$0xff] %vm466, 0.0
        %500 = vst.msk [vmem:[#allocation2 + $0x9] sm:$0xff] %vm466, 0.0
        %501 = vst.msk [vmem:[#allocation2 + $0x19] sm:$0xff] %vm466, 0.0
        %502 = vst.msk [vmem:[#allocation2 + $0x21] sm:$0xff] %vm466, 0.0
      $region48: #{resblock_pallas.1} parent=39 // pred_fallthru
        _
      %p503 = scmp.lt.s32.totalorder %s21, 1
      // Predicated region
      $region49: #{resblock_pallas.1} parent=39 // pred_check
        %p504 = pneg %p503
      $region50: #{resblock_pallas.1} parent=39 // pred_check_branch
        %506 = sbr.rel (%p504) target = $region52
      $region51: #{resblock_pallas.1} parent=39 // pred_region
        %v507 = vld [vmem:[%s386] sm:$0xff]
        %v508 = vld [vmem:[%s386 + $0x8] sm:$0xff]
        %v509 = vld [vmem:[%s386 + $0x10] sm:$0xff]
        %v510 = vld [vmem:[%s386 + $0x18] sm:$0xff]
        %s511 = scalar_lea.vmem [#allocation2], 240
        %512 = vst.msk [vmem:[%s511 + $0x1] sm:$0xff] %vm466, %v507
        %513 = vst.msk [vmem:[%s511 + $0x9] sm:$0xff] %vm466, %v508
        %514 = vst.msk [vmem:[%s511 + $0x19] sm:$0xff] %vm466, %v509
        %515 = vst.msk [vmem:[%s511 + $0x21] sm:$0xff] %vm466, %v510
      $region52: #{resblock_pallas.1} parent=39 // pred_fallthru
        _
      %p516 = scmp.eq.s32.totalorder %s21, 1
      // Predicated region
      $region53: #{resblock_pallas.1} parent=39 // pred_check
        %p517 = pneg %p516
      $region54: #{resblock_pallas.1} parent=39 // pred_check_branch
        %519 = sbr.rel (%p517) target = $region56
      $region55: #{resblock_pallas.1} parent=39 // pred_region
        %s520 = scalar_lea.vmem [#allocation2], 240
        %521 = vst.msk [vmem:[%s520 + $0x1] sm:$0xff] %vm466, 0.0
        %522 = vst.msk [vmem:[%s520 + $0x9] sm:$0xff] %vm466, 0.0
        %523 = vst.msk [vmem:[%s520 + $0x19] sm:$0xff] %vm466, 0.0
        %524 = vst.msk [vmem:[%s520 + $0x21] sm:$0xff] %vm466, 0.0
      $region56: #{resblock_pallas.1} parent=39 // pred_fallthru
        _
      %v525 = vld [vmem:[#allocation2] sm:$0xff]
      %v526 = vld [vmem:[#allocation2 + $0x8] sm:$0xff]
      %v527 = vld [vmem:[#allocation2 + $0x10] sm:$0x3]
      %v528 = vld [vmem:[#allocation2 + $0x18] sm:$0xff]
      %v529 = vld [vmem:[#allocation2 + $0x20] sm:$0xff]
      %v530 = vld [vmem:[#allocation2 + $0x28] sm:$0x3]
      %v531 = vld [vmem:[#allocation2 + $0x30] sm:$0xff]
      %v532 = vld [vmem:[#allocation2 + $0x38] sm:$0xff]
      %v533 = vld [vmem:[#allocation2 + $0x40] sm:$0x3]
      %v534 = vld [vmem:[#allocation2 + $0x48] sm:$0xff]
      %v535 = vld [vmem:[#allocation2 + $0x50] sm:$0xff]
      %v536 = vld [vmem:[#allocation2 + $0x58] sm:$0x3]
      %v537 = vld [vmem:[#allocation2 + $0x60] sm:$0xff]
      %v538 = vld [vmem:[#allocation2 + $0x68] sm:$0xff]
      %v539 = vld [vmem:[#allocation2 + $0x70] sm:$0x3]
      %v540 = vld [vmem:[#allocation2 + $0x78] sm:$0xff]
      %v541 = vld [vmem:[#allocation2 + $0x80] sm:$0xff]
      %v542 = vld [vmem:[#allocation2 + $0x88] sm:$0x3]
      %v543 = vld [vmem:[#allocation2 + $0x90] sm:$0xff]
      %v544 = vld [vmem:[#allocation2 + $0x98] sm:$0xff]
      %v545 = vld [vmem:[#allocation2 + $0xa0] sm:$0x3]
      %v546 = vld [vmem:[#allocation2 + $0xa8] sm:$0xff]
      %v547 = vld [vmem:[#allocation2 + $0xb0] sm:$0xff]
      %v548 = vld [vmem:[#allocation2 + $0xb8] sm:$0x3]
      %v549 = vld [vmem:[#allocation2 + $0xc0] sm:$0xff]
      %v550 = vld [vmem:[#allocation2 + $0xc8] sm:$0xff]
      %v551 = vld [vmem:[#allocation2 + $0xd0] sm:$0x3]
      %v552 = vld [vmem:[#allocation2 + $0xd8] sm:$0xff]
      %v553 = vld [vmem:[#allocation2 + $0xe0] sm:$0xff]
      %v554 = vld [vmem:[#allocation2 + $0xe8] sm:$0x3]
      %v555 = vld [vmem:[#allocation2 + $0xf0] sm:$0xff]
      %v556 = vld [vmem:[#allocation2 + $0xf8] sm:$0xff]
      %v557 = vld [vmem:[#allocation2 + $0x100] sm:$0x3]
      %v558 = vld [vmem:[#allocation2 + $0x108] sm:$0xff]
      %v559 = vld [vmem:[#allocation2 + $0x110] sm:$0xff]
      %v560 = vld [vmem:[#allocation2 + $0x118] sm:$0x3]
      %v561 = vpack.c.bf16 %v526, %v525
      %v562 = vpack.c.bf16 %v529, %v528
      %v563 = vpack.c.bf16 %v532, %v531
      %v564 = vpack.c.bf16 %v535, %v534
      %v565 = vpack.c.bf16 %v538, %v537
      %v566 = vpack.c.bf16 %v541, %v540
      %v567 = vpack.c.bf16 %v544, %v543
      %v568 = vpack.c.bf16 %v547, %v546
      %v569 = vpack.c.bf16 %v550, %v549
      %v570 = vpack.c.bf16 %v553, %v552
      %v571 = vld [vmem:[%s3] sm:$0x3]
      %vm602 = vcmask 1046528
      %v603 = vrot.slane %v525, 1
      %v604 = vrot.slane %v526, 1
      %v605 = vsel %vm602, %v603, %v604
      %v606 = vrot.slane %v527, 1
      %v607 = vsel %vm602, %v604, %v606
      %v608 = vrot.slane %v528, 1
      %v609 = vrot.slane %v529, 1
      %v610 = vsel %vm602, %v608, %v609
      %v611 = vrot.slane %v530, 1
      %v612 = vsel %vm602, %v609, %v611
      %v613 = vrot.slane %v531, 1
      %v614 = vrot.slane %v532, 1
      %v615 = vsel %vm602, %v613, %v614
      %v616 = vrot.slane %v533, 1
      %v617 = vsel %vm602, %v614, %v616
      %v618 = vrot.slane %v534, 1
      %v619 = vrot.slane %v535, 1
      %v620 = vsel %vm602, %v618, %v619
      %v621 = vrot.slane %v536, 1
      %v622 = vsel %vm602, %v619, %v621
      %v623 = vrot.slane %v537, 1
      %v624 = vrot.slane %v538, 1
      %v625 = vsel %vm602, %v623, %v624
      %v626 = vrot.slane %v539, 1
      %v627 = vsel %vm602, %v624, %v626
      %v628 = vrot.slane %v540, 1
      %v629 = vrot.slane %v541, 1
      %v630 = vsel %vm602, %v628, %v629
      %v631 = vrot.slane %v542, 1
      %v632 = vsel %vm602, %v629, %v631
      %v633 = vrot.slane %v543, 1
      %v634 = vrot.slane %v544, 1
      %v635 = vsel %vm602, %v633, %v634
      %v636 = vrot.slane %v545, 1
      %v637 = vsel %vm602, %v634, %v636
      %v638 = vrot.slane %v546, 1
      %v639 = vrot.slane %v547, 1
      %v640 = vsel %vm602, %v638, %v639
      %v641 = vrot.slane %v548, 1
      %v642 = vsel %vm602, %v639, %v641
      %v643 = vrot.slane %v549, 1
      %v644 = vrot.slane %v550, 1
      %v645 = vsel %vm602, %v643, %v644
      %v646 = vrot.slane %v551, 1
      %v647 = vsel %vm602, %v644, %v646
      %v648 = vrot.slane %v552, 1
      %v649 = vrot.slane %v553, 1
      %v650 = vsel %vm602, %v648, %v649
      %v651 = vrot.slane %v554, 1
      %v652 = vsel %vm602, %v649, %v651
      %v673 = vpack.c.bf16 %v607, %v605
      %v674 = vpack.c.bf16 %v612, %v610
      %v675 = vpack.c.bf16 %v617, %v615
      %v676 = vpack.c.bf16 %v622, %v620
      %v677 = vpack.c.bf16 %v627, %v625
      %v678 = vpack.c.bf16 %v632, %v630
      %v679 = vpack.c.bf16 %v637, %v635
      %v680 = vpack.c.bf16 %v642, %v640
      %v681 = vpack.c.bf16 %v647, %v645
      %v682 = vpack.c.bf16 %v652, %v650
      %s683 = scalar_lea.vmem %s3, 2
      %v684 = vld [vmem:[%s683] sm:$0x3]
      %v686 = vsel %vm466, %v673, 0
      %v689 = vsel %vm466, %v674, 0
      %v692 = vsel %vm466, %v675, 0
      %v695 = vsel %vm466, %v676, 0
      %v698 = vsel %vm466, %v677, 0
      %v701 = vsel %vm466, %v678, 0
      %v704 = vsel %vm466, %v679, 0
      %v707 = vsel %vm466, %v680, 0
      %v710 = vsel %vm466, %v681, 0
      %v713 = vsel %vm466, %v682, 0
      %vm715 = vcmask 1041408
      %v717 = vsel %vm715, %v684, 0
      %719 = vmatprep.subr.bf16.mxu0 0
      %720 = vmatpush1.bf16.msra.mxu0 %v717
      %721 = vmatprep.subr.bf16.mxu0 0
      %722 = vmatpush1.bf16.msra.mxu0 0
      %723 = vmatprep.subr.bf16.mxu0 0
      %724 = vmatpush1.bf16.msra.mxu0 0
      %725 = vmatprep.subr.bf16.mxu0 0
      %726 = vmatpush1.bf16.msra.mxu0 0
      %727 = vmatprep.subr.bf16.mxu0 0
      %728 = vmatpush1.bf16.msra.mxu0 0
      %729 = vmatprep.subr.bf16.mxu0 0
      %730 = vmatpush1.bf16.msra.mxu0 0
      %731 = vmatprep.subr.bf16.mxu0 0
      %732 = vmatpush1.bf16.msra.mxu0 0
      %733 = vmatprep.subr.bf16.mxu0 0
      %734 = vmatpush1.bf16.msra.mxu0 0
      %735 = vmatprep.subr.bf16.mxu0 0
      %736 = vmatpush1.bf16.msra.mxu0 0
      %737 = vmatprep.subr.bf16.mxu0 0
      %738 = vmatpush1.bf16.msra.mxu0 0
      %739 = vmatprep.subr.bf16.mxu0 0
      %740 = vmatpush1.bf16.msra.mxu0 0
      %741 = vmatprep.subr.bf16.mxu0 0
      %742 = vmatpush1.bf16.msra.mxu0 0
      %743 = vmatprep.subr.bf16.mxu0 0
      %744 = vmatpush1.bf16.msra.mxu0 0
      %745 = vmatprep.subr.bf16.mxu0 0
      %746 = vmatpush1.bf16.msra.mxu0 0
      %747 = vmatprep.subr.bf16.mxu0 0
      %748 = vmatpush1.bf16.msra.mxu0 0
      %749 = vmatprep.subr.bf16.mxu0 0
      %750 = vmatpush1.bf16.msra.mxu0 0
      %751 = vmatprep.mubr.bf16.mxu0 0
      %752 = vmatmul.mubr.bf16.gmra.mrb[0].mxu0 %v686
      %v753 = vpop.f32.mrb[0].mxu0
      %v754 = vadd.f32 0.0, %v753
      %v755 = vpop.f32.mrb[0].mxu0
      %v756 = vpop.f32.mrb[0].mxu0
      %v757 = vadd.f32 0.0, %v756
      %v758 = vpop.f32.mrb[0].mxu0
      %759 = vmatprep.mubr.bf16.mxu0 0
      %760 = vmatmul.mubr.bf16.gmra.mrb[0].mxu0 %v689
      %v761 = vpop.f32.mrb[0].mxu0
      %v762 = vadd.f32 0.0, %v761
      %v763 = vpop.f32.mrb[0].mxu0
      %v764 = vpop.f32.mrb[0].mxu0
      %v765 = vadd.f32 0.0, %v764
      %v766 = vpop.f32.mrb[0].mxu0
      %767 = vmatprep.mubr.bf16.mxu0 0
      %768 = vmatmul.mubr.bf16.gmra.mrb[0].mxu0 %v692
      %v769 = vpop.f32.mrb[0].mxu0
      %v770 = vadd.f32 0.0, %v769
      %v771 = vpop.f32.mrb[0].mxu0
      %v772 = vpop.f32.mrb[0].mxu0
      %v773 = vadd.f32 0.0, %v772
      %v774 = vpop.f32.mrb[0].mxu0
      %775 = vmatprep.mubr.bf16.mxu0 0
      %776 = vmatmul.mubr.bf16.gmra.mrb[0].mxu0 %v695
      %v777 = vpop.f32.mrb[0].mxu0
      %v778 = vadd.f32 0.0, %v777
      %v779 = vpop.f32.mrb[0].mxu0
      %v780 = vpop.f32.mrb[0].mxu0
      %v781 = vadd.f32 0.0, %v780
      %v782 = vpop.f32.mrb[0].mxu0
      %783 = vmatprep.mubr.bf16.mxu0 0
      %784 = vmatmul.mubr.bf16.gmra.mrb[0].mxu0 %v698
      %v785 = vpop.f32.mrb[0].mxu0
      %v786 = vadd.f32 0.0, %v785
      %v787 = vpop.f32.mrb[0].mxu0
      %v788 = vpop.f32.mrb[0].mxu0
      %v789 = vadd.f32 0.0, %v788
      %v790 = vpop.f32.mrb[0].mxu0
      %791 = vmatprep.mubr.bf16.mxu0 0
      %792 = vmatmul.mubr.bf16.gmra.mrb[0].mxu0 %v701
      %v793 = vpop.f32.mrb[0].mxu0
      %v794 = vadd.f32 0.0, %v793
      %v795 = vpop.f32.mrb[0].mxu0
      %v796 = vpop.f32.mrb[0].mxu0
      %v797 = vadd.f32 0.0, %v796
      %v798 = vpop.f32.mrb[0].mxu0
      %799 = vmatprep.mubr.bf16.mxu0 0
      %800 = vmatmul.mubr.bf16.gmra.mrb[0].mxu0 %v704
      %v801 = vpop.f32.mrb[0].mxu0
      %v802 = vadd.f32 0.0, %v801
      %v803 = vpop.f32.mrb[0].mxu0
      %v804 = vpop.f32.mrb[0].mxu0
      %v805 = vadd.f32 0.0, %v804
      %v806 = vpop.f32.mrb[0].mxu0
      %807 = vmatprep.mubr.bf16.mxu0 0
      %808 = vmatmul.mubr.bf16.gmra.mrb[0].mxu0 %v707
      %v809 = vpop.f32.mrb[0].mxu0
      %v810 = vadd.f32 0.0, %v809
      %v811 = vpop.f32.mrb[0].mxu0
      %v812 = vpop.f32.mrb[0].mxu0
      %v813 = vadd.f32 0.0, %v812
      %v814 = vpop.f32.mrb[0].mxu0
      %815 = vmatprep.mubr.bf16.mxu0 0
      %816 = vmatmul.mubr.bf16.gmra.mrb[0].mxu0 %v710
      %v817 = vpop.f32.mrb[0].mxu0
      %v818 = vadd.f32 0.0, %v817
      %v819 = vpop.f32.mrb[0].mxu0
      %v820 = vpop.f32.mrb[0].mxu0
      %v821 = vadd.f32 0.0, %v820
      %v822 = vpop.f32.mrb[0].mxu0
      %823 = vmatprep.mubr.bf16.mxu0 0
      %824 = vmatmul.mubr.bf16.gmra.mrb[0].mxu0 %v713
      %v825 = vpop.f32.mrb[0].mxu0
      %v826 = vadd.f32 0.0, %v825
      %v827 = vpop.f32.mrb[0].mxu0
      %v828 = vpop.f32.mrb[0].mxu0
      %v829 = vadd.f32 0.0, %v828
      %v830 = vpop.f32.mrb[0].mxu0
      %831 = vdwg.mxu0
      %v833 = vsel %vm466, %v561, 0
      %v836 = vsel %vm466, %v562, 0
      %v839 = vsel %vm466, %v563, 0
      %v842 = vsel %vm466, %v564, 0
      %v845 = vsel %vm466, %v565, 0
      %v848 = vsel %vm466, %v566, 0
      %v851 = vsel %vm466, %v567, 0
      %v854 = vsel %vm466, %v568, 0
      %v857 = vsel %vm466, %v569, 0
      %v860 = vsel %vm466, %v570, 0
      %v863 = vsel %vm715, %v571, 0
      %865 = vmatprep.subr.bf16.mxu0 0
      %866 = vmatpush1.bf16.msra.mxu0 %v863
      %867 = vmatprep.subr.bf16.mxu0 0
      %868 = vmatpush1.bf16.msra.mxu0 0
      %869 = vmatprep.subr.bf16.mxu0 0
      %870 = vmatpush1.bf16.msra.mxu0 0
      %871 = vmatprep.subr.bf16.mxu0 0
      %872 = vmatpush1.bf16.msra.mxu0 0
      %873 = vmatprep.subr.bf16.mxu0 0
      %874 = vmatpush1.bf16.msra.mxu0 0
      %875 = vmatprep.subr.bf16.mxu0 0
      %876 = vmatpush1.bf16.msra.mxu0 0
      %877 = vmatprep.subr.bf16.mxu0 0
      %878 = vmatpush1.bf16.msra.mxu0 0
      %879 = vmatprep.subr.bf16.mxu0 0
      %880 = vmatpush1.bf16.msra.mxu0 0
      %881 = vmatprep.subr.bf16.mxu0 0
      %882 = vmatpush1.bf16.msra.mxu0 0
      %883 = vmatprep.subr.bf16.mxu0 0
      %884 = vmatpush1.bf16.msra.mxu0 0
      %885 = vmatprep.subr.bf16.mxu0 0
      %886 = vmatpush1.bf16.msra.mxu0 0
      %887 = vmatprep.subr.bf16.mxu0 0
      %888 = vmatpush1.bf16.msra.mxu0 0
      %889 = vmatprep.subr.bf16.mxu0 0
      %890 = vmatpush1.bf16.msra.mxu0 0
      %891 = vmatprep.subr.bf16.mxu0 0
      %892 = vmatpush1.bf16.msra.mxu0 0
      %893 = vmatprep.subr.bf16.mxu0 0
      %894 = vmatpush1.bf16.msra.mxu0 0
      %895 = vmatprep.subr.bf16.mxu0 0
      %896 = vmatpush1.bf16.msra.mxu0 0
      %897 = vmatprep.mubr.bf16.mxu0 0
      %898 = vmatmul.mubr.bf16.gmra.mrb[0].mxu0 %v833
      %v899 = vpop.f32.mrb[0].mxu0
      %v900 = vadd.f32 %v754, %v899
      %v901 = vpop.f32.mrb[0].mxu0
      %v902 = vpop.f32.mrb[0].mxu0
      %v903 = vadd.f32 %v757, %v902
      %v904 = vpop.f32.mrb[0].mxu0
      %905 = vmatprep.mubr.bf16.mxu0 0
      %906 = vmatmul.mubr.bf16.gmra.mrb[0].mxu0 %v836
      %v907 = vpop.f32.mrb[0].mxu0
      %v908 = vadd.f32 %v762, %v907
      %v909 = vpop.f32.mrb[0].mxu0
      %v910 = vpop.f32.mrb[0].mxu0
      %v911 = vadd.f32 %v765, %v910
      %v912 = vpop.f32.mrb[0].mxu0
      %913 = vmatprep.mubr.bf16.mxu0 0
      %914 = vmatmul.mubr.bf16.gmra.mrb[0].mxu0 %v839
      %v915 = vpop.f32.mrb[0].mxu0
      %v916 = vadd.f32 %v770, %v915
      %v917 = vpop.f32.mrb[0].mxu0
      %v918 = vpop.f32.mrb[0].mxu0
      %v919 = vadd.f32 %v773, %v918
      %v920 = vpop.f32.mrb[0].mxu0
      %921 = vmatprep.mubr.bf16.mxu0 0
      %922 = vmatmul.mubr.bf16.gmra.mrb[0].mxu0 %v842
      %v923 = vpop.f32.mrb[0].mxu0
      %v924 = vadd.f32 %v778, %v923
      %v925 = vpop.f32.mrb[0].mxu0
      %v926 = vpop.f32.mrb[0].mxu0
      %v927 = vadd.f32 %v781, %v926
      %v928 = vpop.f32.mrb[0].mxu0
      %929 = vmatprep.mubr.bf16.mxu0 0
      %930 = vmatmul.mubr.bf16.gmra.mrb[0].mxu0 %v845
      %v931 = vpop.f32.mrb[0].mxu0
      %v932 = vadd.f32 %v786, %v931
      %v933 = vpop.f32.mrb[0].mxu0
      %v934 = vpop.f32.mrb[0].mxu0
      %v935 = vadd.f32 %v789, %v934
      %v936 = vpop.f32.mrb[0].mxu0
      %937 = vmatprep.mubr.bf16.mxu0 0
      %938 = vmatmul.mubr.bf16.gmra.mrb[0].mxu0 %v848
      %v939 = vpop.f32.mrb[0].mxu0
      %v940 = vadd.f32 %v794, %v939
      %v941 = vpop.f32.mrb[0].mxu0
      %v942 = vpop.f32.mrb[0].mxu0
      %v943 = vadd.f32 %v797, %v942
      %v944 = vpop.f32.mrb[0].mxu0
      %945 = vmatprep.mubr.bf16.mxu0 0
      %946 = vmatmul.mubr.bf16.gmra.mrb[0].mxu0 %v851
      %v947 = vpop.f32.mrb[0].mxu0
      %v948 = vadd.f32 %v802, %v947
      %v949 = vpop.f32.mrb[0].mxu0
      %v950 = vpop.f32.mrb[0].mxu0
      %v951 = vadd.f32 %v805, %v950
      %v952 = vpop.f32.mrb[0].mxu0
      %953 = vmatprep.mubr.bf16.mxu0 0
      %954 = vmatmul.mubr.bf16.gmra.mrb[0].mxu0 %v854
      %v955 = vpop.f32.mrb[0].mxu0
      %v956 = vadd.f32 %v810, %v955
      %v957 = vpop.f32.mrb[0].mxu0
      %v958 = vpop.f32.mrb[0].mxu0
      %v959 = vadd.f32 %v813, %v958
      %v960 = vpop.f32.mrb[0].mxu0
      %961 = vmatprep.mubr.bf16.mxu0 0
      %962 = vmatmul.mubr.bf16.gmra.mrb[0].mxu0 %v857
      %v963 = vpop.f32.mrb[0].mxu0
      %v964 = vadd.f32 %v818, %v963
      %v965 = vpop.f32.mrb[0].mxu0
      %v966 = vpop.f32.mrb[0].mxu0
      %v967 = vadd.f32 %v821, %v966
      %v968 = vpop.f32.mrb[0].mxu0
      %969 = vmatprep.mubr.bf16.mxu0 0
      %970 = vmatmul.mubr.bf16.gmra.mrb[0].mxu0 %v860
      %v971 = vpop.f32.mrb[0].mxu0
      %v972 = vadd.f32 %v826, %v971
      %v973 = vpop.f32.mrb[0].mxu0
      %v974 = vpop.f32.mrb[0].mxu0
      %v975 = vadd.f32 %v829, %v974
      %v976 = vpop.f32.mrb[0].mxu0
      %977 = vdwg.mxu0
      %vm978 = vcmask 1045504
      %v979 = vrot.slane %v525, 2
      %v980 = vrot.slane %v526, 2
      %v981 = vsel %vm978, %v979, %v980
      %v982 = vrot.slane %v527, 2
      %v983 = vsel %vm978, %v980, %v982
      %v984 = vrot.slane %v528, 2
      %v985 = vrot.slane %v529, 2
      %v986 = vsel %vm978, %v984, %v985
      %v987 = vrot.slane %v530, 2
      %v988 = vsel %vm978, %v985, %v987
      %v989 = vrot.slane %v531, 2
      %v990 = vrot.slane %v532, 2
      %v991 = vsel %vm978, %v989, %v990
      %v992 = vrot.slane %v533, 2
      %v993 = vsel %vm978, %v990, %v992
      %v994 = vrot.slane %v534, 2
      %v995 = vrot.slane %v535, 2
      %v996 = vsel %vm978, %v994, %v995
      %v997 = vrot.slane %v536, 2
      %v998 = vsel %vm978, %v995, %v997
      %v999 = vrot.slane %v537, 2
      %v1000 = vrot.slane %v538, 2
      %v1001 = vsel %vm978, %v999, %v1000
      %v1002 = vrot.slane %v539, 2
      %v1003 = vsel %vm978, %v1000, %v1002
      %v1004 = vrot.slane %v540, 2
      %v1005 = vrot.slane %v541, 2
      %v1006 = vsel %vm978, %v1004, %v1005
      %v1007 = vrot.slane %v542, 2
      %v1008 = vsel %vm978, %v1005, %v1007
      %v1009 = vrot.slane %v543, 2
      %v1010 = vrot.slane %v544, 2
      %v1011 = vsel %vm978, %v1009, %v1010
      %v1012 = vrot.slane %v545, 2
      %v1013 = vsel %vm978, %v1010, %v1012
      %v1014 = vrot.slane %v546, 2
      %v1015 = vrot.slane %v547, 2
      %v1016 = vsel %vm978, %v1014, %v1015
      %v1017 = vrot.slane %v548, 2
      %v1018 = vsel %vm978, %v1015, %v1017
      %v1019 = vrot.slane %v549, 2
      %v1020 = vrot.slane %v550, 2
      %v1021 = vsel %vm978, %v1019, %v1020
      %v1022 = vrot.slane %v551, 2
      %v1023 = vsel %vm978, %v1020, %v1022
      %v1024 = vrot.slane %v552, 2
      %v1025 = vrot.slane %v553, 2
      %v1026 = vsel %vm978, %v1024, %v1025
      %v1027 = vrot.slane %v554, 2
      %v1028 = vsel %vm978, %v1025, %v1027
      %v1049 = vpack.c.bf16 %v983, %v981
      %v1050 = vpack.c.bf16 %v988, %v986
      %v1051 = vpack.c.bf16 %v993, %v991
      %v1052 = vpack.c.bf16 %v998, %v996
      %v1053 = vpack.c.bf16 %v1003, %v1001
      %v1054 = vpack.c.bf16 %v1008, %v1006
      %v1055 = vpack.c.bf16 %v1013, %v1011
      %v1056 = vpack.c.bf16 %v1018, %v1016
      %v1057 = vpack.c.bf16 %v1023, %v1021
      %v1058 = vpack.c.bf16 %v1028, %v1026
      %s1059 = scalar_lea.vmem %s3, 4
      %v1060 = vld [vmem:[%s1059] sm:$0x3]
      %v1062 = vsel %vm466, %v1049, 0
      %v1065 = vsel %vm466, %v1050, 0
      %v1068 = vsel %vm466, %v1051, 0
      %v1071 = vsel %vm466, %v1052, 0
      %v1074 = vsel %vm466, %v1053, 0
      %v1077 = vsel %vm466, %v1054, 0
      %v1080 = vsel %vm466, %v1055, 0
      %v1083 = vsel %vm466, %v1056, 0
      %v1086 = vsel %vm466, %v1057, 0
      %v1089 = vsel %vm466, %v1058, 0
      %v1092 = vsel %vm715, %v1060, 0
      %1094 = vmatprep.subr.bf16.mxu0 0
      %1095 = vmatpush1.bf16.msra.mxu0 %v1092
      %1096 = vmatprep.subr.bf16.mxu0 0
      %1097 = vmatpush1.bf16.msra.mxu0 0
      %1098 = vmatprep.subr.bf16.mxu0 0
      %1099 = vmatpush1.bf16.msra.mxu0 0
      %1100 = vmatprep.subr.bf16.mxu0 0
      %1101 = vmatpush1.bf16.msra.mxu0 0
      %1102 = vmatprep.subr.bf16.mxu0 0
      %1103 = vmatpush1.bf16.msra.mxu0 0
      %1104 = vmatprep.subr.bf16.mxu0 0
      %1105 = vmatpush1.bf16.msra.mxu0 0
      %1106 = vmatprep.subr.bf16.mxu0 0
      %1107 = vmatpush1.bf16.msra.mxu0 0
      %1108 = vmatprep.subr.bf16.mxu0 0
      %1109 = vmatpush1.bf16.msra.mxu0 0
      %1110 = vmatprep.subr.bf16.mxu0 0
      %1111 = vmatpush1.bf16.msra.mxu0 0
      %1112 = vmatprep.subr.bf16.mxu0 0
      %1113 = vmatpush1.bf16.msra.mxu0 0
      %1114 = vmatprep.subr.bf16.mxu0 0
      %1115 = vmatpush1.bf16.msra.mxu0 0
      %1116 = vmatprep.subr.bf16.mxu0 0
      %1117 = vmatpush1.bf16.msra.mxu0 0
      %1118 = vmatprep.subr.bf16.mxu0 0
      %1119 = vmatpush1.bf16.msra.mxu0 0
      %1120 = vmatprep.subr.bf16.mxu0 0
      %1121 = vmatpush1.bf16.msra.mxu0 0
      %1122 = vmatprep.subr.bf16.mxu0 0
      %1123 = vmatpush1.bf16.msra.mxu0 0
      %1124 = vmatprep.subr.bf16.mxu0 0
      %1125 = vmatpush1.bf16.msra.mxu0 0
      %1126 = vmatprep.mubr.bf16.mxu0 0
      %1127 = vmatmul.mubr.bf16.gmra.mrb[0].mxu0 %v1062
      %v1128 = vpop.f32.mrb[0].mxu0
      %v1129 = vadd.f32 0.0, %v1128
      %v1130 = vpop.f32.mrb[0].mxu0
      %v1131 = vpop.f32.mrb[0].mxu0
      %v1132 = vadd.f32 0.0, %v1131
      %v1133 = vpop.f32.mrb[0].mxu0
      %1134 = vmatprep.mubr.bf16.mxu0 0
      %1135 = vmatmul.mubr.bf16.gmra.mrb[0].mxu0 %v1065
      %v1136 = vpop.f32.mrb[0].mxu0
      %v1137 = vadd.f32 0.0, %v1136
      %v1138 = vpop.f32.mrb[0].mxu0
      %v1139 = vpop.f32.mrb[0].mxu0
      %v1140 = vadd.f32 0.0, %v1139
      %v1141 = vpop.f32.mrb[0].mxu0
      %1142 = vmatprep.mubr.bf16.mxu0 0
      %1143 = vmatmul.mubr.bf16.gmra.mrb[0].mxu0 %v1068
      %v1144 = vpop.f32.mrb[0].mxu0
      %v1145 = vadd.f32 0.0, %v1144
      %v1146 = vpop.f32.mrb[0].mxu0
      %v1147 = vpop.f32.mrb[0].mxu0
      %v1148 = vadd.f32 0.0, %v1147
      %v1149 = vpop.f32.mrb[0].mxu0
      %1150 = vmatprep.mubr.bf16.mxu0 0
      %1151 = vmatmul.mubr.bf16.gmra.mrb[0].mxu0 %v1071
      %v1152 = vpop.f32.mrb[0].mxu0
      %v1153 = vadd.f32 0.0, %v1152
      %v1154 = vpop.f32.mrb[0].mxu0
      %v1155 = vpop.f32.mrb[0].mxu0
      %v1156 = vadd.f32 0.0, %v1155
      %v1157 = vpop.f32.mrb[0].mxu0
      %1158 = vmatprep.mubr.bf16.mxu0 0
      %1159 = vmatmul.mubr.bf16.gmra.mrb[0].mxu0 %v1074
      %v1160 = vpop.f32.mrb[0].mxu0
      %v1161 = vadd.f32 0.0, %v1160
      %v1162 = vpop.f32.mrb[0].mxu0
      %v1163 = vpop.f32.mrb[0].mxu0
      %v1164 = vadd.f32 0.0, %v1163
      %v1165 = vpop.f32.mrb[0].mxu0
      %1166 = vmatprep.mubr.bf16.mxu0 0
      %1167 = vmatmul.mubr.bf16.gmra.mrb[0].mxu0 %v1077
      %v1168 = vpop.f32.mrb[0].mxu0
      %v1169 = vadd.f32 0.0, %v1168
      %v1170 = vpop.f32.mrb[0].mxu0
      %v1171 = vpop.f32.mrb[0].mxu0
      %v1172 = vadd.f32 0.0, %v1171
      %v1173 = vpop.f32.mrb[0].mxu0
      %1174 = vmatprep.mubr.bf16.mxu0 0
      %1175 = vmatmul.mubr.bf16.gmra.mrb[0].mxu0 %v1080
      %v1176 = vpop.f32.mrb[0].mxu0
      %v1177 = vadd.f32 0.0, %v1176
      %v1178 = vpop.f32.mrb[0].mxu0
      %v1179 = vpop.f32.mrb[0].mxu0
      %v1180 = vadd.f32 0.0, %v1179
      %v1181 = vpop.f32.mrb[0].mxu0
      %1182 = vmatprep.mubr.bf16.mxu0 0
      %1183 = vmatmul.mubr.bf16.gmra.mrb[0].mxu0 %v1083
      %v1184 = vpop.f32.mrb[0].mxu0
      %v1185 = vadd.f32 0.0, %v1184
      %v1186 = vpop.f32.mrb[0].mxu0
      %v1187 = vpop.f32.mrb[0].mxu0
      %v1188 = vadd.f32 0.0, %v1187
      %v1189 = vpop.f32.mrb[0].mxu0
      %1190 = vmatprep.mubr.bf16.mxu0 0
      %1191 = vmatmul.mubr.bf16.gmra.mrb[0].mxu0 %v1086
      %v1192 = vpop.f32.mrb[0].mxu0
      %v1193 = vadd.f32 0.0, %v1192
      %v1194 = vpop.f32.mrb[0].mxu0
      %v1195 = vpop.f32.mrb[0].mxu0
      %v1196 = vadd.f32 0.0, %v1195
      %v1197 = vpop.f32.mrb[0].mxu0
      %1198 = vmatprep.mubr.bf16.mxu0 0
      %1199 = vmatmul.mubr.bf16.gmra.mrb[0].mxu0 %v1089
      %v1200 = vpop.f32.mrb[0].mxu0
      %v1201 = vadd.f32 0.0, %v1200
      %v1202 = vpop.f32.mrb[0].mxu0
      %v1203 = vpop.f32.mrb[0].mxu0
      %v1204 = vadd.f32 0.0, %v1203
      %v1205 = vpop.f32.mrb[0].mxu0
      %1206 = vdwg.mxu0
      %v1207 = vadd.f32 %v900, %v1129
      %v1208 = vadd.f32 %v903, %v1132
      %v1209 = vadd.f32 %v908, %v1137
      %v1210 = vadd.f32 %v911, %v1140
      %v1211 = vadd.f32 %v916, %v1145
      %v1212 = vadd.f32 %v919, %v1148
      %v1213 = vadd.f32 %v924, %v1153
      %v1214 = vadd.f32 %v927, %v1156
      %v1215 = vadd.f32 %v932, %v1161
      %v1216 = vadd.f32 %v935, %v1164
      %v1217 = vadd.f32 %v940, %v1169
      %v1218 = vadd.f32 %v943, %v1172
      %v1219 = vadd.f32 %v948, %v1177
      %v1220 = vadd.f32 %v951, %v1180
      %v1221 = vadd.f32 %v956, %v1185
      %v1222 = vadd.f32 %v959, %v1188
      %v1223 = vadd.f32 %v964, %v1193
      %v1224 = vadd.f32 %v967, %v1196
      %v1225 = vadd.f32 %v972, %v1201
      %v1226 = vadd.f32 %v975, %v1204
      %v1227 = vpack.c.bf16 %v556, %v555
      %s1228 = scalar_lea.vmem %s3, 6
      %v1229 = vld [vmem:[%s1228] sm:$0x3]
      %v1231 = vsel %vm466, %v1227, 0
      %v1234 = vsel %vm715, %v1229, 0
      %1236 = vmatprep.subr.bf16.mxu0 0
      %1237 = vmatpush1.bf16.msra.mxu0 %v1234
      %1238 = vmatprep.subr.bf16.mxu0 0
      %1239 = vmatpush1.bf16.msra.mxu0 0
      %1240 = vmatprep.subr.bf16.mxu0 0
      %1241 = vmatpush1.bf16.msra.mxu0 0
      %1242 = vmatprep.subr.bf16.mxu0 0
      %1243 = vmatpush1.bf16.msra.mxu0 0
      %1244 = vmatprep.subr.bf16.mxu0 0
      %1245 = vmatpush1.bf16.msra.mxu0 0
      %1246 = vmatprep.subr.bf16.mxu0 0
      %1247 = vmatpush1.bf16.msra.mxu0 0
      %1248 = vmatprep.subr.bf16.mxu0 0
      %1249 = vmatpush1.bf16.msra.mxu0 0
      %1250 = vmatprep.subr.bf16.mxu0 0
      %1251 = vmatpush1.bf16.msra.mxu0 0
      %1252 = vmatprep.subr.bf16.mxu0 0
      %1253 = vmatpush1.bf16.msra.mxu0 0
      %1254 = vmatprep.subr.bf16.mxu0 0
      %1255 = vmatpush1.bf16.msra.mxu0 0
      %1256 = vmatprep.subr.bf16.mxu0 0
      %1257 = vmatpush1.bf16.msra.mxu0 0
      %1258 = vmatprep.subr.bf16.mxu0 0
      %1259 = vmatpush1.bf16.msra.mxu0 0
      %1260 = vmatprep.subr.bf16.mxu0 0
      %1261 = vmatpush1.bf16.msra.mxu0 0
      %1262 = vmatprep.subr.bf16.mxu0 0
      %1263 = vmatpush1.bf16.msra.mxu0 0
      %1264 = vmatprep.subr.bf16.mxu0 0
      %1265 = vmatpush1.bf16.msra.mxu0 0
      %1266 = vmatprep.subr.bf16.mxu0 0
      %1267 = vmatpush1.bf16.msra.mxu0 0
      %1268 = vmatprep.mubr.bf16.mxu0 0
      %1269 = vmatmul.mubr.bf16.gmra.mrb[0].mxu0 %v836
      %v1270 = vpop.f32.mrb[0].mxu0
      %v1271 = vadd.f32 0.0, %v1270
      %v1272 = vpop.f32.mrb[0].mxu0
      %v1273 = vpop.f32.mrb[0].mxu0
      %v1274 = vadd.f32 0.0, %v1273
      %v1275 = vpop.f32.mrb[0].mxu0
      %1276 = vmatprep.mubr.bf16.mxu0 0
      %1277 = vmatmul.mubr.bf16.gmra.mrb[0].mxu0 %v839
      %v1278 = vpop.f32.mrb[0].mxu0
      %v1279 = vadd.f32 0.0, %v1278
      %v1280 = vpop.f32.mrb[0].mxu0
      %v1281 = vpop.f32.mrb[0].mxu0
      %v1282 = vadd.f32 0.0, %v1281
      %v1283 = vpop.f32.mrb[0].mxu0
      %1284 = vmatprep.mubr.bf16.mxu0 0
      %1285 = vmatmul.mubr.bf16.gmra.mrb[0].mxu0 %v842
      %v1286 = vpop.f32.mrb[0].mxu0
      %v1287 = vadd.f32 0.0, %v1286
      %v1288 = vpop.f32.mrb[0].mxu0
      %v1289 = vpop.f32.mrb[0].mxu0
      %v1290 = vadd.f32 0.0, %v1289
      %v1291 = vpop.f32.mrb[0].mxu0
      %1292 = vmatprep.mubr.bf16.mxu0 0
      %1293 = vmatmul.mubr.bf16.gmra.mrb[0].mxu0 %v845
      %v1294 = vpop.f32.mrb[0].mxu0
      %v1295 = vadd.f32 0.0, %v1294
      %v1296 = vpop.f32.mrb[0].mxu0
      %v1297 = vpop.f32.mrb[0].mxu0
      %v1298 = vadd.f32 0.0, %v1297
      %v1299 = vpop.f32.mrb[0].mxu0
      %1300 = vmatprep.mubr.bf16.mxu0 0
      %1301 = vmatmul.mubr.bf16.gmra.mrb[0].mxu0 %v848
      %v1302 = vpop.f32.mrb[0].mxu0
      %v1303 = vadd.f32 0.0, %v1302
      %v1304 = vpop.f32.mrb[0].mxu0
      %v1305 = vpop.f32.mrb[0].mxu0
      %v1306 = vadd.f32 0.0, %v1305
      %v1307 = vpop.f32.mrb[0].mxu0
      %1308 = vmatprep.mubr.bf16.mxu0 0
      %1309 = vmatmul.mubr.bf16.gmra.mrb[0].mxu0 %v851
      %v1310 = vpop.f32.mrb[0].mxu0
      %v1311 = vadd.f32 0.0, %v1310
      %v1312 = vpop.f32.mrb[0].mxu0
      %v1313 = vpop.f32.mrb[0].mxu0
      %v1314 = vadd.f32 0.0, %v1313
      %v1315 = vpop.f32.mrb[0].mxu0
      %1316 = vmatprep.mubr.bf16.mxu0 0
      %1317 = vmatmul.mubr.bf16.gmra.mrb[0].mxu0 %v854
      %v1318 = vpop.f32.mrb[0].mxu0
      %v1319 = vadd.f32 0.0, %v1318
      %v1320 = vpop.f32.mrb[0].mxu0
      %v1321 = vpop.f32.mrb[0].mxu0
      %v1322 = vadd.f32 0.0, %v1321
      %v1323 = vpop.f32.mrb[0].mxu0
      %1324 = vmatprep.mubr.bf16.mxu0 0
      %1325 = vmatmul.mubr.bf16.gmra.mrb[0].mxu0 %v857
      %v1326 = vpop.f32.mrb[0].mxu0
      %v1327 = vadd.f32 0.0, %v1326
      %v1328 = vpop.f32.mrb[0].mxu0
      %v1329 = vpop.f32.mrb[0].mxu0
      %v1330 = vadd.f32 0.0, %v1329
      %v1331 = vpop.f32.mrb[0].mxu0
      %1332 = vmatprep.mubr.bf16.mxu0 0
      %1333 = vmatmul.mubr.bf16.gmra.mrb[0].mxu0 %v860
      %v1334 = vpop.f32.mrb[0].mxu0
      %v1335 = vadd.f32 0.0, %v1334
      %v1336 = vpop.f32.mrb[0].mxu0
      %v1337 = vpop.f32.mrb[0].mxu0
      %v1338 = vadd.f32 0.0, %v1337
      %v1339 = vpop.f32.mrb[0].mxu0
      %1340 = vmatprep.mubr.bf16.mxu0 0
      %1341 = vmatmul.mubr.bf16.gmra.mrb[0].mxu0 %v1231
      %v1342 = vpop.f32.mrb[0].mxu0
      %v1343 = vadd.f32 0.0, %v1342
      %v1344 = vpop.f32.mrb[0].mxu0
      %v1345 = vpop.f32.mrb[0].mxu0
      %v1346 = vadd.f32 0.0, %v1345
      %v1347 = vpop.f32.mrb[0].mxu0
      %1348 = vdwg.mxu0
      %v1349 = vadd.f32 %v1207, %v1271
      %v1350 = vadd.f32 %v1208, %v1274
      %v1351 = vadd.f32 %v1209, %v1279
      %v1352 = vadd.f32 %v1210, %v1282
      %v1353 = vadd.f32 %v1211, %v1287
      %v1354 = vadd.f32 %v1212, %v1290
      %v1355 = vadd.f32 %v1213, %v1295
      %v1356 = vadd.f32 %v1214, %v1298
      %v1357 = vadd.f32 %v1215, %v1303
      %v1358 = vadd.f32 %v1216, %v1306
      %v1359 = vadd.f32 %v1217, %v1311
      %v1360 = vadd.f32 %v1218, %v1314
      %v1361 = vadd.f32 %v1219, %v1319
      %v1362 = vadd.f32 %v1220, %v1322
      %v1363 = vadd.f32 %v1221, %v1327
      %v1364 = vadd.f32 %v1222, %v1330
      %v1365 = vadd.f32 %v1223, %v1335
      %v1366 = vadd.f32 %v1224, %v1338
      %v1367 = vadd.f32 %v1225, %v1343
      %v1368 = vadd.f32 %v1226, %v1346
      %v1372 = vrot.slane %v555, 1
      %v1373 = vrot.slane %v556, 1
      %v1374 = vsel %vm602, %v1372, %v1373
      %v1375 = vrot.slane %v557, 1
      %v1376 = vsel %vm602, %v1373, %v1375
      %v1379 = vpack.c.bf16 %v1376, %v1374
      %s1380 = scalar_lea.vmem %s3, 8
      %v1381 = vld [vmem:[%s1380] sm:$0x3]
      %v1383 = vsel %vm466, %v1379, 0
      %v1386 = vsel %vm715, %v1381, 0
      %1388 = vmatprep.subr.bf16.mxu0 0
      %1389 = vmatpush1.bf16.msra.mxu0 %v1386
      %1390 = vmatprep.subr.bf16.mxu0 0
      %1391 = vmatpush1.bf16.msra.mxu0 0
      %1392 = vmatprep.subr.bf16.mxu0 0
      %1393 = vmatpush1.bf16.msra.mxu0 0
      %1394 = vmatprep.subr.bf16.mxu0 0
      %1395 = vmatpush1.bf16.msra.mxu0 0
      %1396 = vmatprep.subr.bf16.mxu0 0
      %1397 = vmatpush1.bf16.msra.mxu0 0
      %1398 = vmatprep.subr.bf16.mxu0 0
      %1399 = vmatpush1.bf16.msra.mxu0 0
      %1400 = vmatprep.subr.bf16.mxu0 0
      %1401 = vmatpush1.bf16.msra.mxu0 0
      %1402 = vmatprep.subr.bf16.mxu0 0
      %1403 = vmatpush1.bf16.msra.mxu0 0
      %1404 = vmatprep.subr.bf16.mxu0 0
      %1405 = vmatpush1.bf16.msra.mxu0 0
      %1406 = vmatprep.subr.bf16.mxu0 0
      %1407 = vmatpush1.bf16.msra.mxu0 0
      %1408 = vmatprep.subr.bf16.mxu0 0
      %1409 = vmatpush1.bf16.msra.mxu0 0
      %1410 = vmatprep.subr.bf16.mxu0 0
      %1411 = vmatpush1.bf16.msra.mxu0 0
      %1412 = vmatprep.subr.bf16.mxu0 0
      %1413 = vmatpush1.bf16.msra.mxu0 0
      %1414 = vmatprep.subr.bf16.mxu0 0
      %1415 = vmatpush1.bf16.msra.mxu0 0
      %1416 = vmatprep.subr.bf16.mxu0 0
      %1417 = vmatpush1.bf16.msra.mxu0 0
      %1418 = vmatprep.subr.bf16.mxu0 0
      %1419 = vmatpush1.bf16.msra.mxu0 0
      %1420 = vmatprep.mubr.bf16.mxu0 0
      %1421 = vmatmul.mubr.bf16.gmra.mrb[0].mxu0 %v689
      %v1422 = vpop.f32.mrb[0].mxu0
      %v1423 = vadd.f32 0.0, %v1422
      %v1424 = vpop.f32.mrb[0].mxu0
      %v1425 = vpop.f32.mrb[0].mxu0
      %v1426 = vadd.f32 0.0, %v1425
      %v1427 = vpop.f32.mrb[0].mxu0
      %1428 = vmatprep.mubr.bf16.mxu0 0
      %1429 = vmatmul.mubr.bf16.gmra.mrb[0].mxu0 %v692
      %v1430 = vpop.f32.mrb[0].mxu0
      %v1431 = vadd.f32 0.0, %v1430
      %v1432 = vpop.f32.mrb[0].mxu0
      %v1433 = vpop.f32.mrb[0].mxu0
      %v1434 = vadd.f32 0.0, %v1433
      %v1435 = vpop.f32.mrb[0].mxu0
      %1436 = vmatprep.mubr.bf16.mxu0 0
      %1437 = vmatmul.mubr.bf16.gmra.mrb[0].mxu0 %v695
      %v1438 = vpop.f32.mrb[0].mxu0
      %v1439 = vadd.f32 0.0, %v1438
      %v1440 = vpop.f32.mrb[0].mxu0
      %v1441 = vpop.f32.mrb[0].mxu0
      %v1442 = vadd.f32 0.0, %v1441
      %v1443 = vpop.f32.mrb[0].mxu0
      %1444 = vmatprep.mubr.bf16.mxu0 0
      %1445 = vmatmul.mubr.bf16.gmra.mrb[0].mxu0 %v698
      %v1446 = vpop.f32.mrb[0].mxu0
      %v1447 = vadd.f32 0.0, %v1446
      %v1448 = vpop.f32.mrb[0].mxu0
      %v1449 = vpop.f32.mrb[0].mxu0
      %v1450 = vadd.f32 0.0, %v1449
      %v1451 = vpop.f32.mrb[0].mxu0
      %1452 = vmatprep.mubr.bf16.mxu0 0
      %1453 = vmatmul.mubr.bf16.gmra.mrb[0].mxu0 %v701
      %v1454 = vpop.f32.mrb[0].mxu0
      %v1455 = vadd.f32 0.0, %v1454
      %v1456 = vpop.f32.mrb[0].mxu0
      %v1457 = vpop.f32.mrb[0].mxu0
      %v1458 = vadd.f32 0.0, %v1457
      %v1459 = vpop.f32.mrb[0].mxu0
      %1460 = vmatprep.mubr.bf16.mxu0 0
      %1461 = vmatmul.mubr.bf16.gmra.mrb[0].mxu0 %v704
      %v1462 = vpop.f32.mrb[0].mxu0
      %v1463 = vadd.f32 0.0, %v1462
      %v1464 = vpop.f32.mrb[0].mxu0
      %v1465 = vpop.f32.mrb[0].mxu0
      %v1466 = vadd.f32 0.0, %v1465
      %v1467 = vpop.f32.mrb[0].mxu0
      %1468 = vmatprep.mubr.bf16.mxu0 0
      %1469 = vmatmul.mubr.bf16.gmra.mrb[0].mxu0 %v707
      %v1470 = vpop.f32.mrb[0].mxu0
      %v1471 = vadd.f32 0.0, %v1470
      %v1472 = vpop.f32.mrb[0].mxu0
      %v1473 = vpop.f32.mrb[0].mxu0
      %v1474 = vadd.f32 0.0, %v1473
      %v1475 = vpop.f32.mrb[0].mxu0
      %1476 = vmatprep.mubr.bf16.mxu0 0
      %1477 = vmatmul.mubr.bf16.gmra.mrb[0].mxu0 %v710
      %v1478 = vpop.f32.mrb[0].mxu0
      %v1479 = vadd.f32 0.0, %v1478
      %v1480 = vpop.f32.mrb[0].mxu0
      %v1481 = vpop.f32.mrb[0].mxu0
      %v1482 = vadd.f32 0.0, %v1481
      %v1483 = vpop.f32.mrb[0].mxu0
      %1484 = vmatprep.mubr.bf16.mxu0 0
      %1485 = vmatmul.mubr.bf16.gmra.mrb[0].mxu0 %v713
      %v1486 = vpop.f32.mrb[0].mxu0
      %v1487 = vadd.f32 0.0, %v1486
      %v1488 = vpop.f32.mrb[0].mxu0
      %v1489 = vpop.f32.mrb[0].mxu0
      %v1490 = vadd.f32 0.0, %v1489
      %v1491 = vpop.f32.mrb[0].mxu0
      %1492 = vmatprep.mubr.bf16.mxu0 0
      %1493 = vmatmul.mubr.bf16.gmra.mrb[0].mxu0 %v1383
      %v1494 = vpop.f32.mrb[0].mxu0
      %v1495 = vadd.f32 0.0, %v1494
      %v1496 = vpop.f32.mrb[0].mxu0
      %v1497 = vpop.f32.mrb[0].mxu0
      %v1498 = vadd.f32 0.0, %v1497
      %v1499 = vpop.f32.mrb[0].mxu0
      %1500 = vdwg.mxu0
      %v1501 = vadd.f32 %v1349, %v1423
      %v1502 = vadd.f32 %v1350, %v1426
      %v1503 = vadd.f32 %v1351, %v1431
      %v1504 = vadd.f32 %v1352, %v1434
      %v1505 = vadd.f32 %v1353, %v1439
      %v1506 = vadd.f32 %v1354, %v1442
      %v1507 = vadd.f32 %v1355, %v1447
      %v1508 = vadd.f32 %v1356, %v1450
      %v1509 = vadd.f32 %v1357, %v1455
      %v1510 = vadd.f32 %v1358, %v1458
      %v1511 = vadd.f32 %v1359, %v1463
      %v1512 = vadd.f32 %v1360, %v1466
      %v1513 = vadd.f32 %v1361, %v1471
      %v1514 = vadd.f32 %v1362, %v1474
      %v1515 = vadd.f32 %v1363, %v1479
      %v1516 = vadd.f32 %v1364, %v1482
      %v1517 = vadd.f32 %v1365, %v1487
      %v1518 = vadd.f32 %v1366, %v1490
      %v1519 = vadd.f32 %v1367, %v1495
      %v1520 = vadd.f32 %v1368, %v1498
      %v1521 = vrot.slane %v555, 2
      %v1522 = vrot.slane %v556, 2
      %v1523 = vsel %vm978, %v1521, %v1522
      %v1524 = vrot.slane %v557, 2
      %v1525 = vsel %vm978, %v1522, %v1524
      %v1528 = vpack.c.bf16 %v1525, %v1523
      %s1529 = scalar_lea.vmem %s3, 10
      %v1530 = vld [vmem:[%s1529] sm:$0x3]
      %v1532 = vsel %vm466, %v1528, 0
      %v1535 = vsel %vm715, %v1530, 0
      %1537 = vmatprep.subr.bf16.mxu0 0
      %1538 = vmatpush1.bf16.msra.mxu0 %v1535
      %1539 = vmatprep.subr.bf16.mxu0 0
      %1540 = vmatpush1.bf16.msra.mxu0 0
      %1541 = vmatprep.subr.bf16.mxu0 0
      %1542 = vmatpush1.bf16.msra.mxu0 0
      %1543 = vmatprep.subr.bf16.mxu0 0
      %1544 = vmatpush1.bf16.msra.mxu0 0
      %1545 = vmatprep.subr.bf16.mxu0 0
      %1546 = vmatpush1.bf16.msra.mxu0 0
      %1547 = vmatprep.subr.bf16.mxu0 0
      %1548 = vmatpush1.bf16.msra.mxu0 0
      %1549 = vmatprep.subr.bf16.mxu0 0
      %1550 = vmatpush1.bf16.msra.mxu0 0
      %1551 = vmatprep.subr.bf16.mxu0 0
      %1552 = vmatpush1.bf16.msra.mxu0 0
      %1553 = vmatprep.subr.bf16.mxu0 0
      %1554 = vmatpush1.bf16.msra.mxu0 0
      %1555 = vmatprep.subr.bf16.mxu0 0
      %1556 = vmatpush1.bf16.msra.mxu0 0
      %1557 = vmatprep.subr.bf16.mxu0 0
      %1558 = vmatpush1.bf16.msra.mxu0 0
      %1559 = vmatprep.subr.bf16.mxu0 0
      %1560 = vmatpush1.bf16.msra.mxu0 0
      %1561 = vmatprep.subr.bf16.mxu0 0
      %1562 = vmatpush1.bf16.msra.mxu0 0
      %1563 = vmatprep.subr.bf16.mxu0 0
      %1564 = vmatpush1.bf16.msra.mxu0 0
      %1565 = vmatprep.subr.bf16.mxu0 0
      %1566 = vmatpush1.bf16.msra.mxu0 0
      %1567 = vmatprep.subr.bf16.mxu0 0
      %1568 = vmatpush1.bf16.msra.mxu0 0
      %1569 = vmatprep.mubr.bf16.mxu0 0
      %1570 = vmatmul.mubr.bf16.gmra.mrb[0].mxu0 %v1065
      %v1571 = vpop.f32.mrb[0].mxu0
      %v1572 = vadd.f32 0.0, %v1571
      %v1573 = vpop.f32.mrb[0].mxu0
      %v1574 = vpop.f32.mrb[0].mxu0
      %v1575 = vadd.f32 0.0, %v1574
      %v1576 = vpop.f32.mrb[0].mxu0
      %1577 = vmatprep.mubr.bf16.mxu0 0
      %1578 = vmatmul.mubr.bf16.gmra.mrb[0].mxu0 %v1068
      %v1579 = vpop.f32.mrb[0].mxu0
      %v1580 = vadd.f32 0.0, %v1579
      %v1581 = vpop.f32.mrb[0].mxu0
      %v1582 = vpop.f32.mrb[0].mxu0
      %v1583 = vadd.f32 0.0, %v1582
      %v1584 = vpop.f32.mrb[0].mxu0
      %1585 = vmatprep.mubr.bf16.mxu0 0
      %1586 = vmatmul.mubr.bf16.gmra.mrb[0].mxu0 %v1071
      %v1587 = vpop.f32.mrb[0].mxu0
      %v1588 = vadd.f32 0.0, %v1587
      %v1589 = vpop.f32.mrb[0].mxu0
      %v1590 = vpop.f32.mrb[0].mxu0
      %v1591 = vadd.f32 0.0, %v1590
      %v1592 = vpop.f32.mrb[0].mxu0
      %1593 = vmatprep.mubr.bf16.mxu0 0
      %1594 = vmatmul.mubr.bf16.gmra.mrb[0].mxu0 %v1074
      %v1595 = vpop.f32.mrb[0].mxu0
      %v1596 = vadd.f32 0.0, %v1595
      %v1597 = vpop.f32.mrb[0].mxu0
      %v1598 = vpop.f32.mrb[0].mxu0
      %v1599 = vadd.f32 0.0, %v1598
      %v1600 = vpop.f32.mrb[0].mxu0
      %1601 = vmatprep.mubr.bf16.mxu0 0
      %1602 = vmatmul.mubr.bf16.gmra.mrb[0].mxu0 %v1077
      %v1603 = vpop.f32.mrb[0].mxu0
      %v1604 = vadd.f32 0.0, %v1603
      %v1605 = vpop.f32.mrb[0].mxu0
      %v1606 = vpop.f32.mrb[0].mxu0
      %v1607 = vadd.f32 0.0, %v1606
      %v1608 = vpop.f32.mrb[0].mxu0
      %1609 = vmatprep.mubr.bf16.mxu0 0
      %1610 = vmatmul.mubr.bf16.gmra.mrb[0].mxu0 %v1080
      %v1611 = vpop.f32.mrb[0].mxu0
      %v1612 = vadd.f32 0.0, %v1611
      %v1613 = vpop.f32.mrb[0].mxu0
      %v1614 = vpop.f32.mrb[0].mxu0
      %v1615 = vadd.f32 0.0, %v1614
      %v1616 = vpop.f32.mrb[0].mxu0
      %1617 = vmatprep.mubr.bf16.mxu0 0
      %1618 = vmatmul.mubr.bf16.gmra.mrb[0].mxu0 %v1083
      %v1619 = vpop.f32.mrb[0].mxu0
      %v1620 = vadd.f32 0.0, %v1619
      %v1621 = vpop.f32.mrb[0].mxu0
      %v1622 = vpop.f32.mrb[0].mxu0
      %v1623 = vadd.f32 0.0, %v1622
      %v1624 = vpop.f32.mrb[0].mxu0
      %1625 = vmatprep.mubr.bf16.mxu0 0
      %1626 = vmatmul.mubr.bf16.gmra.mrb[0].mxu0 %v1086
      %v1627 = vpop.f32.mrb[0].mxu0
      %v1628 = vadd.f32 0.0, %v1627
      %v1629 = vpop.f32.mrb[0].mxu0
      %v1630 = vpop.f32.mrb[0].mxu0
      %v1631 = vadd.f32 0.0, %v1630
      %v1632 = vpop.f32.mrb[0].mxu0
      %1633 = vmatprep.mubr.bf16.mxu0 0
      %1634 = vmatmul.mubr.bf16.gmra.mrb[0].mxu0 %v1089
      %v1635 = vpop.f32.mrb[0].mxu0
      %v1636 = vadd.f32 0.0, %v1635
      %v1637 = vpop.f32.mrb[0].mxu0
      %v1638 = vpop.f32.mrb[0].mxu0
      %v1639 = vadd.f32 0.0, %v1638
      %v1640 = vpop.f32.mrb[0].mxu0
      %1641 = vmatprep.mubr.bf16.mxu0 0
      %1642 = vmatmul.mubr.bf16.gmra.mrb[0].mxu0 %v1532
      %v1643 = vpop.f32.mrb[0].mxu0
      %v1644 = vadd.f32 0.0, %v1643
      %v1645 = vpop.f32.mrb[0].mxu0
      %v1646 = vpop.f32.mrb[0].mxu0
      %v1647 = vadd.f32 0.0, %v1646
      %v1648 = vpop.f32.mrb[0].mxu0
      %1649 = vdwg.mxu0
      %v1650 = vadd.f32 %v1501, %v1572
      %v1651 = vadd.f32 %v1502, %v1575
      %v1652 = vadd.f32 %v1503, %v1580
      %v1653 = vadd.f32 %v1504, %v1583
      %v1654 = vadd.f32 %v1505, %v1588
      %v1655 = vadd.f32 %v1506, %v1591
      %v1656 = vadd.f32 %v1507, %v1596
      %v1657 = vadd.f32 %v1508, %v1599
      %v1658 = vadd.f32 %v1509, %v1604
      %v1659 = vadd.f32 %v1510, %v1607
      %v1660 = vadd.f32 %v1511, %v1612
      %v1661 = vadd.f32 %v1512, %v1615
      %v1662 = vadd.f32 %v1513, %v1620
      %v1663 = vadd.f32 %v1514, %v1623
      %v1664 = vadd.f32 %v1515, %v1628
      %v1665 = vadd.f32 %v1516, %v1631
      %v1666 = vadd.f32 %v1517, %v1636
      %v1667 = vadd.f32 %v1518, %v1639
      %v1668 = vadd.f32 %v1519, %v1644
      %v1669 = vadd.f32 %v1520, %v1647
      %v1670 = vpack.c.bf16 %v559, %v558
      %s1671 = scalar_lea.vmem %s3, 12
      %v1672 = vld [vmem:[%s1671] sm:$0x3]
      %v1674 = vsel %vm466, %v1670, 0
      %v1677 = vsel %vm715, %v1672, 0
      %1679 = vmatprep.subr.bf16.mxu0 0
      %1680 = vmatpush1.bf16.msra.mxu0 %v1677
      %1681 = vmatprep.subr.bf16.mxu0 0
      %1682 = vmatpush1.bf16.msra.mxu0 0
      %1683 = vmatprep.subr.bf16.mxu0 0
      %1684 = vmatpush1.bf16.msra.mxu0 0
      %1685 = vmatprep.subr.bf16.mxu0 0
      %1686 = vmatpush1.bf16.msra.mxu0 0
      %1687 = vmatprep.subr.bf16.mxu0 0
      %1688 = vmatpush1.bf16.msra.mxu0 0
      %1689 = vmatprep.subr.bf16.mxu0 0
      %1690 = vmatpush1.bf16.msra.mxu0 0
      %1691 = vmatprep.subr.bf16.mxu0 0
      %1692 = vmatpush1.bf16.msra.mxu0 0
      %1693 = vmatprep.subr.bf16.mxu0 0
      %1694 = vmatpush1.bf16.msra.mxu0 0
      %1695 = vmatprep.subr.bf16.mxu0 0
      %1696 = vmatpush1.bf16.msra.mxu0 0
      %1697 = vmatprep.subr.bf16.mxu0 0
      %1698 = vmatpush1.bf16.msra.mxu0 0
      %1699 = vmatprep.subr.bf16.mxu0 0
      %1700 = vmatpush1.bf16.msra.mxu0 0
      %1701 = vmatprep.subr.bf16.mxu0 0
      %1702 = vmatpush1.bf16.msra.mxu0 0
      %1703 = vmatprep.subr.bf16.mxu0 0
      %1704 = vmatpush1.bf16.msra.mxu0 0
      %1705 = vmatprep.subr.bf16.mxu0 0
      %1706 = vmatpush1.bf16.msra.mxu0 0
      %1707 = vmatprep.subr.bf16.mxu0 0
      %1708 = vmatpush1.bf16.msra.mxu0 0
      %1709 = vmatprep.subr.bf16.mxu0 0
      %1710 = vmatpush1.bf16.msra.mxu0 0
      %1711 = vmatprep.mubr.bf16.mxu0 0
      %1712 = vmatmul.mubr.bf16.gmra.mrb[0].mxu0 %v839
      %v1713 = vpop.f32.mrb[0].mxu0
      %v1714 = vadd.f32 0.0, %v1713
      %v1715 = vpop.f32.mrb[0].mxu0
      %v1716 = vpop.f32.mrb[0].mxu0
      %v1717 = vadd.f32 0.0, %v1716
      %v1718 = vpop.f32.mrb[0].mxu0
      %1719 = vmatprep.mubr.bf16.mxu0 0
      %1720 = vmatmul.mubr.bf16.gmra.mrb[0].mxu0 %v842
      %v1721 = vpop.f32.mrb[0].mxu0
      %v1722 = vadd.f32 0.0, %v1721
      %v1723 = vpop.f32.mrb[0].mxu0
      %v1724 = vpop.f32.mrb[0].mxu0
      %v1725 = vadd.f32 0.0, %v1724
      %v1726 = vpop.f32.mrb[0].mxu0
      %1727 = vmatprep.mubr.bf16.mxu0 0
      %1728 = vmatmul.mubr.bf16.gmra.mrb[0].mxu0 %v845
      %v1729 = vpop.f32.mrb[0].mxu0
      %v1730 = vadd.f32 0.0, %v1729
      %v1731 = vpop.f32.mrb[0].mxu0
      %v1732 = vpop.f32.mrb[0].mxu0
      %v1733 = vadd.f32 0.0, %v1732
      %v1734 = vpop.f32.mrb[0].mxu0
      %1735 = vmatprep.mubr.bf16.mxu0 0
      %1736 = vmatmul.mubr.bf16.gmra.mrb[0].mxu0 %v848
      %v1737 = vpop.f32.mrb[0].mxu0
      %v1738 = vadd.f32 0.0, %v1737
      %v1739 = vpop.f32.mrb[0].mxu0
      %v1740 = vpop.f32.mrb[0].mxu0
      %v1741 = vadd.f32 0.0, %v1740
      %v1742 = vpop.f32.mrb[0].mxu0
      %1743 = vmatprep.mubr.bf16.mxu0 0
      %1744 = vmatmul.mubr.bf16.gmra.mrb[0].mxu0 %v851
      %v1745 = vpop.f32.mrb[0].mxu0
      %v1746 = vadd.f32 0.0, %v1745
      %v1747 = vpop.f32.mrb[0].mxu0
      %v1748 = vpop.f32.mrb[0].mxu0
      %v1749 = vadd.f32 0.0, %v1748
      %v1750 = vpop.f32.mrb[0].mxu0
      %1751 = vmatprep.mubr.bf16.mxu0 0
      %1752 = vmatmul.mubr.bf16.gmra.mrb[0].mxu0 %v854
      %v1753 = vpop.f32.mrb[0].mxu0
      %v1754 = vadd.f32 0.0, %v1753
      %v1755 = vpop.f32.mrb[0].mxu0
      %v1756 = vpop.f32.mrb[0].mxu0
      %v1757 = vadd.f32 0.0, %v1756
      %v1758 = vpop.f32.mrb[0].mxu0
      %1759 = vmatprep.mubr.bf16.mxu0 0
      %1760 = vmatmul.mubr.bf16.gmra.mrb[0].mxu0 %v857
      %v1761 = vpop.f32.mrb[0].mxu0
      %v1762 = vadd.f32 0.0, %v1761
      %v1763 = vpop.f32.mrb[0].mxu0
      %v1764 = vpop.f32.mrb[0].mxu0
      %v1765 = vadd.f32 0.0, %v1764
      %v1766 = vpop.f32.mrb[0].mxu0
      %1767 = vmatprep.mubr.bf16.mxu0 0
      %1768 = vmatmul.mubr.bf16.gmra.mrb[0].mxu0 %v860
      %v1769 = vpop.f32.mrb[0].mxu0
      %v1770 = vadd.f32 0.0, %v1769
      %v1771 = vpop.f32.mrb[0].mxu0
      %v1772 = vpop.f32.mrb[0].mxu0
      %v1773 = vadd.f32 0.0, %v1772
      %v1774 = vpop.f32.mrb[0].mxu0
      %1775 = vmatprep.mubr.bf16.mxu0 0
      %1776 = vmatmul.mubr.bf16.gmra.mrb[0].mxu0 %v1231
      %v1777 = vpop.f32.mrb[0].mxu0
      %v1778 = vadd.f32 0.0, %v1777
      %v1779 = vpop.f32.mrb[0].mxu0
      %v1780 = vpop.f32.mrb[0].mxu0
      %v1781 = vadd.f32 0.0, %v1780
      %v1782 = vpop.f32.mrb[0].mxu0
      %1783 = vmatprep.mubr.bf16.mxu0 0
      %1784 = vmatmul.mubr.bf16.gmra.mrb[0].mxu0 %v1674
      %v1785 = vpop.f32.mrb[0].mxu0
      %v1786 = vadd.f32 0.0, %v1785
      %v1787 = vpop.f32.mrb[0].mxu0
      %v1788 = vpop.f32.mrb[0].mxu0
      %v1789 = vadd.f32 0.0, %v1788
      %v1790 = vpop.f32.mrb[0].mxu0
      %1791 = vdwg.mxu0
      %v1792 = vadd.f32 %v1650, %v1714
      %v1793 = vadd.f32 %v1651, %v1717
      %v1794 = vadd.f32 %v1652, %v1722
      %v1795 = vadd.f32 %v1653, %v1725
      %v1796 = vadd.f32 %v1654, %v1730
      %v1797 = vadd.f32 %v1655, %v1733
      %v1798 = vadd.f32 %v1656, %v1738
      %v1799 = vadd.f32 %v1657, %v1741
      %v1800 = vadd.f32 %v1658, %v1746
      %v1801 = vadd.f32 %v1659, %v1749
      %v1802 = vadd.f32 %v1660, %v1754
      %v1803 = vadd.f32 %v1661, %v1757
      %v1804 = vadd.f32 %v1662, %v1762
      %v1805 = vadd.f32 %v1663, %v1765
      %v1806 = vadd.f32 %v1664, %v1770
      %v1807 = vadd.f32 %v1665, %v1773
      %v1808 = vadd.f32 %v1666, %v1778
      %v1809 = vadd.f32 %v1667, %v1781
      %v1810 = vadd.f32 %v1668, %v1786
      %v1811 = vadd.f32 %v1669, %v1789
      %v1815 = vrot.slane %v558, 1
      %v1816 = vrot.slane %v559, 1
      %v1817 = vsel %vm602, %v1815, %v1816
      %v1818 = vrot.slane %v560, 1
      %v1819 = vsel %vm602, %v1816, %v1818
      %v1822 = vpack.c.bf16 %v1819, %v1817
      %s1823 = scalar_lea.vmem %s3, 14
      %v1824 = vld [vmem:[%s1823] sm:$0x3]
      %v1826 = vsel %vm466, %v1822, 0
      %v1829 = vsel %vm715, %v1824, 0
      %1831 = vmatprep.subr.bf16.mxu0 0
      %1832 = vmatpush1.bf16.msra.mxu0 %v1829
      %1833 = vmatprep.subr.bf16.mxu0 0
      %1834 = vmatpush1.bf16.msra.mxu0 0
      %1835 = vmatprep.subr.bf16.mxu0 0
      %1836 = vmatpush1.bf16.msra.mxu0 0
      %1837 = vmatprep.subr.bf16.mxu0 0
      %1838 = vmatpush1.bf16.msra.mxu0 0
      %1839 = vmatprep.subr.bf16.mxu0 0
      %1840 = vmatpush1.bf16.msra.mxu0 0
      %1841 = vmatprep.subr.bf16.mxu0 0
      %1842 = vmatpush1.bf16.msra.mxu0 0
      %1843 = vmatprep.subr.bf16.mxu0 0
      %1844 = vmatpush1.bf16.msra.mxu0 0
      %1845 = vmatprep.subr.bf16.mxu0 0
      %1846 = vmatpush1.bf16.msra.mxu0 0
      %1847 = vmatprep.subr.bf16.mxu0 0
      %1848 = vmatpush1.bf16.msra.mxu0 0
      %1849 = vmatprep.subr.bf16.mxu0 0
      %1850 = vmatpush1.bf16.msra.mxu0 0
      %1851 = vmatprep.subr.bf16.mxu0 0
      %1852 = vmatpush1.bf16.msra.mxu0 0
      %1853 = vmatprep.subr.bf16.mxu0 0
      %1854 = vmatpush1.bf16.msra.mxu0 0
      %1855 = vmatprep.subr.bf16.mxu0 0
      %1856 = vmatpush1.bf16.msra.mxu0 0
      %1857 = vmatprep.subr.bf16.mxu0 0
      %1858 = vmatpush1.bf16.msra.mxu0 0
      %1859 = vmatprep.subr.bf16.mxu0 0
      %1860 = vmatpush1.bf16.msra.mxu0 0
      %1861 = vmatprep.subr.bf16.mxu0 0
      %1862 = vmatpush1.bf16.msra.mxu0 0
      %1863 = vmatprep.mubr.bf16.mxu0 0
      %1864 = vmatmul.mubr.bf16.gmra.mrb[0].mxu0 %v692
      %v1865 = vpop.f32.mrb[0].mxu0
      %v1866 = vadd.f32 0.0, %v1865
      %v1867 = vpop.f32.mrb[0].mxu0
      %v1868 = vpop.f32.mrb[0].mxu0
      %v1869 = vadd.f32 0.0, %v1868
      %v1870 = vpop.f32.mrb[0].mxu0
      %1871 = vmatprep.mubr.bf16.mxu0 0
      %1872 = vmatmul.mubr.bf16.gmra.mrb[0].mxu0 %v695
      %v1873 = vpop.f32.mrb[0].mxu0
      %v1874 = vadd.f32 0.0, %v1873
      %v1875 = vpop.f32.mrb[0].mxu0
      %v1876 = vpop.f32.mrb[0].mxu0
      %v1877 = vadd.f32 0.0, %v1876
      %v1878 = vpop.f32.mrb[0].mxu0
      %1879 = vmatprep.mubr.bf16.mxu0 0
      %1880 = vmatmul.mubr.bf16.gmra.mrb[0].mxu0 %v698
      %v1881 = vpop.f32.mrb[0].mxu0
      %v1882 = vadd.f32 0.0, %v1881
      %v1883 = vpop.f32.mrb[0].mxu0
      %v1884 = vpop.f32.mrb[0].mxu0
      %v1885 = vadd.f32 0.0, %v1884
      %v1886 = vpop.f32.mrb[0].mxu0
      %1887 = vmatprep.mubr.bf16.mxu0 0
      %1888 = vmatmul.mubr.bf16.gmra.mrb[0].mxu0 %v701
      %v1889 = vpop.f32.mrb[0].mxu0
      %v1890 = vadd.f32 0.0, %v1889
      %v1891 = vpop.f32.mrb[0].mxu0
      %v1892 = vpop.f32.mrb[0].mxu0
      %v1893 = vadd.f32 0.0, %v1892
      %v1894 = vpop.f32.mrb[0].mxu0
      %1895 = vmatprep.mubr.bf16.mxu0 0
      %1896 = vmatmul.mubr.bf16.gmra.mrb[0].mxu0 %v704
      %v1897 = vpop.f32.mrb[0].mxu0
      %v1898 = vadd.f32 0.0, %v1897
      %v1899 = vpop.f32.mrb[0].mxu0
      %v1900 = vpop.f32.mrb[0].mxu0
      %v1901 = vadd.f32 0.0, %v1900
      %v1902 = vpop.f32.mrb[0].mxu0
      %1903 = vmatprep.mubr.bf16.mxu0 0
      %1904 = vmatmul.mubr.bf16.gmra.mrb[0].mxu0 %v707
      %v1905 = vpop.f32.mrb[0].mxu0
      %v1906 = vadd.f32 0.0, %v1905
      %v1907 = vpop.f32.mrb[0].mxu0
      %v1908 = vpop.f32.mrb[0].mxu0
      %v1909 = vadd.f32 0.0, %v1908
      %v1910 = vpop.f32.mrb[0].mxu0
      %1911 = vmatprep.mubr.bf16.mxu0 0
      %1912 = vmatmul.mubr.bf16.gmra.mrb[0].mxu0 %v710
      %v1913 = vpop.f32.mrb[0].mxu0
      %v1914 = vadd.f32 0.0, %v1913
      %v1915 = vpop.f32.mrb[0].mxu0
      %v1916 = vpop.f32.mrb[0].mxu0
      %v1917 = vadd.f32 0.0, %v1916
      %v1918 = vpop.f32.mrb[0].mxu0
      %1919 = vmatprep.mubr.bf16.mxu0 0
      %1920 = vmatmul.mubr.bf16.gmra.mrb[0].mxu0 %v713
      %v1921 = vpop.f32.mrb[0].mxu0
      %v1922 = vadd.f32 0.0, %v1921
      %v1923 = vpop.f32.mrb[0].mxu0
      %v1924 = vpop.f32.mrb[0].mxu0
      %v1925 = vadd.f32 0.0, %v1924
      %v1926 = vpop.f32.mrb[0].mxu0
      %1927 = vmatprep.mubr.bf16.mxu0 0
      %1928 = vmatmul.mubr.bf16.gmra.mrb[0].mxu0 %v1383
      %v1929 = vpop.f32.mrb[0].mxu0
      %v1930 = vadd.f32 0.0, %v1929
      %v1931 = vpop.f32.mrb[0].mxu0
      %v1932 = vpop.f32.mrb[0].mxu0
      %v1933 = vadd.f32 0.0, %v1932
      %v1934 = vpop.f32.mrb[0].mxu0
      %1935 = vmatprep.mubr.bf16.mxu0 0
      %1936 = vmatmul.mubr.bf16.gmra.mrb[0].mxu0 %v1826
      %v1937 = vpop.f32.mrb[0].mxu0
      %v1938 = vadd.f32 0.0, %v1937
      %v1939 = vpop.f32.mrb[0].mxu0
      %v1940 = vpop.f32.mrb[0].mxu0
      %v1941 = vadd.f32 0.0, %v1940
      %v1942 = vpop.f32.mrb[0].mxu0
      %1943 = vdwg.mxu0
      %v1944 = vadd.f32 %v1792, %v1866
      %v1945 = vadd.f32 %v1793, %v1869
      %v1946 = vadd.f32 %v1794, %v1874
      %v1947 = vadd.f32 %v1795, %v1877
      %v1948 = vadd.f32 %v1796, %v1882
      %v1949 = vadd.f32 %v1797, %v1885
      %v1950 = vadd.f32 %v1798, %v1890
      %v1951 = vadd.f32 %v1799, %v1893
      %v1952 = vadd.f32 %v1800, %v1898
      %v1953 = vadd.f32 %v1801, %v1901
      %v1954 = vadd.f32 %v1802, %v1906
      %v1955 = vadd.f32 %v1803, %v1909
      %v1956 = vadd.f32 %v1804, %v1914
      %v1957 = vadd.f32 %v1805, %v1917
      %v1958 = vadd.f32 %v1806, %v1922
      %v1959 = vadd.f32 %v1807, %v1925
      %v1960 = vadd.f32 %v1808, %v1930
      %v1961 = vadd.f32 %v1809, %v1933
      %v1962 = vadd.f32 %v1810, %v1938
      %v1963 = vadd.f32 %v1811, %v1941
      %v1964 = vrot.slane %v558, 2
      %v1965 = vrot.slane %v559, 2
      %v1966 = vsel %vm978, %v1964, %v1965
      %v1967 = vrot.slane %v560, 2
      %v1968 = vsel %vm978, %v1965, %v1967
      %v1971 = vpack.c.bf16 %v1968, %v1966
      %s1972 = scalar_lea.vmem %s3, 16
      %v1973 = vld [vmem:[%s1972] sm:$0x3]
      %v1975 = vsel %vm466, %v1971, 0
      %v1978 = vsel %vm715, %v1973, 0
      %1980 = vmatprep.subr.bf16.mxu0 0
      %1981 = vmatpush1.bf16.msra.mxu0 %v1978
      %1982 = vmatprep.subr.bf16.mxu0 0
      %1983 = vmatpush1.bf16.msra.mxu0 0
      %1984 = vmatprep.subr.bf16.mxu0 0
      %1985 = vmatpush1.bf16.msra.mxu0 0
      %1986 = vmatprep.subr.bf16.mxu0 0
      %1987 = vmatpush1.bf16.msra.mxu0 0
      %1988 = vmatprep.subr.bf16.mxu0 0
      %1989 = vmatpush1.bf16.msra.mxu0 0
      %1990 = vmatprep.subr.bf16.mxu0 0
      %1991 = vmatpush1.bf16.msra.mxu0 0
      %1992 = vmatprep.subr.bf16.mxu0 0
      %1993 = vmatpush1.bf16.msra.mxu0 0
      %1994 = vmatprep.subr.bf16.mxu0 0
      %1995 = vmatpush1.bf16.msra.mxu0 0
      %1996 = vmatprep.subr.bf16.mxu0 0
      %1997 = vmatpush1.bf16.msra.mxu0 0
      %1998 = vmatprep.subr.bf16.mxu0 0
      %1999 = vmatpush1.bf16.msra.mxu0 0
      %2000 = vmatprep.subr.bf16.mxu0 0
      %2001 = vmatpush1.bf16.msra.mxu0 0
      %2002 = vmatprep.subr.bf16.mxu0 0
      %2003 = vmatpush1.bf16.msra.mxu0 0
      %2004 = vmatprep.subr.bf16.mxu0 0
      %2005 = vmatpush1.bf16.msra.mxu0 0
      %2006 = vmatprep.subr.bf16.mxu0 0
      %2007 = vmatpush1.bf16.msra.mxu0 0
      %2008 = vmatprep.subr.bf16.mxu0 0
      %2009 = vmatpush1.bf16.msra.mxu0 0
      %2010 = vmatprep.subr.bf16.mxu0 0
      %2011 = vmatpush1.bf16.msra.mxu0 0
      %2012 = vmatprep.mubr.bf16.mxu0 0
      %2013 = vmatmul.mubr.bf16.gmra.mrb[0].mxu0 %v1068
      %v2014 = vpop.f32.mrb[0].mxu0
      %v2015 = vadd.f32 0.0, %v2014
      %v2016 = vpop.f32.mrb[0].mxu0
      %v2017 = vpop.f32.mrb[0].mxu0
      %v2018 = vadd.f32 0.0, %v2017
      %v2019 = vpop.f32.mrb[0].mxu0
      %2020 = vmatprep.mubr.bf16.mxu0 0
      %2021 = vmatmul.mubr.bf16.gmra.mrb[0].mxu0 %v1071
      %v2022 = vpop.f32.mrb[0].mxu0
      %v2023 = vadd.f32 0.0, %v2022
      %v2024 = vpop.f32.mrb[0].mxu0
      %v2025 = vpop.f32.mrb[0].mxu0
      %v2026 = vadd.f32 0.0, %v2025
      %v2027 = vpop.f32.mrb[0].mxu0
      %2028 = vmatprep.mubr.bf16.mxu0 0
      %2029 = vmatmul.mubr.bf16.gmra.mrb[0].mxu0 %v1074
      %v2030 = vpop.f32.mrb[0].mxu0
      %v2031 = vadd.f32 0.0, %v2030
      %v2032 = vpop.f32.mrb[0].mxu0
      %v2033 = vpop.f32.mrb[0].mxu0
      %v2034 = vadd.f32 0.0, %v2033
      %v2035 = vpop.f32.mrb[0].mxu0
      %2036 = vmatprep.mubr.bf16.mxu0 0
      %2037 = vmatmul.mubr.bf16.gmra.mrb[0].mxu0 %v1077
      %v2038 = vpop.f32.mrb[0].mxu0
      %v2039 = vadd.f32 0.0, %v2038
      %v2040 = vpop.f32.mrb[0].mxu0
      %v2041 = vpop.f32.mrb[0].mxu0
      %v2042 = vadd.f32 0.0, %v2041
      %v2043 = vpop.f32.mrb[0].mxu0
      %2044 = vmatprep.mubr.bf16.mxu0 0
      %2045 = vmatmul.mubr.bf16.gmra.mrb[0].mxu0 %v1080
      %v2046 = vpop.f32.mrb[0].mxu0
      %v2047 = vadd.f32 0.0, %v2046
      %v2048 = vpop.f32.mrb[0].mxu0
      %v2049 = vpop.f32.mrb[0].mxu0
      %v2050 = vadd.f32 0.0, %v2049
      %v2051 = vpop.f32.mrb[0].mxu0
      %2052 = vmatprep.mubr.bf16.mxu0 0
      %2053 = vmatmul.mubr.bf16.gmra.mrb[0].mxu0 %v1083
      %v2054 = vpop.f32.mrb[0].mxu0
      %v2055 = vadd.f32 0.0, %v2054
      %v2056 = vpop.f32.mrb[0].mxu0
      %v2057 = vpop.f32.mrb[0].mxu0
      %v2058 = vadd.f32 0.0, %v2057
      %v2059 = vpop.f32.mrb[0].mxu0
      %2060 = vmatprep.mubr.bf16.mxu0 0
      %2061 = vmatmul.mubr.bf16.gmra.mrb[0].mxu0 %v1086
      %v2062 = vpop.f32.mrb[0].mxu0
      %v2063 = vadd.f32 0.0, %v2062
      %v2064 = vpop.f32.mrb[0].mxu0
      %v2065 = vpop.f32.mrb[0].mxu0
      %v2066 = vadd.f32 0.0, %v2065
      %v2067 = vpop.f32.mrb[0].mxu0
      %2068 = vmatprep.mubr.bf16.mxu0 0
      %2069 = vmatmul.mubr.bf16.gmra.mrb[0].mxu0 %v1089
      %v2070 = vpop.f32.mrb[0].mxu0
      %v2071 = vadd.f32 0.0, %v2070
      %v2072 = vpop.f32.mrb[0].mxu0
      %v2073 = vpop.f32.mrb[0].mxu0
      %v2074 = vadd.f32 0.0, %v2073
      %v2075 = vpop.f32.mrb[0].mxu0
      %2076 = vmatprep.mubr.bf16.mxu0 0
      %2077 = vmatmul.mubr.bf16.gmra.mrb[0].mxu0 %v1532
      %v2078 = vpop.f32.mrb[0].mxu0
      %v2079 = vadd.f32 0.0, %v2078
      %v2080 = vpop.f32.mrb[0].mxu0
      %v2081 = vpop.f32.mrb[0].mxu0
      %v2082 = vadd.f32 0.0, %v2081
      %v2083 = vpop.f32.mrb[0].mxu0
      %2084 = vmatprep.mubr.bf16.mxu0 0
      %2085 = vmatmul.mubr.bf16.gmra.mrb[0].mxu0 %v1975
      %v2086 = vpop.f32.mrb[0].mxu0
      %v2087 = vadd.f32 0.0, %v2086
      %v2088 = vpop.f32.mrb[0].mxu0
      %v2089 = vpop.f32.mrb[0].mxu0
      %v2090 = vadd.f32 0.0, %v2089
      %v2091 = vpop.f32.mrb[0].mxu0
      %2092 = vdwg.mxu0
      %v2093 = vadd.f32 %v1944, %v2015
      %v2094 = vadd.f32 %v1945, %v2018
      %v2095 = vadd.f32 %v1946, %v2023
      %v2096 = vadd.f32 %v1947, %v2026
      %v2097 = vadd.f32 %v1948, %v2031
      %v2098 = vadd.f32 %v1949, %v2034
      %v2099 = vadd.f32 %v1950, %v2039
      %v2100 = vadd.f32 %v1951, %v2042
      %v2101 = vadd.f32 %v1952, %v2047
      %v2102 = vadd.f32 %v1953, %v2050
      %v2103 = vadd.f32 %v1954, %v2055
      %v2104 = vadd.f32 %v1955, %v2058
      %v2105 = vadd.f32 %v1956, %v2063
      %v2106 = vadd.f32 %v1957, %v2066
      %v2107 = vadd.f32 %v1958, %v2071
      %v2108 = vadd.f32 %v1959, %v2074
      %v2109 = vadd.f32 %v1960, %v2079
      %v2110 = vadd.f32 %v1961, %v2082
      %v2111 = vadd.f32 %v1962, %v2087
      %v2112 = vadd.f32 %v1963, %v2090
      %v2113 = vmax.f32 %v2093, 0.0
      %v2114 = vmax.f32 %v2094, 0.0
      %v2115 = vmax.f32 %v2095, 0.0
      %v2116 = vmax.f32 %v2096, 0.0
      %v2117 = vmax.f32 %v2097, 0.0
      %v2118 = vmax.f32 %v2098, 0.0
      %v2119 = vmax.f32 %v2099, 0.0
      %v2120 = vmax.f32 %v2100, 0.0
      %v2121 = vmax.f32 %v2101, 0.0
      %v2122 = vmax.f32 %v2102, 0.0
      %v2123 = vmax.f32 %v2103, 0.0
      %v2124 = vmax.f32 %v2104, 0.0
      %v2125 = vmax.f32 %v2105, 0.0
      %v2126 = vmax.f32 %v2106, 0.0
      %v2127 = vmax.f32 %v2107, 0.0
      %v2128 = vmax.f32 %v2108, 0.0
      %v2129 = vmax.f32 %v2109, 0.0
      %v2130 = vmax.f32 %v2110, 0.0
      %v2131 = vmax.f32 %v2111, 0.0
      %v2132 = vmax.f32 %v2112, 0.0
      %2133 = vst.msk [vmem:[#allocation3 + $0x1] sm:$0xff] %vm466, %v2113
      %2134 = vst.msk [vmem:[#allocation3 + $0x9] sm:$0xff] %vm466, %v2114
      %2135 = vst.msk [vmem:[#allocation3 + $0x19] sm:$0xff] %vm466, %v2115
      %2136 = vst.msk [vmem:[#allocation3 + $0x21] sm:$0xff] %vm466, %v2116
      %2137 = vst.msk [vmem:[#allocation3 + $0x31] sm:$0xff] %vm466, %v2117
      %2138 = vst.msk [vmem:[#allocation3 + $0x39] sm:$0xff] %vm466, %v2118
      %2139 = vst.msk [vmem:[#allocation3 + $0x49] sm:$0xff] %vm466, %v2119
      %2140 = vst.msk [vmem:[#allocation3 + $0x51] sm:$0xff] %vm466, %v2120
      %2141 = vst.msk [vmem:[#allocation3 + $0x61] sm:$0xff] %vm466, %v2121
      %2142 = vst.msk [vmem:[#allocation3 + $0x69] sm:$0xff] %vm466, %v2122
      %2143 = vst.msk [vmem:[#allocation3 + $0x79] sm:$0xff] %vm466, %v2123
      %2144 = vst.msk [vmem:[#allocation3 + $0x81] sm:$0xff] %vm466, %v2124
      %2145 = vst.msk [vmem:[#allocation3 + $0x91] sm:$0xff] %vm466, %v2125
      %2146 = vst.msk [vmem:[#allocation3 + $0x99] sm:$0xff] %vm466, %v2126
      %2147 = vst.msk [vmem:[#allocation3 + $0xa9] sm:$0xff] %vm466, %v2127
      %2148 = vst.msk [vmem:[#allocation3 + $0xb1] sm:$0xff] %vm466, %v2128
      %2149 = vst.msk [vmem:[#allocation3 + $0xc1] sm:$0xff] %vm466, %v2129
      %2150 = vst.msk [vmem:[#allocation3 + $0xc9] sm:$0xff] %vm466, %v2130
      %2151 = vst.msk [vmem:[#allocation3 + $0xd9] sm:$0xff] %vm466, %v2131
      %2152 = vst.msk [vmem:[#allocation3 + $0xe1] sm:$0xff] %vm466, %v2132
      // Predicated region
      $region57: #{resblock_pallas.1} parent=39 // pred_check
        %p2153 = pneg %p495
      $region58: #{resblock_pallas.1} parent=39 // pred_check_branch
        %2155 = sbr.rel (%p2153) target = $region60
      $region59: #{resblock_pallas.1} parent=39 // pred_region
        %2156 = vst.msk [vmem:[#allocation3 + $0x1] sm:$0xff] %vm466, 0.0
        %2157 = vst.msk [vmem:[#allocation3 + $0x9] sm:$0xff] %vm466, 0.0
      $region60: #{resblock_pallas.1} parent=39 // pred_fallthru
        _
      // Predicated region
      $region61: #{resblock_pallas.1} parent=39 // pred_check
        %p2158 = pneg %p516
      $region62: #{resblock_pallas.1} parent=39 // pred_check_branch
        %2160 = sbr.rel (%p2158) target = $region64
      $region63: #{resblock_pallas.1} parent=39 // pred_region
        %s2161 = scalar_lea.vmem [#allocation3], 216
        %2162 = vst.msk [vmem:[%s2161 + $0x1] sm:$0xff] %vm466, 0.0
        %2163 = vst.msk [vmem:[%s2161 + $0x9] sm:$0xff] %vm466, 0.0
      $region64: #{resblock_pallas.1} parent=39 // pred_fallthru
        _
      %v2164 = vld [vmem:[#allocation3] sm:$0xff]
      %v2165 = vld [vmem:[#allocation3 + $0x8] sm:$0xff]
      %v2166 = vld [vmem:[#allocation3 + $0x10] sm:$0x3]
      %v2167 = vld [vmem:[#allocation3 + $0x18] sm:$0xff]
      %v2168 = vld [vmem:[#allocation3 + $0x20] sm:$0xff]
      %v2169 = vld [vmem:[#allocation3 + $0x28] sm:$0x3]
      %v2170 = vld [vmem:[#allocation3 + $0x30] sm:$0xff]
      %v2171 = vld [vmem:[#allocation3 + $0x38] sm:$0xff]
      %v2172 = vld [vmem:[#allocation3 + $0x40] sm:$0x3]
      %v2173 = vld [vmem:[#allocation3 + $0x48] sm:$0xff]
      %v2174 = vld [vmem:[#allocation3 + $0x50] sm:$0xff]
      %v2175 = vld [vmem:[#allocation3 + $0x58] sm:$0x3]
      %v2176 = vld [vmem:[#allocation3 + $0x60] sm:$0xff]
      %v2177 = vld [vmem:[#allocation3 + $0x68] sm:$0xff]
      %v2178 = vld [vmem:[#allocation3 + $0x70] sm:$0x3]
      %v2179 = vld [vmem:[#allocation3 + $0x78] sm:$0xff]
      %v2180 = vld [vmem:[#allocation3 + $0x80] sm:$0xff]
      %v2181 = vld [vmem:[#allocation3 + $0x88] sm:$0x3]
      %v2182 = vld [vmem:[#allocation3 + $0x90] sm:$0xff]
      %v2183 = vld [vmem:[#allocation3 + $0x98] sm:$0xff]
      %v2184 = vld [vmem:[#allocation3 + $0xa0] sm:$0x3]
      %v2185 = vld [vmem:[#allocation3 + $0xa8] sm:$0xff]
      %v2186 = vld [vmem:[#allocation3 + $0xb0] sm:$0xff]
      %v2187 = vld [vmem:[#allocation3 + $0xb8] sm:$0x3]
      %v2188 = vld [vmem:[#allocation3 + $0xc0] sm:$0xff]
      %v2189 = vld [vmem:[#allocation3 + $0xc8] sm:$0xff]
      %v2190 = vld [vmem:[#allocation3 + $0xd0] sm:$0x3]
      %v2191 = vld [vmem:[#allocation3 + $0xd8] sm:$0xff]
      %v2192 = vld [vmem:[#allocation3 + $0xe0] sm:$0xff]
      %v2193 = vld [vmem:[#allocation3 + $0xe8] sm:$0x3]
      %v2194 = vpack.c.bf16 %v2165, %v2164
      %v2195 = vpack.c.bf16 %v2168, %v2167
      %v2196 = vpack.c.bf16 %v2171, %v2170
      %v2197 = vpack.c.bf16 %v2174, %v2173
      %v2198 = vpack.c.bf16 %v2177, %v2176
      %v2199 = vpack.c.bf16 %v2180, %v2179
      %v2200 = vpack.c.bf16 %v2183, %v2182
      %v2201 = vpack.c.bf16 %v2186, %v2185
      %v2202 = vld [vmem:[%s4] sm:$0x3]
      %v2227 = vrot.slane %v2164, 1
      %v2228 = vrot.slane %v2165, 1
      %v2229 = vsel %vm602, %v2227, %v2228
      %v2230 = vrot.slane %v2166, 1
      %v2231 = vsel %vm602, %v2228, %v2230
      %v2232 = vrot.slane %v2167, 1
      %v2233 = vrot.slane %v2168, 1
      %v2234 = vsel %vm602, %v2232, %v2233
      %v2235 = vrot.slane %v2169, 1
      %v2236 = vsel %vm602, %v2233, %v2235
      %v2237 = vrot.slane %v2170, 1
      %v2238 = vrot.slane %v2171, 1
      %v2239 = vsel %vm602, %v2237, %v2238
      %v2240 = vrot.slane %v2172, 1
      %v2241 = vsel %vm602, %v2238, %v2240
      %v2242 = vrot.slane %v2173, 1
      %v2243 = vrot.slane %v2174, 1
      %v2244 = vsel %vm602, %v2242, %v2243
      %v2245 = vrot.slane %v2175, 1
      %v2246 = vsel %vm602, %v2243, %v2245
      %v2247 = vrot.slane %v2176, 1
      %v2248 = vrot.slane %v2177, 1
      %v2249 = vsel %vm602, %v2247, %v2248
      %v2250 = vrot.slane %v2178, 1
      %v2251 = vsel %vm602, %v2248, %v2250
      %v2252 = vrot.slane %v2179, 1
      %v2253 = vrot.slane %v2180, 1
      %v2254 = vsel %vm602, %v2252, %v2253
      %v2255 = vrot.slane %v2181, 1
      %v2256 = vsel %vm602, %v2253, %v2255
      %v2257 = vrot.slane %v2182, 1
      %v2258 = vrot.slane %v2183, 1
      %v2259 = vsel %vm602, %v2257, %v2258
      %v2260 = vrot.slane %v2184, 1
      %v2261 = vsel %vm602, %v2258, %v2260
      %v2262 = vrot.slane %v2185, 1
      %v2263 = vrot.slane %v2186, 1
      %v2264 = vsel %vm602, %v2262, %v2263
      %v2265 = vrot.slane %v2187, 1
      %v2266 = vsel %vm602, %v2263, %v2265
      %v2283 = vpack.c.bf16 %v2231, %v2229
      %v2284 = vpack.c.bf16 %v2236, %v2234
      %v2285 = vpack.c.bf16 %v2241, %v2239
      %v2286 = vpack.c.bf16 %v2246, %v2244
      %v2287 = vpack.c.bf16 %v2251, %v2249
      %v2288 = vpack.c.bf16 %v2256, %v2254
      %v2289 = vpack.c.bf16 %v2261, %v2259
      %v2290 = vpack.c.bf16 %v2266, %v2264
      %s2291 = scalar_lea.vmem %s4, 2
      %v2292 = vld [vmem:[%s2291] sm:$0x3]
      %v2294 = vsel %vm466, %v2283, 0
      %v2297 = vsel %vm466, %v2284, 0
      %v2300 = vsel %vm466, %v2285, 0
      %v2303 = vsel %vm466, %v2286, 0
      %v2306 = vsel %vm466, %v2287, 0
      %v2309 = vsel %vm466, %v2288, 0
      %v2312 = vsel %vm466, %v2289, 0
      %v2315 = vsel %vm466, %v2290, 0
      %v2318 = vsel %vm715, %v2292, 0
      %2320 = vmatprep.subr.bf16.mxu0 0
      %2321 = vmatpush1.bf16.msra.mxu0 %v2318
      %2322 = vmatprep.subr.bf16.mxu0 0
      %2323 = vmatpush1.bf16.msra.mxu0 0
      %2324 = vmatprep.subr.bf16.mxu0 0
      %2325 = vmatpush1.bf16.msra.mxu0 0
      %2326 = vmatprep.subr.bf16.mxu0 0
      %2327 = vmatpush1.bf16.msra.mxu0 0
      %2328 = vmatprep.subr.bf16.mxu0 0
      %2329 = vmatpush1.bf16.msra.mxu0 0
      %2330 = vmatprep.subr.bf16.mxu0 0
      %2331 = vmatpush1.bf16.msra.mxu0 0
      %2332 = vmatprep.subr.bf16.mxu0 0
      %2333 = vmatpush1.bf16.msra.mxu0 0
      %2334 = vmatprep.subr.bf16.mxu0 0
      %2335 = vmatpush1.bf16.msra.mxu0 0
      %2336 = vmatprep.subr.bf16.mxu0 0
      %2337 = vmatpush1.bf16.msra.mxu0 0
      %2338 = vmatprep.subr.bf16.mxu0 0
      %2339 = vmatpush1.bf16.msra.mxu0 0
      %2340 = vmatprep.subr.bf16.mxu0 0
      %2341 = vmatpush1.bf16.msra.mxu0 0
      %2342 = vmatprep.subr.bf16.mxu0 0
      %2343 = vmatpush1.bf16.msra.mxu0 0
      %2344 = vmatprep.subr.bf16.mxu0 0
      %2345 = vmatpush1.bf16.msra.mxu0 0
      %2346 = vmatprep.subr.bf16.mxu0 0
      %2347 = vmatpush1.bf16.msra.mxu0 0
      %2348 = vmatprep.subr.bf16.mxu0 0
      %2349 = vmatpush1.bf16.msra.mxu0 0
      %2350 = vmatprep.subr.bf16.mxu0 0
      %2351 = vmatpush1.bf16.msra.mxu0 0
      %2352 = vmatprep.mubr.bf16.mxu0 0
      %2353 = vmatmul.mubr.bf16.gmra.mrb[0].mxu0 %v2294
      %v2354 = vpop.f32.mrb[0].mxu0
      %v2355 = vadd.f32 0.0, %v2354
      %v2356 = vpop.f32.mrb[0].mxu0
      %v2357 = vpop.f32.mrb[0].mxu0
      %v2358 = vadd.f32 0.0, %v2357
      %v2359 = vpop.f32.mrb[0].mxu0
      %2360 = vmatprep.mubr.bf16.mxu0 0
      %2361 = vmatmul.mubr.bf16.gmra.mrb[0].mxu0 %v2297
      %v2362 = vpop.f32.mrb[0].mxu0
      %v2363 = vadd.f32 0.0, %v2362
      %v2364 = vpop.f32.mrb[0].mxu0
      %v2365 = vpop.f32.mrb[0].mxu0
      %v2366 = vadd.f32 0.0, %v2365
      %v2367 = vpop.f32.mrb[0].mxu0
      %2368 = vmatprep.mubr.bf16.mxu0 0
      %2369 = vmatmul.mubr.bf16.gmra.mrb[0].mxu0 %v2300
      %v2370 = vpop.f32.mrb[0].mxu0
      %v2371 = vadd.f32 0.0, %v2370
      %v2372 = vpop.f32.mrb[0].mxu0
      %v2373 = vpop.f32.mrb[0].mxu0
      %v2374 = vadd.f32 0.0, %v2373
      %v2375 = vpop.f32.mrb[0].mxu0
      %2376 = vmatprep.mubr.bf16.mxu0 0
      %2377 = vmatmul.mubr.bf16.gmra.mrb[0].mxu0 %v2303
      %v2378 = vpop.f32.mrb[0].mxu0
      %v2379 = vadd.f32 0.0, %v2378
      %v2380 = vpop.f32.mrb[0].mxu0
      %v2381 = vpop.f32.mrb[0].mxu0
      %v2382 = vadd.f32 0.0, %v2381
      %v2383 = vpop.f32.mrb[0].mxu0
      %2384 = vmatprep.mubr.bf16.mxu0 0
      %2385 = vmatmul.mubr.bf16.gmra.mrb[0].mxu0 %v2306
      %v2386 = vpop.f32.mrb[0].mxu0
      %v2387 = vadd.f32 0.0, %v2386
      %v2388 = vpop.f32.mrb[0].mxu0
      %v2389 = vpop.f32.mrb[0].mxu0
      %v2390 = vadd.f32 0.0, %v2389
      %v2391 = vpop.f32.mrb[0].mxu0
      %2392 = vmatprep.mubr.bf16.mxu0 0
      %2393 = vmatmul.mubr.bf16.gmra.mrb[0].mxu0 %v2309
      %v2394 = vpop.f32.mrb[0].mxu0
      %v2395 = vadd.f32 0.0, %v2394
      %v2396 = vpop.f32.mrb[0].mxu0
      %v2397 = vpop.f32.mrb[0].mxu0
      %v2398 = vadd.f32 0.0, %v2397
      %v2399 = vpop.f32.mrb[0].mxu0
      %2400 = vmatprep.mubr.bf16.mxu0 0
      %2401 = vmatmul.mubr.bf16.gmra.mrb[0].mxu0 %v2312
      %v2402 = vpop.f32.mrb[0].mxu0
      %v2403 = vadd.f32 0.0, %v2402
      %v2404 = vpop.f32.mrb[0].mxu0
      %v2405 = vpop.f32.mrb[0].mxu0
      %v2406 = vadd.f32 0.0, %v2405
      %v2407 = vpop.f32.mrb[0].mxu0
      %2408 = vmatprep.mubr.bf16.mxu0 0
      %2409 = vmatmul.mubr.bf16.gmra.mrb[0].mxu0 %v2315
      %v2410 = vpop.f32.mrb[0].mxu0
      %v2411 = vadd.f32 0.0, %v2410
      %v2412 = vpop.f32.mrb[0].mxu0
      %v2413 = vpop.f32.mrb[0].mxu0
      %v2414 = vadd.f32 0.0, %v2413
      %v2415 = vpop.f32.mrb[0].mxu0
      %2416 = vdwg.mxu0
      %v2418 = vsel %vm466, %v2194, 0
      %v2421 = vsel %vm466, %v2195, 0
      %v2424 = vsel %vm466, %v2196, 0
      %v2427 = vsel %vm466, %v2197, 0
      %v2430 = vsel %vm466, %v2198, 0
      %v2433 = vsel %vm466, %v2199, 0
      %v2436 = vsel %vm466, %v2200, 0
      %v2439 = vsel %vm466, %v2201, 0
      %v2442 = vsel %vm715, %v2202, 0
      %2444 = vmatprep.subr.bf16.mxu0 0
      %2445 = vmatpush1.bf16.msra.mxu0 %v2442
      %2446 = vmatprep.subr.bf16.mxu0 0
      %2447 = vmatpush1.bf16.msra.mxu0 0
      %2448 = vmatprep.subr.bf16.mxu0 0
      %2449 = vmatpush1.bf16.msra.mxu0 0
      %2450 = vmatprep.subr.bf16.mxu0 0
      %2451 = vmatpush1.bf16.msra.mxu0 0
      %2452 = vmatprep.subr.bf16.mxu0 0
      %2453 = vmatpush1.bf16.msra.mxu0 0
      %2454 = vmatprep.subr.bf16.mxu0 0
      %2455 = vmatpush1.bf16.msra.mxu0 0
      %2456 = vmatprep.subr.bf16.mxu0 0
      %2457 = vmatpush1.bf16.msra.mxu0 0
      %2458 = vmatprep.subr.bf16.mxu0 0
      %2459 = vmatpush1.bf16.msra.mxu0 0
      %2460 = vmatprep.subr.bf16.mxu0 0
      %2461 = vmatpush1.bf16.msra.mxu0 0
      %2462 = vmatprep.subr.bf16.mxu0 0
      %2463 = vmatpush1.bf16.msra.mxu0 0
      %2464 = vmatprep.subr.bf16.mxu0 0
      %2465 = vmatpush1.bf16.msra.mxu0 0
      %2466 = vmatprep.subr.bf16.mxu0 0
      %2467 = vmatpush1.bf16.msra.mxu0 0
      %2468 = vmatprep.subr.bf16.mxu0 0
      %2469 = vmatpush1.bf16.msra.mxu0 0
      %2470 = vmatprep.subr.bf16.mxu0 0
      %2471 = vmatpush1.bf16.msra.mxu0 0
      %2472 = vmatprep.subr.bf16.mxu0 0
      %2473 = vmatpush1.bf16.msra.mxu0 0
      %2474 = vmatprep.subr.bf16.mxu0 0
      %2475 = vmatpush1.bf16.msra.mxu0 0
      %2476 = vmatprep.mubr.bf16.mxu0 0
      %2477 = vmatmul.mubr.bf16.gmra.mrb[0].mxu0 %v2418
      %v2478 = vpop.f32.mrb[0].mxu0
      %v2479 = vadd.f32 %v2355, %v2478
      %v2480 = vpop.f32.mrb[0].mxu0
      %v2481 = vpop.f32.mrb[0].mxu0
      %v2482 = vadd.f32 %v2358, %v2481
      %v2483 = vpop.f32.mrb[0].mxu0
      %2484 = vmatprep.mubr.bf16.mxu0 0
      %2485 = vmatmul.mubr.bf16.gmra.mrb[0].mxu0 %v2421
      %v2486 = vpop.f32.mrb[0].mxu0
      %v2487 = vadd.f32 %v2363, %v2486
      %v2488 = vpop.f32.mrb[0].mxu0
      %v2489 = vpop.f32.mrb[0].mxu0
      %v2490 = vadd.f32 %v2366, %v2489
      %v2491 = vpop.f32.mrb[0].mxu0
      %2492 = vmatprep.mubr.bf16.mxu0 0
      %2493 = vmatmul.mubr.bf16.gmra.mrb[0].mxu0 %v2424
      %v2494 = vpop.f32.mrb[0].mxu0
      %v2495 = vadd.f32 %v2371, %v2494
      %v2496 = vpop.f32.mrb[0].mxu0
      %v2497 = vpop.f32.mrb[0].mxu0
      %v2498 = vadd.f32 %v2374, %v2497
      %v2499 = vpop.f32.mrb[0].mxu0
      %2500 = vmatprep.mubr.bf16.mxu0 0
      %2501 = vmatmul.mubr.bf16.gmra.mrb[0].mxu0 %v2427
      %v2502 = vpop.f32.mrb[0].mxu0
      %v2503 = vadd.f32 %v2379, %v2502
      %v2504 = vpop.f32.mrb[0].mxu0
      %v2505 = vpop.f32.mrb[0].mxu0
      %v2506 = vadd.f32 %v2382, %v2505
      %v2507 = vpop.f32.mrb[0].mxu0
      %2508 = vmatprep.mubr.bf16.mxu0 0
      %2509 = vmatmul.mubr.bf16.gmra.mrb[0].mxu0 %v2430
      %v2510 = vpop.f32.mrb[0].mxu0
      %v2511 = vadd.f32 %v2387, %v2510
      %v2512 = vpop.f32.mrb[0].mxu0
      %v2513 = vpop.f32.mrb[0].mxu0
      %v2514 = vadd.f32 %v2390, %v2513
      %v2515 = vpop.f32.mrb[0].mxu0
      %2516 = vmatprep.mubr.bf16.mxu0 0
      %2517 = vmatmul.mubr.bf16.gmra.mrb[0].mxu0 %v2433
      %v2518 = vpop.f32.mrb[0].mxu0
      %v2519 = vadd.f32 %v2395, %v2518
      %v2520 = vpop.f32.mrb[0].mxu0
      %v2521 = vpop.f32.mrb[0].mxu0
      %v2522 = vadd.f32 %v2398, %v2521
      %v2523 = vpop.f32.mrb[0].mxu0
      %2524 = vmatprep.mubr.bf16.mxu0 0
      %2525 = vmatmul.mubr.bf16.gmra.mrb[0].mxu0 %v2436
      %v2526 = vpop.f32.mrb[0].mxu0
      %v2527 = vadd.f32 %v2403, %v2526
      %v2528 = vpop.f32.mrb[0].mxu0
      %v2529 = vpop.f32.mrb[0].mxu0
      %v2530 = vadd.f32 %v2406, %v2529
      %v2531 = vpop.f32.mrb[0].mxu0
      %2532 = vmatprep.mubr.bf16.mxu0 0
      %2533 = vmatmul.mubr.bf16.gmra.mrb[0].mxu0 %v2439
      %v2534 = vpop.f32.mrb[0].mxu0
      %v2535 = vadd.f32 %v2411, %v2534
      %v2536 = vpop.f32.mrb[0].mxu0
      %v2537 = vpop.f32.mrb[0].mxu0
      %v2538 = vadd.f32 %v2414, %v2537
      %v2539 = vpop.f32.mrb[0].mxu0
      %2540 = vdwg.mxu0
      %v2541 = vrot.slane %v2164, 2
      %v2542 = vrot.slane %v2165, 2
      %v2543 = vsel %vm978, %v2541, %v2542
      %v2544 = vrot.slane %v2166, 2
      %v2545 = vsel %vm978, %v2542, %v2544
      %v2546 = vrot.slane %v2167, 2
      %v2547 = vrot.slane %v2168, 2
      %v2548 = vsel %vm978, %v2546, %v2547
      %v2549 = vrot.slane %v2169, 2
      %v2550 = vsel %vm978, %v2547, %v2549
      %v2551 = vrot.slane %v2170, 2
      %v2552 = vrot.slane %v2171, 2
      %v2553 = vsel %vm978, %v2551, %v2552
      %v2554 = vrot.slane %v2172, 2
      %v2555 = vsel %vm978, %v2552, %v2554
      %v2556 = vrot.slane %v2173, 2
      %v2557 = vrot.slane %v2174, 2
      %v2558 = vsel %vm978, %v2556, %v2557
      %v2559 = vrot.slane %v2175, 2
      %v2560 = vsel %vm978, %v2557, %v2559
      %v2561 = vrot.slane %v2176, 2
      %v2562 = vrot.slane %v2177, 2
      %v2563 = vsel %vm978, %v2561, %v2562
      %v2564 = vrot.slane %v2178, 2
      %v2565 = vsel %vm978, %v2562, %v2564
      %v2566 = vrot.slane %v2179, 2
      %v2567 = vrot.slane %v2180, 2
      %v2568 = vsel %vm978, %v2566, %v2567
      %v2569 = vrot.slane %v2181, 2
      %v2570 = vsel %vm978, %v2567, %v2569
      %v2571 = vrot.slane %v2182, 2
      %v2572 = vrot.slane %v2183, 2
      %v2573 = vsel %vm978, %v2571, %v2572
      %v2574 = vrot.slane %v2184, 2
      %v2575 = vsel %vm978, %v2572, %v2574
      %v2576 = vrot.slane %v2185, 2
      %v2577 = vrot.slane %v2186, 2
      %v2578 = vsel %vm978, %v2576, %v2577
      %v2579 = vrot.slane %v2187, 2
      %v2580 = vsel %vm978, %v2577, %v2579
      %v2597 = vpack.c.bf16 %v2545, %v2543
      %v2598 = vpack.c.bf16 %v2550, %v2548
      %v2599 = vpack.c.bf16 %v2555, %v2553
      %v2600 = vpack.c.bf16 %v2560, %v2558
      %v2601 = vpack.c.bf16 %v2565, %v2563
      %v2602 = vpack.c.bf16 %v2570, %v2568
      %v2603 = vpack.c.bf16 %v2575, %v2573
      %v2604 = vpack.c.bf16 %v2580, %v2578
      %s2605 = scalar_lea.vmem %s4, 4
      %v2606 = vld [vmem:[%s2605] sm:$0x3]
      %v2608 = vsel %vm466, %v2597, 0
      %v2611 = vsel %vm466, %v2598, 0
      %v2614 = vsel %vm466, %v2599, 0
      %v2617 = vsel %vm466, %v2600, 0
      %v2620 = vsel %vm466, %v2601, 0
      %v2623 = vsel %vm466, %v2602, 0
      %v2626 = vsel %vm466, %v2603, 0
      %v2629 = vsel %vm466, %v2604, 0
      %v2632 = vsel %vm715, %v2606, 0
      %2634 = vmatprep.subr.bf16.mxu0 0
      %2635 = vmatpush1.bf16.msra.mxu0 %v2632
      %2636 = vmatprep.subr.bf16.mxu0 0
      %2637 = vmatpush1.bf16.msra.mxu0 0
      %2638 = vmatprep.subr.bf16.mxu0 0
      %2639 = vmatpush1.bf16.msra.mxu0 0
      %2640 = vmatprep.subr.bf16.mxu0 0
      %2641 = vmatpush1.bf16.msra.mxu0 0
      %2642 = vmatprep.subr.bf16.mxu0 0
      %2643 = vmatpush1.bf16.msra.mxu0 0
      %2644 = vmatprep.subr.bf16.mxu0 0
      %2645 = vmatpush1.bf16.msra.mxu0 0
      %2646 = vmatprep.subr.bf16.mxu0 0
      %2647 = vmatpush1.bf16.msra.mxu0 0
      %2648 = vmatprep.subr.bf16.mxu0 0
      %2649 = vmatpush1.bf16.msra.mxu0 0
      %2650 = vmatprep.subr.bf16.mxu0 0
      %2651 = vmatpush1.bf16.msra.mxu0 0
      %2652 = vmatprep.subr.bf16.mxu0 0
      %2653 = vmatpush1.bf16.msra.mxu0 0
      %2654 = vmatprep.subr.bf16.mxu0 0
      %2655 = vmatpush1.bf16.msra.mxu0 0
      %2656 = vmatprep.subr.bf16.mxu0 0
      %2657 = vmatpush1.bf16.msra.mxu0 0
      %2658 = vmatprep.subr.bf16.mxu0 0
      %2659 = vmatpush1.bf16.msra.mxu0 0
      %2660 = vmatprep.subr.bf16.mxu0 0
      %2661 = vmatpush1.bf16.msra.mxu0 0
      %2662 = vmatprep.subr.bf16.mxu0 0
      %2663 = vmatpush1.bf16.msra.mxu0 0
      %2664 = vmatprep.subr.bf16.mxu0 0
      %2665 = vmatpush1.bf16.msra.mxu0 0
      %2666 = vmatprep.mubr.bf16.mxu0 0
      %2667 = vmatmul.mubr.bf16.gmra.mrb[0].mxu0 %v2608
      %v2668 = vpop.f32.mrb[0].mxu0
      %v2669 = vadd.f32 0.0, %v2668
      %v2670 = vpop.f32.mrb[0].mxu0
      %v2671 = vpop.f32.mrb[0].mxu0
      %v2672 = vadd.f32 0.0, %v2671
      %v2673 = vpop.f32.mrb[0].mxu0
      %2674 = vmatprep.mubr.bf16.mxu0 0
      %2675 = vmatmul.mubr.bf16.gmra.mrb[0].mxu0 %v2611
      %v2676 = vpop.f32.mrb[0].mxu0
      %v2677 = vadd.f32 0.0, %v2676
      %v2678 = vpop.f32.mrb[0].mxu0
      %v2679 = vpop.f32.mrb[0].mxu0
      %v2680 = vadd.f32 0.0, %v2679
      %v2681 = vpop.f32.mrb[0].mxu0
      %2682 = vmatprep.mubr.bf16.mxu0 0
      %2683 = vmatmul.mubr.bf16.gmra.mrb[0].mxu0 %v2614
      %v2684 = vpop.f32.mrb[0].mxu0
      %v2685 = vadd.f32 0.0, %v2684
      %v2686 = vpop.f32.mrb[0].mxu0
      %v2687 = vpop.f32.mrb[0].mxu0
      %v2688 = vadd.f32 0.0, %v2687
      %v2689 = vpop.f32.mrb[0].mxu0
      %2690 = vmatprep.mubr.bf16.mxu0 0
      %2691 = vmatmul.mubr.bf16.gmra.mrb[0].mxu0 %v2617
      %v2692 = vpop.f32.mrb[0].mxu0
      %v2693 = vadd.f32 0.0, %v2692
      %v2694 = vpop.f32.mrb[0].mxu0
      %v2695 = vpop.f32.mrb[0].mxu0
      %v2696 = vadd.f32 0.0, %v2695
      %v2697 = vpop.f32.mrb[0].mxu0
      %2698 = vmatprep.mubr.bf16.mxu0 0
      %2699 = vmatmul.mubr.bf16.gmra.mrb[0].mxu0 %v2620
      %v2700 = vpop.f32.mrb[0].mxu0
      %v2701 = vadd.f32 0.0, %v2700
      %v2702 = vpop.f32.mrb[0].mxu0
      %v2703 = vpop.f32.mrb[0].mxu0
      %v2704 = vadd.f32 0.0, %v2703
      %v2705 = vpop.f32.mrb[0].mxu0
      %2706 = vmatprep.mubr.bf16.mxu0 0
      %2707 = vmatmul.mubr.bf16.gmra.mrb[0].mxu0 %v2623
      %v2708 = vpop.f32.mrb[0].mxu0
      %v2709 = vadd.f32 0.0, %v2708
      %v2710 = vpop.f32.mrb[0].mxu0
      %v2711 = vpop.f32.mrb[0].mxu0
      %v2712 = vadd.f32 0.0, %v2711
      %v2713 = vpop.f32.mrb[0].mxu0
      %2714 = vmatprep.mubr.bf16.mxu0 0
      %2715 = vmatmul.mubr.bf16.gmra.mrb[0].mxu0 %v2626
      %v2716 = vpop.f32.mrb[0].mxu0
      %v2717 = vadd.f32 0.0, %v2716
      %v2718 = vpop.f32.mrb[0].mxu0
      %v2719 = vpop.f32.mrb[0].mxu0
      %v2720 = vadd.f32 0.0, %v2719
      %v2721 = vpop.f32.mrb[0].mxu0
      %2722 = vmatprep.mubr.bf16.mxu0 0
      %2723 = vmatmul.mubr.bf16.gmra.mrb[0].mxu0 %v2629
      %v2724 = vpop.f32.mrb[0].mxu0
      %v2725 = vadd.f32 0.0, %v2724
      %v2726 = vpop.f32.mrb[0].mxu0
      %v2727 = vpop.f32.mrb[0].mxu0
      %v2728 = vadd.f32 0.0, %v2727
      %v2729 = vpop.f32.mrb[0].mxu0
      %2730 = vdwg.mxu0
      %v2731 = vadd.f32 %v2479, %v2669
      %v2732 = vadd.f32 %v2482, %v2672
      %v2733 = vadd.f32 %v2487, %v2677
      %v2734 = vadd.f32 %v2490, %v2680
      %v2735 = vadd.f32 %v2495, %v2685
      %v2736 = vadd.f32 %v2498, %v2688
      %v2737 = vadd.f32 %v2503, %v2693
      %v2738 = vadd.f32 %v2506, %v2696
      %v2739 = vadd.f32 %v2511, %v2701
      %v2740 = vadd.f32 %v2514, %v2704
      %v2741 = vadd.f32 %v2519, %v2709
      %v2742 = vadd.f32 %v2522, %v2712
      %v2743 = vadd.f32 %v2527, %v2717
      %v2744 = vadd.f32 %v2530, %v2720
      %v2745 = vadd.f32 %v2535, %v2725
      %v2746 = vadd.f32 %v2538, %v2728
      %v2747 = vpack.c.bf16 %v2189, %v2188
      %s2748 = scalar_lea.vmem %s4, 6
      %v2749 = vld [vmem:[%s2748] sm:$0x3]
      %v2751 = vsel %vm466, %v2747, 0
      %v2754 = vsel %vm715, %v2749, 0
      %2756 = vmatprep.subr.bf16.mxu0 0
      %2757 = vmatpush1.bf16.msra.mxu0 %v2754
      %2758 = vmatprep.subr.bf16.mxu0 0
      %2759 = vmatpush1.bf16.msra.mxu0 0
      %2760 = vmatprep.subr.bf16.mxu0 0
      %2761 = vmatpush1.bf16.msra.mxu0 0
      %2762 = vmatprep.subr.bf16.mxu0 0
      %2763 = vmatpush1.bf16.msra.mxu0 0
      %2764 = vmatprep.subr.bf16.mxu0 0
      %2765 = vmatpush1.bf16.msra.mxu0 0
      %2766 = vmatprep.subr.bf16.mxu0 0
      %2767 = vmatpush1.bf16.msra.mxu0 0
      %2768 = vmatprep.subr.bf16.mxu0 0
      %2769 = vmatpush1.bf16.msra.mxu0 0
      %2770 = vmatprep.subr.bf16.mxu0 0
      %2771 = vmatpush1.bf16.msra.mxu0 0
      %2772 = vmatprep.subr.bf16.mxu0 0
      %2773 = vmatpush1.bf16.msra.mxu0 0
      %2774 = vmatprep.subr.bf16.mxu0 0
      %2775 = vmatpush1.bf16.msra.mxu0 0
      %2776 = vmatprep.subr.bf16.mxu0 0
      %2777 = vmatpush1.bf16.msra.mxu0 0
      %2778 = vmatprep.subr.bf16.mxu0 0
      %2779 = vmatpush1.bf16.msra.mxu0 0
      %2780 = vmatprep.subr.bf16.mxu0 0
      %2781 = vmatpush1.bf16.msra.mxu0 0
      %2782 = vmatprep.subr.bf16.mxu0 0
      %2783 = vmatpush1.bf16.msra.mxu0 0
      %2784 = vmatprep.subr.bf16.mxu0 0
      %2785 = vmatpush1.bf16.msra.mxu0 0
      %2786 = vmatprep.subr.bf16.mxu0 0
      %2787 = vmatpush1.bf16.msra.mxu0 0
      %2788 = vmatprep.mubr.bf16.mxu0 0
      %2789 = vmatmul.mubr.bf16.gmra.mrb[0].mxu0 %v2421
      %v2790 = vpop.f32.mrb[0].mxu0
      %v2791 = vadd.f32 0.0, %v2790
      %v2792 = vpop.f32.mrb[0].mxu0
      %v2793 = vpop.f32.mrb[0].mxu0
      %v2794 = vadd.f32 0.0, %v2793
      %v2795 = vpop.f32.mrb[0].mxu0
      %2796 = vmatprep.mubr.bf16.mxu0 0
      %2797 = vmatmul.mubr.bf16.gmra.mrb[0].mxu0 %v2424
      %v2798 = vpop.f32.mrb[0].mxu0
      %v2799 = vadd.f32 0.0, %v2798
      %v2800 = vpop.f32.mrb[0].mxu0
      %v2801 = vpop.f32.mrb[0].mxu0
      %v2802 = vadd.f32 0.0, %v2801
      %v2803 = vpop.f32.mrb[0].mxu0
      %2804 = vmatprep.mubr.bf16.mxu0 0
      %2805 = vmatmul.mubr.bf16.gmra.mrb[0].mxu0 %v2427
      %v2806 = vpop.f32.mrb[0].mxu0
      %v2807 = vadd.f32 0.0, %v2806
      %v2808 = vpop.f32.mrb[0].mxu0
      %v2809 = vpop.f32.mrb[0].mxu0
      %v2810 = vadd.f32 0.0, %v2809
      %v2811 = vpop.f32.mrb[0].mxu0
      %2812 = vmatprep.mubr.bf16.mxu0 0
      %2813 = vmatmul.mubr.bf16.gmra.mrb[0].mxu0 %v2430
      %v2814 = vpop.f32.mrb[0].mxu0
      %v2815 = vadd.f32 0.0, %v2814
      %v2816 = vpop.f32.mrb[0].mxu0
      %v2817 = vpop.f32.mrb[0].mxu0
      %v2818 = vadd.f32 0.0, %v2817
      %v2819 = vpop.f32.mrb[0].mxu0
      %2820 = vmatprep.mubr.bf16.mxu0 0
      %2821 = vmatmul.mubr.bf16.gmra.mrb[0].mxu0 %v2433
      %v2822 = vpop.f32.mrb[0].mxu0
      %v2823 = vadd.f32 0.0, %v2822
      %v2824 = vpop.f32.mrb[0].mxu0
      %v2825 = vpop.f32.mrb[0].mxu0
      %v2826 = vadd.f32 0.0, %v2825
      %v2827 = vpop.f32.mrb[0].mxu0
      %2828 = vmatprep.mubr.bf16.mxu0 0
      %2829 = vmatmul.mubr.bf16.gmra.mrb[0].mxu0 %v2436
      %v2830 = vpop.f32.mrb[0].mxu0
      %v2831 = vadd.f32 0.0, %v2830
      %v2832 = vpop.f32.mrb[0].mxu0
      %v2833 = vpop.f32.mrb[0].mxu0
      %v2834 = vadd.f32 0.0, %v2833
      %v2835 = vpop.f32.mrb[0].mxu0
      %2836 = vmatprep.mubr.bf16.mxu0 0
      %2837 = vmatmul.mubr.bf16.gmra.mrb[0].mxu0 %v2439
      %v2838 = vpop.f32.mrb[0].mxu0
      %v2839 = vadd.f32 0.0, %v2838
      %v2840 = vpop.f32.mrb[0].mxu0
      %v2841 = vpop.f32.mrb[0].mxu0
      %v2842 = vadd.f32 0.0, %v2841
      %v2843 = vpop.f32.mrb[0].mxu0
      %2844 = vmatprep.mubr.bf16.mxu0 0
      %2845 = vmatmul.mubr.bf16.gmra.mrb[0].mxu0 %v2751
      %v2846 = vpop.f32.mrb[0].mxu0
      %v2847 = vadd.f32 0.0, %v2846
      %v2848 = vpop.f32.mrb[0].mxu0
      %v2849 = vpop.f32.mrb[0].mxu0
      %v2850 = vadd.f32 0.0, %v2849
      %v2851 = vpop.f32.mrb[0].mxu0
      %2852 = vdwg.mxu0
      %v2853 = vadd.f32 %v2731, %v2791
      %v2854 = vadd.f32 %v2732, %v2794
      %v2855 = vadd.f32 %v2733, %v2799
      %v2856 = vadd.f32 %v2734, %v2802
      %v2857 = vadd.f32 %v2735, %v2807
      %v2858 = vadd.f32 %v2736, %v2810
      %v2859 = vadd.f32 %v2737, %v2815
      %v2860 = vadd.f32 %v2738, %v2818
      %v2861 = vadd.f32 %v2739, %v2823
      %v2862 = vadd.f32 %v2740, %v2826
      %v2863 = vadd.f32 %v2741, %v2831
      %v2864 = vadd.f32 %v2742, %v2834
      %v2865 = vadd.f32 %v2743, %v2839
      %v2866 = vadd.f32 %v2744, %v2842
      %v2867 = vadd.f32 %v2745, %v2847
      %v2868 = vadd.f32 %v2746, %v2850
      %v2872 = vrot.slane %v2188, 1
      %v2873 = vrot.slane %v2189, 1
      %v2874 = vsel %vm602, %v2872, %v2873
      %v2875 = vrot.slane %v2190, 1
      %v2876 = vsel %vm602, %v2873, %v2875
      %v2879 = vpack.c.bf16 %v2876, %v2874
      %s2880 = scalar_lea.vmem %s4, 8
      %v2881 = vld [vmem:[%s2880] sm:$0x3]
      %v2883 = vsel %vm466, %v2879, 0
      %v2886 = vsel %vm715, %v2881, 0
      %2888 = vmatprep.subr.bf16.mxu0 0
      %2889 = vmatpush1.bf16.msra.mxu0 %v2886
      %2890 = vmatprep.subr.bf16.mxu0 0
      %2891 = vmatpush1.bf16.msra.mxu0 0
      %2892 = vmatprep.subr.bf16.mxu0 0
      %2893 = vmatpush1.bf16.msra.mxu0 0
      %2894 = vmatprep.subr.bf16.mxu0 0
      %2895 = vmatpush1.bf16.msra.mxu0 0
      %2896 = vmatprep.subr.bf16.mxu0 0
      %2897 = vmatpush1.bf16.msra.mxu0 0
      %2898 = vmatprep.subr.bf16.mxu0 0
      %2899 = vmatpush1.bf16.msra.mxu0 0
      %2900 = vmatprep.subr.bf16.mxu0 0
      %2901 = vmatpush1.bf16.msra.mxu0 0
      %2902 = vmatprep.subr.bf16.mxu0 0
      %2903 = vmatpush1.bf16.msra.mxu0 0
      %2904 = vmatprep.subr.bf16.mxu0 0
      %2905 = vmatpush1.bf16.msra.mxu0 0
      %2906 = vmatprep.subr.bf16.mxu0 0
      %2907 = vmatpush1.bf16.msra.mxu0 0
      %2908 = vmatprep.subr.bf16.mxu0 0
      %2909 = vmatpush1.bf16.msra.mxu0 0
      %2910 = vmatprep.subr.bf16.mxu0 0
      %2911 = vmatpush1.bf16.msra.mxu0 0
      %2912 = vmatprep.subr.bf16.mxu0 0
      %2913 = vmatpush1.bf16.msra.mxu0 0
      %2914 = vmatprep.subr.bf16.mxu0 0
      %2915 = vmatpush1.bf16.msra.mxu0 0
      %2916 = vmatprep.subr.bf16.mxu0 0
      %2917 = vmatpush1.bf16.msra.mxu0 0
      %2918 = vmatprep.subr.bf16.mxu0 0
      %2919 = vmatpush1.bf16.msra.mxu0 0
      %2920 = vmatprep.mubr.bf16.mxu0 0
      %2921 = vmatmul.mubr.bf16.gmra.mrb[0].mxu0 %v2297
      %v2922 = vpop.f32.mrb[0].mxu0
      %v2923 = vadd.f32 0.0, %v2922
      %v2924 = vpop.f32.mrb[0].mxu0
      %v2925 = vpop.f32.mrb[0].mxu0
      %v2926 = vadd.f32 0.0, %v2925
      %v2927 = vpop.f32.mrb[0].mxu0
      %2928 = vmatprep.mubr.bf16.mxu0 0
      %2929 = vmatmul.mubr.bf16.gmra.mrb[0].mxu0 %v2300
      %v2930 = vpop.f32.mrb[0].mxu0
      %v2931 = vadd.f32 0.0, %v2930
      %v2932 = vpop.f32.mrb[0].mxu0
      %v2933 = vpop.f32.mrb[0].mxu0
      %v2934 = vadd.f32 0.0, %v2933
      %v2935 = vpop.f32.mrb[0].mxu0
      %2936 = vmatprep.mubr.bf16.mxu0 0
      %2937 = vmatmul.mubr.bf16.gmra.mrb[0].mxu0 %v2303
      %v2938 = vpop.f32.mrb[0].mxu0
      %v2939 = vadd.f32 0.0, %v2938
      %v2940 = vpop.f32.mrb[0].mxu0
      %v2941 = vpop.f32.mrb[0].mxu0
      %v2942 = vadd.f32 0.0, %v2941
      %v2943 = vpop.f32.mrb[0].mxu0
      %2944 = vmatprep.mubr.bf16.mxu0 0
      %2945 = vmatmul.mubr.bf16.gmra.mrb[0].mxu0 %v2306
      %v2946 = vpop.f32.mrb[0].mxu0
      %v2947 = vadd.f32 0.0, %v2946
      %v2948 = vpop.f32.mrb[0].mxu0
      %v2949 = vpop.f32.mrb[0].mxu0
      %v2950 = vadd.f32 0.0, %v2949
      %v2951 = vpop.f32.mrb[0].mxu0
      %2952 = vmatprep.mubr.bf16.mxu0 0
      %2953 = vmatmul.mubr.bf16.gmra.mrb[0].mxu0 %v2309
      %v2954 = vpop.f32.mrb[0].mxu0
      %v2955 = vadd.f32 0.0, %v2954
      %v2956 = vpop.f32.mrb[0].mxu0
      %v2957 = vpop.f32.mrb[0].mxu0
      %v2958 = vadd.f32 0.0, %v2957
      %v2959 = vpop.f32.mrb[0].mxu0
      %2960 = vmatprep.mubr.bf16.mxu0 0
      %2961 = vmatmul.mubr.bf16.gmra.mrb[0].mxu0 %v2312
      %v2962 = vpop.f32.mrb[0].mxu0
      %v2963 = vadd.f32 0.0, %v2962
      %v2964 = vpop.f32.mrb[0].mxu0
      %v2965 = vpop.f32.mrb[0].mxu0
      %v2966 = vadd.f32 0.0, %v2965
      %v2967 = vpop.f32.mrb[0].mxu0
      %2968 = vmatprep.mubr.bf16.mxu0 0
      %2969 = vmatmul.mubr.bf16.gmra.mrb[0].mxu0 %v2315
      %v2970 = vpop.f32.mrb[0].mxu0
      %v2971 = vadd.f32 0.0, %v2970
      %v2972 = vpop.f32.mrb[0].mxu0
      %v2973 = vpop.f32.mrb[0].mxu0
      %v2974 = vadd.f32 0.0, %v2973
      %v2975 = vpop.f32.mrb[0].mxu0
      %2976 = vmatprep.mubr.bf16.mxu0 0
      %2977 = vmatmul.mubr.bf16.gmra.mrb[0].mxu0 %v2883
      %v2978 = vpop.f32.mrb[0].mxu0
      %v2979 = vadd.f32 0.0, %v2978
      %v2980 = vpop.f32.mrb[0].mxu0
      %v2981 = vpop.f32.mrb[0].mxu0
      %v2982 = vadd.f32 0.0, %v2981
      %v2983 = vpop.f32.mrb[0].mxu0
      %2984 = vdwg.mxu0
      %v2985 = vadd.f32 %v2853, %v2923
      %v2986 = vadd.f32 %v2854, %v2926
      %v2987 = vadd.f32 %v2855, %v2931
      %v2988 = vadd.f32 %v2856, %v2934
      %v2989 = vadd.f32 %v2857, %v2939
      %v2990 = vadd.f32 %v2858, %v2942
      %v2991 = vadd.f32 %v2859, %v2947
      %v2992 = vadd.f32 %v2860, %v2950
      %v2993 = vadd.f32 %v2861, %v2955
      %v2994 = vadd.f32 %v2862, %v2958
      %v2995 = vadd.f32 %v2863, %v2963
      %v2996 = vadd.f32 %v2864, %v2966
      %v2997 = vadd.f32 %v2865, %v2971
      %v2998 = vadd.f32 %v2866, %v2974
      %v2999 = vadd.f32 %v2867, %v2979
      %v3000 = vadd.f32 %v2868, %v2982
      %v3001 = vrot.slane %v2188, 2
      %v3002 = vrot.slane %v2189, 2
      %v3003 = vsel %vm978, %v3001, %v3002
      %v3004 = vrot.slane %v2190, 2
      %v3005 = vsel %vm978, %v3002, %v3004
      %v3008 = vpack.c.bf16 %v3005, %v3003
      %s3009 = scalar_lea.vmem %s4, 10
      %v3010 = vld [vmem:[%s3009] sm:$0x3]
      %v3012 = vsel %vm466, %v3008, 0
      %v3015 = vsel %vm715, %v3010, 0
      %3017 = vmatprep.subr.bf16.mxu0 0
      %3018 = vmatpush1.bf16.msra.mxu0 %v3015
      %3019 = vmatprep.subr.bf16.mxu0 0
      %3020 = vmatpush1.bf16.msra.mxu0 0
      %3021 = vmatprep.subr.bf16.mxu0 0
      %3022 = vmatpush1.bf16.msra.mxu0 0
      %3023 = vmatprep.subr.bf16.mxu0 0
      %3024 = vmatpush1.bf16.msra.mxu0 0
      %3025 = vmatprep.subr.bf16.mxu0 0
      %3026 = vmatpush1.bf16.msra.mxu0 0
      %3027 = vmatprep.subr.bf16.mxu0 0
      %3028 = vmatpush1.bf16.msra.mxu0 0
      %3029 = vmatprep.subr.bf16.mxu0 0
      %3030 = vmatpush1.bf16.msra.mxu0 0
      %3031 = vmatprep.subr.bf16.mxu0 0
      %3032 = vmatpush1.bf16.msra.mxu0 0
      %3033 = vmatprep.subr.bf16.mxu0 0
      %3034 = vmatpush1.bf16.msra.mxu0 0
      %3035 = vmatprep.subr.bf16.mxu0 0
      %3036 = vmatpush1.bf16.msra.mxu0 0
      %3037 = vmatprep.subr.bf16.mxu0 0
      %3038 = vmatpush1.bf16.msra.mxu0 0
      %3039 = vmatprep.subr.bf16.mxu0 0
      %3040 = vmatpush1.bf16.msra.mxu0 0
      %3041 = vmatprep.subr.bf16.mxu0 0
      %3042 = vmatpush1.bf16.msra.mxu0 0
      %3043 = vmatprep.subr.bf16.mxu0 0
      %3044 = vmatpush1.bf16.msra.mxu0 0
      %3045 = vmatprep.subr.bf16.mxu0 0
      %3046 = vmatpush1.bf16.msra.mxu0 0
      %3047 = vmatprep.subr.bf16.mxu0 0
      %3048 = vmatpush1.bf16.msra.mxu0 0
      %3049 = vmatprep.mubr.bf16.mxu0 0
      %3050 = vmatmul.mubr.bf16.gmra.mrb[0].mxu0 %v2611
      %v3051 = vpop.f32.mrb[0].mxu0
      %v3052 = vadd.f32 0.0, %v3051
      %v3053 = vpop.f32.mrb[0].mxu0
      %v3054 = vpop.f32.mrb[0].mxu0
      %v3055 = vadd.f32 0.0, %v3054
      %v3056 = vpop.f32.mrb[0].mxu0
      %3057 = vmatprep.mubr.bf16.mxu0 0
      %3058 = vmatmul.mubr.bf16.gmra.mrb[0].mxu0 %v2614
      %v3059 = vpop.f32.mrb[0].mxu0
      %v3060 = vadd.f32 0.0, %v3059
      %v3061 = vpop.f32.mrb[0].mxu0
      %v3062 = vpop.f32.mrb[0].mxu0
      %v3063 = vadd.f32 0.0, %v3062
      %v3064 = vpop.f32.mrb[0].mxu0
      %3065 = vmatprep.mubr.bf16.mxu0 0
      %3066 = vmatmul.mubr.bf16.gmra.mrb[0].mxu0 %v2617
      %v3067 = vpop.f32.mrb[0].mxu0
      %v3068 = vadd.f32 0.0, %v3067
      %v3069 = vpop.f32.mrb[0].mxu0
      %v3070 = vpop.f32.mrb[0].mxu0
      %v3071 = vadd.f32 0.0, %v3070
      %v3072 = vpop.f32.mrb[0].mxu0
      %3073 = vmatprep.mubr.bf16.mxu0 0
      %3074 = vmatmul.mubr.bf16.gmra.mrb[0].mxu0 %v2620
      %v3075 = vpop.f32.mrb[0].mxu0
      %v3076 = vadd.f32 0.0, %v3075
      %v3077 = vpop.f32.mrb[0].mxu0
      %v3078 = vpop.f32.mrb[0].mxu0
      %v3079 = vadd.f32 0.0, %v3078
      %v3080 = vpop.f32.mrb[0].mxu0
      %3081 = vmatprep.mubr.bf16.mxu0 0
      %3082 = vmatmul.mubr.bf16.gmra.mrb[0].mxu0 %v2623
      %v3083 = vpop.f32.mrb[0].mxu0
      %v3084 = vadd.f32 0.0, %v3083
      %v3085 = vpop.f32.mrb[0].mxu0
      %v3086 = vpop.f32.mrb[0].mxu0
      %v3087 = vadd.f32 0.0, %v3086
      %v3088 = vpop.f32.mrb[0].mxu0
      %3089 = vmatprep.mubr.bf16.mxu0 0
      %3090 = vmatmul.mubr.bf16.gmra.mrb[0].mxu0 %v2626
      %v3091 = vpop.f32.mrb[0].mxu0
      %v3092 = vadd.f32 0.0, %v3091
      %v3093 = vpop.f32.mrb[0].mxu0
      %v3094 = vpop.f32.mrb[0].mxu0
      %v3095 = vadd.f32 0.0, %v3094
      %v3096 = vpop.f32.mrb[0].mxu0
      %3097 = vmatprep.mubr.bf16.mxu0 0
      %3098 = vmatmul.mubr.bf16.gmra.mrb[0].mxu0 %v2629
      %v3099 = vpop.f32.mrb[0].mxu0
      %v3100 = vadd.f32 0.0, %v3099
      %v3101 = vpop.f32.mrb[0].mxu0
      %v3102 = vpop.f32.mrb[0].mxu0
      %v3103 = vadd.f32 0.0, %v3102
      %v3104 = vpop.f32.mrb[0].mxu0
      %3105 = vmatprep.mubr.bf16.mxu0 0
      %3106 = vmatmul.mubr.bf16.gmra.mrb[0].mxu0 %v3012
      %v3107 = vpop.f32.mrb[0].mxu0
      %v3108 = vadd.f32 0.0, %v3107
      %v3109 = vpop.f32.mrb[0].mxu0
      %v3110 = vpop.f32.mrb[0].mxu0
      %v3111 = vadd.f32 0.0, %v3110
      %v3112 = vpop.f32.mrb[0].mxu0
      %3113 = vdwg.mxu0
      %v3114 = vadd.f32 %v2985, %v3052
      %v3115 = vadd.f32 %v2986, %v3055
      %v3116 = vadd.f32 %v2987, %v3060
      %v3117 = vadd.f32 %v2988, %v3063
      %v3118 = vadd.f32 %v2989, %v3068
      %v3119 = vadd.f32 %v2990, %v3071
      %v3120 = vadd.f32 %v2991, %v3076
      %v3121 = vadd.f32 %v2992, %v3079
      %v3122 = vadd.f32 %v2993, %v3084
      %v3123 = vadd.f32 %v2994, %v3087
      %v3124 = vadd.f32 %v2995, %v3092
      %v3125 = vadd.f32 %v2996, %v3095
      %v3126 = vadd.f32 %v2997, %v3100
      %v3127 = vadd.f32 %v2998, %v3103
      %v3128 = vadd.f32 %v2999, %v3108
      %v3129 = vadd.f32 %v3000, %v3111
      %v3130 = vpack.c.bf16 %v2192, %v2191
      %s3131 = scalar_lea.vmem %s4, 12
      %v3132 = vld [vmem:[%s3131] sm:$0x3]
      %v3134 = vsel %vm466, %v3130, 0
      %v3137 = vsel %vm715, %v3132, 0
      %3139 = vmatprep.subr.bf16.mxu0 0
      %3140 = vmatpush1.bf16.msra.mxu0 %v3137
      %3141 = vmatprep.subr.bf16.mxu0 0
      %3142 = vmatpush1.bf16.msra.mxu0 0
      %3143 = vmatprep.subr.bf16.mxu0 0
      %3144 = vmatpush1.bf16.msra.mxu0 0
      %3145 = vmatprep.subr.bf16.mxu0 0
      %3146 = vmatpush1.bf16.msra.mxu0 0
      %3147 = vmatprep.subr.bf16.mxu0 0
      %3148 = vmatpush1.bf16.msra.mxu0 0
      %3149 = vmatprep.subr.bf16.mxu0 0
      %3150 = vmatpush1.bf16.msra.mxu0 0
      %3151 = vmatprep.subr.bf16.mxu0 0
      %3152 = vmatpush1.bf16.msra.mxu0 0
      %3153 = vmatprep.subr.bf16.mxu0 0
      %3154 = vmatpush1.bf16.msra.mxu0 0
      %3155 = vmatprep.subr.bf16.mxu0 0
      %3156 = vmatpush1.bf16.msra.mxu0 0
      %3157 = vmatprep.subr.bf16.mxu0 0
      %3158 = vmatpush1.bf16.msra.mxu0 0
      %3159 = vmatprep.subr.bf16.mxu0 0
      %3160 = vmatpush1.bf16.msra.mxu0 0
      %3161 = vmatprep.subr.bf16.mxu0 0
      %3162 = vmatpush1.bf16.msra.mxu0 0
      %3163 = vmatprep.subr.bf16.mxu0 0
      %3164 = vmatpush1.bf16.msra.mxu0 0
      %3165 = vmatprep.subr.bf16.mxu0 0
      %3166 = vmatpush1.bf16.msra.mxu0 0
      %3167 = vmatprep.subr.bf16.mxu0 0
      %3168 = vmatpush1.bf16.msra.mxu0 0
      %3169 = vmatprep.subr.bf16.mxu0 0
      %3170 = vmatpush1.bf16.msra.mxu0 0
      %3171 = vmatprep.mubr.bf16.mxu0 0
      %3172 = vmatmul.mubr.bf16.gmra.mrb[0].mxu0 %v2424
      %v3173 = vpop.f32.mrb[0].mxu0
      %v3174 = vadd.f32 0.0, %v3173
      %v3175 = vpop.f32.mrb[0].mxu0
      %v3176 = vpop.f32.mrb[0].mxu0
      %v3177 = vadd.f32 0.0, %v3176
      %v3178 = vpop.f32.mrb[0].mxu0
      %3179 = vmatprep.mubr.bf16.mxu0 0
      %3180 = vmatmul.mubr.bf16.gmra.mrb[0].mxu0 %v2427
      %v3181 = vpop.f32.mrb[0].mxu0
      %v3182 = vadd.f32 0.0, %v3181
      %v3183 = vpop.f32.mrb[0].mxu0
      %v3184 = vpop.f32.mrb[0].mxu0
      %v3185 = vadd.f32 0.0, %v3184
      %v3186 = vpop.f32.mrb[0].mxu0
      %3187 = vmatprep.mubr.bf16.mxu0 0
      %3188 = vmatmul.mubr.bf16.gmra.mrb[0].mxu0 %v2430
      %v3189 = vpop.f32.mrb[0].mxu0
      %v3190 = vadd.f32 0.0, %v3189
      %v3191 = vpop.f32.mrb[0].mxu0
      %v3192 = vpop.f32.mrb[0].mxu0
      %v3193 = vadd.f32 0.0, %v3192
      %v3194 = vpop.f32.mrb[0].mxu0
      %3195 = vmatprep.mubr.bf16.mxu0 0
      %3196 = vmatmul.mubr.bf16.gmra.mrb[0].mxu0 %v2433
      %v3197 = vpop.f32.mrb[0].mxu0
      %v3198 = vadd.f32 0.0, %v3197
      %v3199 = vpop.f32.mrb[0].mxu0
      %v3200 = vpop.f32.mrb[0].mxu0
      %v3201 = vadd.f32 0.0, %v3200
      %v3202 = vpop.f32.mrb[0].mxu0
      %3203 = vmatprep.mubr.bf16.mxu0 0
      %3204 = vmatmul.mubr.bf16.gmra.mrb[0].mxu0 %v2436
      %v3205 = vpop.f32.mrb[0].mxu0
      %v3206 = vadd.f32 0.0, %v3205
      %v3207 = vpop.f32.mrb[0].mxu0
      %v3208 = vpop.f32.mrb[0].mxu0
      %v3209 = vadd.f32 0.0, %v3208
      %v3210 = vpop.f32.mrb[0].mxu0
      %3211 = vmatprep.mubr.bf16.mxu0 0
      %3212 = vmatmul.mubr.bf16.gmra.mrb[0].mxu0 %v2439
      %v3213 = vpop.f32.mrb[0].mxu0
      %v3214 = vadd.f32 0.0, %v3213
      %v3215 = vpop.f32.mrb[0].mxu0
      %v3216 = vpop.f32.mrb[0].mxu0
      %v3217 = vadd.f32 0.0, %v3216
      %v3218 = vpop.f32.mrb[0].mxu0
      %3219 = vmatprep.mubr.bf16.mxu0 0
      %3220 = vmatmul.mubr.bf16.gmra.mrb[0].mxu0 %v2751
      %v3221 = vpop.f32.mrb[0].mxu0
      %v3222 = vadd.f32 0.0, %v3221
      %v3223 = vpop.f32.mrb[0].mxu0
      %v3224 = vpop.f32.mrb[0].mxu0
      %v3225 = vadd.f32 0.0, %v3224
      %v3226 = vpop.f32.mrb[0].mxu0
      %3227 = vmatprep.mubr.bf16.mxu0 0
      %3228 = vmatmul.mubr.bf16.gmra.mrb[0].mxu0 %v3134
      %v3229 = vpop.f32.mrb[0].mxu0
      %v3230 = vadd.f32 0.0, %v3229
      %v3231 = vpop.f32.mrb[0].mxu0
      %v3232 = vpop.f32.mrb[0].mxu0
      %v3233 = vadd.f32 0.0, %v3232
      %v3234 = vpop.f32.mrb[0].mxu0
      %3235 = vdwg.mxu0
      %v3236 = vadd.f32 %v3114, %v3174
      %v3237 = vadd.f32 %v3115, %v3177
      %v3238 = vadd.f32 %v3116, %v3182
      %v3239 = vadd.f32 %v3117, %v3185
      %v3240 = vadd.f32 %v3118, %v3190
      %v3241 = vadd.f32 %v3119, %v3193
      %v3242 = vadd.f32 %v3120, %v3198
      %v3243 = vadd.f32 %v3121, %v3201
      %v3244 = vadd.f32 %v3122, %v3206
      %v3245 = vadd.f32 %v3123, %v3209
      %v3246 = vadd.f32 %v3124, %v3214
      %v3247 = vadd.f32 %v3125, %v3217
      %v3248 = vadd.f32 %v3126, %v3222
      %v3249 = vadd.f32 %v3127, %v3225
      %v3250 = vadd.f32 %v3128, %v3230
      %v3251 = vadd.f32 %v3129, %v3233
      %v3255 = vrot.slane %v2191, 1
      %v3256 = vrot.slane %v2192, 1
      %v3257 = vsel %vm602, %v3255, %v3256
      %v3258 = vrot.slane %v2193, 1
      %v3259 = vsel %vm602, %v3256, %v3258
      %v3262 = vpack.c.bf16 %v3259, %v3257
      %s3263 = scalar_lea.vmem %s4, 14
      %v3264 = vld [vmem:[%s3263] sm:$0x3]
      %v3266 = vsel %vm466, %v3262, 0
      %v3269 = vsel %vm715, %v3264, 0
      %3271 = vmatprep.subr.bf16.mxu0 0
      %3272 = vmatpush1.bf16.msra.mxu0 %v3269
      %3273 = vmatprep.subr.bf16.mxu0 0
      %3274 = vmatpush1.bf16.msra.mxu0 0
      %3275 = vmatprep.subr.bf16.mxu0 0
      %3276 = vmatpush1.bf16.msra.mxu0 0
      %3277 = vmatprep.subr.bf16.mxu0 0
      %3278 = vmatpush1.bf16.msra.mxu0 0
      %3279 = vmatprep.subr.bf16.mxu0 0
      %3280 = vmatpush1.bf16.msra.mxu0 0
      %3281 = vmatprep.subr.bf16.mxu0 0
      %3282 = vmatpush1.bf16.msra.mxu0 0
      %3283 = vmatprep.subr.bf16.mxu0 0
      %3284 = vmatpush1.bf16.msra.mxu0 0
      %3285 = vmatprep.subr.bf16.mxu0 0
      %3286 = vmatpush1.bf16.msra.mxu0 0
      %3287 = vmatprep.subr.bf16.mxu0 0
      %3288 = vmatpush1.bf16.msra.mxu0 0
      %3289 = vmatprep.subr.bf16.mxu0 0
      %3290 = vmatpush1.bf16.msra.mxu0 0
      %3291 = vmatprep.subr.bf16.mxu0 0
      %3292 = vmatpush1.bf16.msra.mxu0 0
      %3293 = vmatprep.subr.bf16.mxu0 0
      %3294 = vmatpush1.bf16.msra.mxu0 0
      %3295 = vmatprep.subr.bf16.mxu0 0
      %3296 = vmatpush1.bf16.msra.mxu0 0
      %3297 = vmatprep.subr.bf16.mxu0 0
      %3298 = vmatpush1.bf16.msra.mxu0 0
      %3299 = vmatprep.subr.bf16.mxu0 0
      %3300 = vmatpush1.bf16.msra.mxu0 0
      %3301 = vmatprep.subr.bf16.mxu0 0
      %3302 = vmatpush1.bf16.msra.mxu0 0
      %3303 = vmatprep.mubr.bf16.mxu0 0
      %3304 = vmatmul.mubr.bf16.gmra.mrb[0].mxu0 %v2300
      %v3305 = vpop.f32.mrb[0].mxu0
      %v3306 = vadd.f32 0.0, %v3305
      %v3307 = vpop.f32.mrb[0].mxu0
      %v3308 = vpop.f32.mrb[0].mxu0
      %v3309 = vadd.f32 0.0, %v3308
      %v3310 = vpop.f32.mrb[0].mxu0
      %3311 = vmatprep.mubr.bf16.mxu0 0
      %3312 = vmatmul.mubr.bf16.gmra.mrb[0].mxu0 %v2303
      %v3313 = vpop.f32.mrb[0].mxu0
      %v3314 = vadd.f32 0.0, %v3313
      %v3315 = vpop.f32.mrb[0].mxu0
      %v3316 = vpop.f32.mrb[0].mxu0
      %v3317 = vadd.f32 0.0, %v3316
      %v3318 = vpop.f32.mrb[0].mxu0
      %3319 = vmatprep.mubr.bf16.mxu0 0
      %3320 = vmatmul.mubr.bf16.gmra.mrb[0].mxu0 %v2306
      %v3321 = vpop.f32.mrb[0].mxu0
      %v3322 = vadd.f32 0.0, %v3321
      %v3323 = vpop.f32.mrb[0].mxu0
      %v3324 = vpop.f32.mrb[0].mxu0
      %v3325 = vadd.f32 0.0, %v3324
      %v3326 = vpop.f32.mrb[0].mxu0
      %3327 = vmatprep.mubr.bf16.mxu0 0
      %3328 = vmatmul.mubr.bf16.gmra.mrb[0].mxu0 %v2309
      %v3329 = vpop.f32.mrb[0].mxu0
      %v3330 = vadd.f32 0.0, %v3329
      %v3331 = vpop.f32.mrb[0].mxu0
      %v3332 = vpop.f32.mrb[0].mxu0
      %v3333 = vadd.f32 0.0, %v3332
      %v3334 = vpop.f32.mrb[0].mxu0
      %3335 = vmatprep.mubr.bf16.mxu0 0
      %3336 = vmatmul.mubr.bf16.gmra.mrb[0].mxu0 %v2312
      %v3337 = vpop.f32.mrb[0].mxu0
      %v3338 = vadd.f32 0.0, %v3337
      %v3339 = vpop.f32.mrb[0].mxu0
      %v3340 = vpop.f32.mrb[0].mxu0
      %v3341 = vadd.f32 0.0, %v3340
      %v3342 = vpop.f32.mrb[0].mxu0
      %3343 = vmatprep.mubr.bf16.mxu0 0
      %3344 = vmatmul.mubr.bf16.gmra.mrb[0].mxu0 %v2315
      %v3345 = vpop.f32.mrb[0].mxu0
      %v3346 = vadd.f32 0.0, %v3345
      %v3347 = vpop.f32.mrb[0].mxu0
      %v3348 = vpop.f32.mrb[0].mxu0
      %v3349 = vadd.f32 0.0, %v3348
      %v3350 = vpop.f32.mrb[0].mxu0
      %3351 = vmatprep.mubr.bf16.mxu0 0
      %3352 = vmatmul.mubr.bf16.gmra.mrb[0].mxu0 %v2883
      %v3353 = vpop.f32.mrb[0].mxu0
      %v3354 = vadd.f32 0.0, %v3353
      %v3355 = vpop.f32.mrb[0].mxu0
      %v3356 = vpop.f32.mrb[0].mxu0
      %v3357 = vadd.f32 0.0, %v3356
      %v3358 = vpop.f32.mrb[0].mxu0
      %3359 = vmatprep.mubr.bf16.mxu0 0
      %3360 = vmatmul.mubr.bf16.gmra.mrb[0].mxu0 %v3266
      %v3361 = vpop.f32.mrb[0].mxu0
      %v3362 = vadd.f32 0.0, %v3361
      %v3363 = vpop.f32.mrb[0].mxu0
      %v3364 = vpop.f32.mrb[0].mxu0
      %v3365 = vadd.f32 0.0, %v3364
      %v3366 = vpop.f32.mrb[0].mxu0
      %3367 = vdwg.mxu0
      %v3368 = vadd.f32 %v3236, %v3306
      %v3369 = vadd.f32 %v3237, %v3309
      %v3370 = vadd.f32 %v3238, %v3314
      %v3371 = vadd.f32 %v3239, %v3317
      %v3372 = vadd.f32 %v3240, %v3322
      %v3373 = vadd.f32 %v3241, %v3325
      %v3374 = vadd.f32 %v3242, %v3330
      %v3375 = vadd.f32 %v3243, %v3333
      %v3376 = vadd.f32 %v3244, %v3338
      %v3377 = vadd.f32 %v3245, %v3341
      %v3378 = vadd.f32 %v3246, %v3346
      %v3379 = vadd.f32 %v3247, %v3349
      %v3380 = vadd.f32 %v3248, %v3354
      %v3381 = vadd.f32 %v3249, %v3357
      %v3382 = vadd.f32 %v3250, %v3362
      %v3383 = vadd.f32 %v3251, %v3365
      %v3384 = vrot.slane %v2191, 2
      %v3385 = vrot.slane %v2192, 2
      %v3386 = vsel %vm978, %v3384, %v3385
      %v3387 = vrot.slane %v2193, 2
      %v3388 = vsel %vm978, %v3385, %v3387
      %v3391 = vpack.c.bf16 %v3388, %v3386
      %s3392 = scalar_lea.vmem %s4, 16
      %v3393 = vld [vmem:[%s3392] sm:$0x3]
      %v3395 = vsel %vm466, %v3391, 0
      %v3398 = vsel %vm715, %v3393, 0
      %3400 = vmatprep.subr.bf16.mxu0 0
      %3401 = vmatpush1.bf16.msra.mxu0 %v3398
      %3402 = vmatprep.subr.bf16.mxu0 0
      %3403 = vmatpush1.bf16.msra.mxu0 0
      %3404 = vmatprep.subr.bf16.mxu0 0
      %3405 = vmatpush1.bf16.msra.mxu0 0
      %3406 = vmatprep.subr.bf16.mxu0 0
      %3407 = vmatpush1.bf16.msra.mxu0 0
      %3408 = vmatprep.subr.bf16.mxu0 0
      %3409 = vmatpush1.bf16.msra.mxu0 0
      %3410 = vmatprep.subr.bf16.mxu0 0
      %3411 = vmatpush1.bf16.msra.mxu0 0
      %3412 = vmatprep.subr.bf16.mxu0 0
      %3413 = vmatpush1.bf16.msra.mxu0 0
      %3414 = vmatprep.subr.bf16.mxu0 0
      %3415 = vmatpush1.bf16.msra.mxu0 0
      %3416 = vmatprep.subr.bf16.mxu0 0
      %3417 = vmatpush1.bf16.msra.mxu0 0
      %3418 = vmatprep.subr.bf16.mxu0 0
      %3419 = vmatpush1.bf16.msra.mxu0 0
      %3420 = vmatprep.subr.bf16.mxu0 0
      %3421 = vmatpush1.bf16.msra.mxu0 0
      %3422 = vmatprep.subr.bf16.mxu0 0
      %3423 = vmatpush1.bf16.msra.mxu0 0
      %3424 = vmatprep.subr.bf16.mxu0 0
      %3425 = vmatpush1.bf16.msra.mxu0 0
      %3426 = vmatprep.subr.bf16.mxu0 0
      %3427 = vmatpush1.bf16.msra.mxu0 0
      %3428 = vmatprep.subr.bf16.mxu0 0
      %3429 = vmatpush1.bf16.msra.mxu0 0
      %3430 = vmatprep.subr.bf16.mxu0 0
      %3431 = vmatpush1.bf16.msra.mxu0 0
      %3432 = vmatprep.mubr.bf16.mxu0 0
      %3433 = vmatmul.mubr.bf16.gmra.mrb[0].mxu0 %v2614
      %v3434 = vpop.f32.mrb[0].mxu0
      %v3435 = vadd.f32 0.0, %v3434
      %v3436 = vpop.f32.mrb[0].mxu0
      %v3437 = vpop.f32.mrb[0].mxu0
      %v3438 = vadd.f32 0.0, %v3437
      %v3439 = vpop.f32.mrb[0].mxu0
      %3440 = vmatprep.mubr.bf16.mxu0 0
      %3441 = vmatmul.mubr.bf16.gmra.mrb[0].mxu0 %v2617
      %v3442 = vpop.f32.mrb[0].mxu0
      %v3443 = vadd.f32 0.0, %v3442
      %v3444 = vpop.f32.mrb[0].mxu0
      %v3445 = vpop.f32.mrb[0].mxu0
      %v3446 = vadd.f32 0.0, %v3445
      %v3447 = vpop.f32.mrb[0].mxu0
      %3448 = vmatprep.mubr.bf16.mxu0 0
      %3449 = vmatmul.mubr.bf16.gmra.mrb[0].mxu0 %v2620
      %v3450 = vpop.f32.mrb[0].mxu0
      %v3451 = vadd.f32 0.0, %v3450
      %v3452 = vpop.f32.mrb[0].mxu0
      %v3453 = vpop.f32.mrb[0].mxu0
      %v3454 = vadd.f32 0.0, %v3453
      %v3455 = vpop.f32.mrb[0].mxu0
      %3456 = vmatprep.mubr.bf16.mxu0 0
      %3457 = vmatmul.mubr.bf16.gmra.mrb[0].mxu0 %v2623
      %v3458 = vpop.f32.mrb[0].mxu0
      %v3459 = vadd.f32 0.0, %v3458
      %v3460 = vpop.f32.mrb[0].mxu0
      %v3461 = vpop.f32.mrb[0].mxu0
      %v3462 = vadd.f32 0.0, %v3461
      %v3463 = vpop.f32.mrb[0].mxu0
      %3464 = vmatprep.mubr.bf16.mxu0 0
      %3465 = vmatmul.mubr.bf16.gmra.mrb[0].mxu0 %v2626
      %v3466 = vpop.f32.mrb[0].mxu0
      %v3467 = vadd.f32 0.0, %v3466
      %v3468 = vpop.f32.mrb[0].mxu0
      %v3469 = vpop.f32.mrb[0].mxu0
      %v3470 = vadd.f32 0.0, %v3469
      %v3471 = vpop.f32.mrb[0].mxu0
      %3472 = vmatprep.mubr.bf16.mxu0 0
      %3473 = vmatmul.mubr.bf16.gmra.mrb[0].mxu0 %v2629
      %v3474 = vpop.f32.mrb[0].mxu0
      %v3475 = vadd.f32 0.0, %v3474
      %v3476 = vpop.f32.mrb[0].mxu0
      %v3477 = vpop.f32.mrb[0].mxu0
      %v3478 = vadd.f32 0.0, %v3477
      %v3479 = vpop.f32.mrb[0].mxu0
      %3480 = vmatprep.mubr.bf16.mxu0 0
      %3481 = vmatmul.mubr.bf16.gmra.mrb[0].mxu0 %v3012
      %v3482 = vpop.f32.mrb[0].mxu0
      %v3483 = vadd.f32 0.0, %v3482
      %v3484 = vpop.f32.mrb[0].mxu0
      %v3485 = vpop.f32.mrb[0].mxu0
      %v3486 = vadd.f32 0.0, %v3485
      %v3487 = vpop.f32.mrb[0].mxu0
      %3488 = vmatprep.mubr.bf16.mxu0 0
      %3489 = vmatmul.mubr.bf16.gmra.mrb[0].mxu0 %v3395
      %v3490 = vpop.f32.mrb[0].mxu0
      %v3491 = vadd.f32 0.0, %v3490
      %v3492 = vpop.f32.mrb[0].mxu0
      %v3493 = vpop.f32.mrb[0].mxu0
      %v3494 = vadd.f32 0.0, %v3493
      %v3495 = vpop.f32.mrb[0].mxu0
      %3496 = vdwg.mxu0
      %v3497 = vadd.f32 %v3368, %v3435
      %v3498 = vadd.f32 %v3369, %v3438
      %v3499 = vadd.f32 %v3370, %v3443
      %v3500 = vadd.f32 %v3371, %v3446
      %v3501 = vadd.f32 %v3372, %v3451
      %v3502 = vadd.f32 %v3373, %v3454
      %v3503 = vadd.f32 %v3374, %v3459
      %v3504 = vadd.f32 %v3375, %v3462
      %v3505 = vadd.f32 %v3376, %v3467
      %v3506 = vadd.f32 %v3377, %v3470
      %v3507 = vadd.f32 %v3378, %v3475
      %v3508 = vadd.f32 %v3379, %v3478
      %v3509 = vadd.f32 %v3380, %v3483
      %v3510 = vadd.f32 %v3381, %v3486
      %v3511 = vadd.f32 %v3382, %v3491
      %v3512 = vadd.f32 %v3383, %v3494
      %v3513 = vld [vmem:[%s371] sm:$0xff]
      %v3514 = vld [vmem:[%s371 + $0x8] sm:$0xff]
      %v3515 = vld [vmem:[%s371 + $0x10] sm:$0xff]
      %v3516 = vld [vmem:[%s371 + $0x18] sm:$0xff]
      %v3517 = vld [vmem:[%s371 + $0x20] sm:$0xff]
      %v3518 = vld [vmem:[%s371 + $0x28] sm:$0xff]
      %v3519 = vld [vmem:[%s371 + $0x30] sm:$0xff]
      %v3520 = vld [vmem:[%s371 + $0x38] sm:$0xff]
      %v3521 = vld [vmem:[%s371 + $0x40] sm:$0xff]
      %v3522 = vld [vmem:[%s371 + $0x48] sm:$0xff]
      %v3523 = vld [vmem:[%s371 + $0x50] sm:$0xff]
      %v3524 = vld [vmem:[%s371 + $0x58] sm:$0xff]
      %v3525 = vld [vmem:[%s371 + $0x60] sm:$0xff]
      %v3526 = vld [vmem:[%s371 + $0x68] sm:$0xff]
      %v3527 = vld [vmem:[%s371 + $0x70] sm:$0xff]
      %v3528 = vld [vmem:[%s371 + $0x78] sm:$0xff]
      %v3529 = vadd.f32 %v3513, %v3497
      %v3530 = vadd.f32 %v3514, %v3498
      %v3531 = vadd.f32 %v3515, %v3499
      %v3532 = vadd.f32 %v3516, %v3500
      %v3533 = vadd.f32 %v3517, %v3501
      %v3534 = vadd.f32 %v3518, %v3502
      %v3535 = vadd.f32 %v3519, %v3503
      %v3536 = vadd.f32 %v3520, %v3504
      %v3537 = vadd.f32 %v3521, %v3505
      %v3538 = vadd.f32 %v3522, %v3506
      %v3539 = vadd.f32 %v3523, %v3507
      %v3540 = vadd.f32 %v3524, %v3508
      %v3541 = vadd.f32 %v3525, %v3509
      %v3542 = vadd.f32 %v3526, %v3510
      %v3543 = vadd.f32 %v3527, %v3511
      %v3544 = vadd.f32 %v3528, %v3512
      %3545 = vst.msk [vmem:[%s401] sm:$0xff] %vm466, %v3529
      %3546 = vst.msk [vmem:[%s401 + $0x8] sm:$0xff] %vm466, %v3530
      %3547 = vst.msk [vmem:[%s401 + $0x10] sm:$0xff] %vm466, %v3531
      %3548 = vst.msk [vmem:[%s401 + $0x18] sm:$0xff] %vm466, %v3532
      %3549 = vst.msk [vmem:[%s401 + $0x20] sm:$0xff] %vm466, %v3533
      %3550 = vst.msk [vmem:[%s401 + $0x28] sm:$0xff] %vm466, %v3534
      %3551 = vst.msk [vmem:[%s401 + $0x30] sm:$0xff] %vm466, %v3535
      %3552 = vst.msk [vmem:[%s401 + $0x38] sm:$0xff] %vm466, %v3536
      %3553 = vst.msk [vmem:[%s401 + $0x40] sm:$0xff] %vm466, %v3537
      %3554 = vst.msk [vmem:[%s401 + $0x48] sm:$0xff] %vm466, %v3538
      %3555 = vst.msk [vmem:[%s401 + $0x50] sm:$0xff] %vm466, %v3539
      %3556 = vst.msk [vmem:[%s401 + $0x58] sm:$0xff] %vm466, %v3540
      %3557 = vst.msk [vmem:[%s401 + $0x60] sm:$0xff] %vm466, %v3541
      %3558 = vst.msk [vmem:[%s401 + $0x68] sm:$0xff] %vm466, %v3542
      %3559 = vst.msk [vmem:[%s401 + $0x70] sm:$0xff] %vm466, %v3543
      %3560 = vst.msk [vmem:[%s401 + $0x78] sm:$0xff] %vm466, %v3544
      %s3561 = smul.u32 8, %s21
      %p3562 = scmp.lt.s32.totalorder %s20, 1
      %s3563 = scalar_select %p3562, %s20, 1
      %p3564 = scmp.lt.s32.totalorder %s3561, 15
      %s3565 = scalar_select %p3564, %s3561, 15
      %s3566 = smul.addr %s3565, 2
      %s3567 = smul.addr %s3563, 32
      %s3568 = sadd.s32 %s3566, %s3567
      %s3569 = smul.addr %s3568, 8
      %s3570 = scalar_lea.vmem %s5, %s3569
      // Predicated region
      $region65: #{resblock_pallas.1} parent=39 // pred_check
        %p3571 = pneg %p190
      $region66: #{resblock_pallas.1} parent=39 // pred_check_branch
        %3573 = sbr.rel (%p3571) target = $region68
      $region67: #{resblock_pallas.1} parent=39 // pred_region
        %s3574 = smul.u32 8, %s21
      $region68: #{resblock_pallas.1} parent=39 // pred_fallthru
        _
    $region40: #{resblock_pallas.1} parent=5 // pred_fallthru
      _
    %p3575 = scmp.le.s32.totalorder 2, %s11
    // Predicated region
    $region69: #{resblock_pallas.1} parent=5 // pred_check
      %p3576 = pneg %p3575
    $region70: #{resblock_pallas.1} parent=5 // pred_check_branch
      %3578 = sbr.rel (%p3576) target = $region72
    $region71: #{resblock_pallas.1} parent=5 // pred_region
      %s3579 = ssub.s32 %s11, 2
      // Predicated region
      $region73: #{resblock_pallas.1} parent=71 // pred_check
        %p3580 = pneg %p196
      $region74: #{resblock_pallas.1} parent=71 // pred_check_branch
        %3582 = sbr.rel (%p3580) target = $region76
      $region75: #{resblock_pallas.1} parent=71 // pred_region
        %s3583 = smul.u32 8, %s23
        %p3584 = scmp.lt.s32.totalorder %s22, 1
        %s3585 = scalar_select %p3584, %s22, 1
        %p3586 = scmp.lt.s32.totalorder %s3583, 15
        %s3587 = scalar_select %p3586, %s3583, 15
        %s3588 = smul.addr %s3587, 2
        %s3589 = smul.addr %s3585, 32
        %s3590 = sadd.s32 %s3588, %s3589
        %s3591 = smul.addr %s3590, 8
        %s3592 = scalar_lea.vmem %s5, %s3591
      $region76: #{resblock_pallas.1} parent=71 // pred_fallthru
        _
    $region72: #{resblock_pallas.1} parent=5 // pred_fallthru
      _
  $region6: #{resblock_pallas.1} parent=0 // loop_footer
    %s15 = sadd.s32 1, %s11
  $region7: #{resblock_pallas.1} parent=0 // loop_footer_branch
    %10 = sbr.rel target = $region3
  $region8: #{resblock_pallas.1} parent=0 // loop_exit
    _

</llo_original>
